<compile_context>
chip_gen: v7x
topology: tpu7x:2x2x1
jax: 0.10.0
libtpu: 0.0.40
codegen_flags: <defaults>
</compile_context>

<pallas_src>
import functools

import jax
import jax.numpy as jnp
from jax import lax
from jax.experimental import pallas as pl
from jax.experimental.pallas import tpu as pltpu


# ------------------------------ Pallas kernel ------------------------------ #
def _residual_block_kernel(Wp, M1, alpha_ref, x_ref, w1_ref, b1_ref,
                           w2_ref, b2_ref, mask_ref, o_ref, hpad_ref):
    # alpha_ref: (1,)        f32  SMEM  -- shared PReLU slope
    # x_ref:     (1, M_in,C) f32  VMEM  -- flattened zero-padded NHWC image (+tail rows)
    # w*_ref:    (9, C, C)   bf16 VMEM  -- tap-major (kh*3+kw, c_in, c_out), BN folded
    # b*_ref:    (1, C)      f32  VMEM  -- BN-folded bias
    # mask_ref:  (M1, 1)     f32  VMEM  -- 1.0 where (flat_idx % Wp) < W else 0.0
    # o_ref:     (1, M1, C)  f32  VMEM
    # hpad_ref:  (M_in, C)   f32  VMEM scratch -- zero-padded intermediate activation
    xin = x_ref[0]                                        # (M_in, C) f32

    def conv9(src, w_ref):
        # 3x3 "same" conv as 9 shifted-window matmuls accumulated in f32.
        acc = jnp.zeros((M1, w_ref.shape[-1]), jnp.float32)
        for kh in range(3):
            for kw in range(3):
                off = kh * Wp + kw
                tap = src[off:off + M1, :].astype(jnp.bfloat16)
                acc = acc + jnp.dot(tap, w_ref[kh * 3 + kw],
                                    preferred_element_type=jnp.float32)
        return acc

    # ---- conv1 + folded BN1 + PReLU ----
    h = conv9(xin, w1_ref) + b1_ref[...]
    a = alpha_ref[0]
    h = jnp.where(h > 0, h, a * h)

    # ---- scatter h into the zero-padded flat layout expected by conv2 ----
    hpad_ref[...] = jnp.zeros_like(hpad_ref)
    hpad_ref[pl.ds(Wp + 1, M1), :] = (h * mask_ref[...]).astype(hpad_ref.dtype)

    # ---- conv2 + folded BN2 + residual add ----
    out = conv9(hpad_ref[...], w2_ref) + b2_ref[...]
    o_ref[0] = (out + xin[Wp + 1:Wp + 1 + M1, :]).astype(o_ref.dtype)


# ------------------------------ Module wrapper ------------------------------ #
def residual_block_forward(x_nchw, params):
    """x + BN2(Conv2(PReLU(BN1(Conv1(x)))))  -- BatchNorm in inference mode."""
    (w1, b1, g1, be1, rm1, rv1, alpha, w2, b2, g2, be2, rm2, rv2) = params
    eps = 1e-5
    N, C, H, W = x_nchw.shape
    Hp, Wp = H + 2, W + 2
    M1 = H * Wp                    # flat output rows computed per image
    M_in = (H + 3) * Wp            # padded-flat rows + tail so all 9 shifts are in bounds

    def fold(w, b, g, be, rm, rv):
        # Fold inference-mode BatchNorm into the conv weight / bias.
        s = g / jnp.sqrt(rv + eps)
        wf = w * s[:, None, None, None]
        bf = (b - rm) * s + be
        # (C_out, C_in, 3, 3) -> (3, 3, C_in, C_out) -> (9, C_in, C_out), bf16 for the MXU.
        wt = jnp.transpose(wf, (2, 3, 1, 0)).reshape(9, C, C).astype(jnp.bfloat16)
        return wt, bf.reshape(1, C).astype(jnp.float32)

    w1t, b1r = fold(w1, b1, g1, be1, rm1, rv1)
    w2t, b2r = fold(w2, b2, g2, be2, rm2, rv2)
    alpha_s = jnp.asarray(alpha, jnp.float32).reshape(1)

    # NCHW -> NHWC, zero-pad spatially, flatten padded grid row-major, add tail rows.
    x_nhwc = jnp.transpose(x_nchw, (0, 2, 3, 1)).astype(jnp.float32)
    xpad = jnp.pad(x_nhwc, ((0, 0), (1, 1), (1, 1), (0, 0)))
    xflat = jnp.pad(xpad.reshape(N, Hp * Wp, C),
                    ((0, 0), (0, M_in - Hp * Wp), (0, 0)))

    # Column-validity mask: flat index i is a real output column iff (i % Wp) < W.
    mask = (jnp.arange(M1, dtype=jnp.int32) % Wp < W).astype(jnp.float32).reshape(M1, 1)

    kernel = functools.partial(_residual_block_kernel, Wp, M1)
    # TODO(synk): for images whose padded plane exceeds the VMEM budget, tile H per
    # grid step with halo'd manual DMA instead of whole-image blocks.
    out_flat = pl.pallas_call(
        kernel,
        out_shape=jax.ShapeDtypeStruct((N, M1, C), jnp.float32),
        grid_spec=pltpu.PrefetchScalarGridSpec(
            num_scalar_prefetch=0,
            grid=(N,),
            in_specs=[
                pl.BlockSpec(memory_space=pltpu.MemorySpace.SMEM),   # alpha (scalar)
                pl.BlockSpec((1, M_in, C), lambda n: (n, 0, 0)),     # x, flattened + padded
                pl.BlockSpec((9, C, C), lambda n: (0, 0, 0)),        # w1 taps (BN folded)
                pl.BlockSpec((1, C), lambda n: (0, 0)),              # b1
                pl.BlockSpec((9, C, C), lambda n: (0, 0, 0)),        # w2 taps (BN folded)
                pl.BlockSpec((1, C), lambda n: (0, 0)),              # b2
                pl.BlockSpec((M1, 1), lambda n: (0, 0)),             # column mask
            ],
            out_specs=pl.BlockSpec((1, M1, C), lambda n: (n, 0, 0)),
            scratch_shapes=[pltpu.VMEM((M_in, C), jnp.float32)],
        ),
        compiler_params=pltpu.CompilerParams(
            dimension_semantics=("parallel",)),
    )(alpha_s, xflat, w1t, b1r, w2t, b2r, mask)

    # (N, H*Wp, C) -> (N, H, W, C) -> NCHW  (drop the two dead pad columns).
    out = out_flat.reshape(N, H, Wp, C)[:, :, :W, :]
    return jnp.transpose(out, (0, 3, 1, 2))


# ------------------------- Pure-JAX reference (check) ----------------------- #
def _reference_forward(x, params):
    (w1, b1, g1, be1, rm1, rv1, alpha, w2, b2, g2, be2, rm2, rv2) = params
    eps = 1e-5

    def conv(z, w, b):
        y = lax.conv_general_dilated(z, w, (1, 1), ((1, 1), (1, 1)),
                                     dimension_numbers=("NCHW", "OIHW", "NCHW"),
                                     precision=lax.Precision.HIGHEST)
        return y + b[None, :, None, None]

    def bn(z, g, be, rm, rv):
        return ((z - rm[None, :, None, None])
                / jnp.sqrt(rv[None, :, None, None] + eps)
                * g[None, :, None, None] + be[None, :, None, None])

    h = bn(conv(x, w1, b1), g1, be1, rm1, rv1)
    h = jnp.where(h > 0, h, alpha * h)
    h = bn(conv(h, w2, b2), g2, be2, rm2, rv2)
    return x + h


# ----------------------------------- Main ----------------------------------- #
if __name__ == "__main__":
    key = jax.random.PRNGKey(0)
    ks = jax.random.split(key, 13)

    N, C, H, W = 2, 4, 16, 16
    x = jax.random.normal(ks[0], (N, C, H, W), dtype=jnp.float32)

    fan_in = C * 9
    w1 = jax.random.normal(ks[1], (C, C, 3, 3), jnp.float32) / jnp.sqrt(fan_in)
    b1 = 0.05 * jax.random.normal(ks[2], (C,), jnp.float32)
    g1 = 1.0 + 0.1 * jax.random.normal(ks[3], (C,), jnp.float32)
    be1 = 0.1 * jax.random.normal(ks[4], (C,), jnp.float32)
    rm1 = 0.1 * jax.random.normal(ks[5], (C,), jnp.float32)
    rv1 = 1.0 + 0.2 * jax.random.uniform(ks[6], (C,), dtype=jnp.float32)

    alpha = jnp.float32(0.25)                         # nn.PReLU() default init

    w2 = jax.random.normal(ks[7], (C, C, 3, 3), jnp.float32) / jnp.sqrt(fan_in)
    b2 = 0.05 * jax.random.normal(ks[8], (C,), jnp.float32)
    g2 = 1.0 + 0.1 * jax.random.normal(ks[9], (C,), jnp.float32)
    be2 = 0.1 * jax.random.normal(ks[10], (C,), jnp.float32)
    rm2 = 0.1 * jax.random.normal(ks[11], (C,), jnp.float32)
    rv2 = 1.0 + 0.2 * jax.random.uniform(ks[12], (C,), dtype=jnp.float32)

    params = (w1, b1, g1, be1, rm1, rv1, alpha, w2, b2, g2, be2, rm2, rv2)

    fwd = jax.jit(residual_block_forward)
    y = jax.block_until_ready(fwd(x, params))
    assert y.shape == (N, C, H, W), y.shape

    y_ref = _reference_forward(x, params)
    err = float(jnp.max(jnp.abs(y - y_ref)))
    assert err < 0.2, f"max abs err {err}"

    print("KERNEL_OK")
</pallas_src>

<mosaic_0001>
module attributes {stable_mosaic.version = 11 : i64} {
  func.func @_residual_block_kernel(%arg0: i32, %arg1: memref<1xf32, #tpu.memory_space<smem>>, %arg2: memref<1x342x4xf32, #tpu.memory_space<vmem>>, %arg3: memref<9x4x4xbf16, #tpu.memory_space<vmem>>, %arg4: memref<1x4xf32, #tpu.memory_space<vmem>>, %arg5: memref<9x4x4xbf16, #tpu.memory_space<vmem>>, %arg6: memref<1x4xf32, #tpu.memory_space<vmem>>, %arg7: memref<288x1xf32, #tpu.memory_space<vmem>>, %arg8: memref<1x288x4xf32, #tpu.memory_space<vmem>>, %arg9: memref<342x4xf32, #tpu.memory_space<vmem>>) attributes {dimension_semantics = [#tpu.dimension_semantics<parallel>], iteration_bounds = array<i64: 2>, scalar_prefetch = 0 : i64, scratch_operands = 1 : i64, tpu.core_type = #tpu.core_type<tc>, window_params = [{transform_indices = @transform_0, window_bounds = array<i64: 1>}, {transform_indices = @transform_1, window_bounds = array<i64: 1, 342, 4>}, {pipeline_mode = #tpu.pipeline_mode<synchronous>, transform_indices = @transform_2, window_bounds = array<i64: 9, 4, 4>}, {pipeline_mode = #tpu.pipeline_mode<synchronous>, transform_indices = @transform_3, window_bounds = array<i64: 1, 4>}, {pipeline_mode = #tpu.pipeline_mode<synchronous>, transform_indices = @transform_4, window_bounds = array<i64: 9, 4, 4>}, {pipeline_mode = #tpu.pipeline_mode<synchronous>, transform_indices = @transform_5, window_bounds = array<i64: 1, 4>}, {pipeline_mode = #tpu.pipeline_mode<synchronous>, transform_indices = @transform_6, window_bounds = array<i64: 288, 1>}, {transform_indices = @transform_7, window_bounds = array<i64: 1, 288, 4>}]} {
    %c0 = arith.constant 0 : index
    %c0_0 = arith.constant 0 : index
    %c0_1 = arith.constant 0 : index
    %0 = vector.load %arg2[%c0, %c0_0, %c0_1] : memref<1x342x4xf32, #tpu.memory_space<vmem>>, vector<1x342x4xf32>
    %1 = vector.shape_cast %0 : vector<1x342x4xf32> to vector<342x4xf32>
    %cst = arith.constant 0.000000e+00 : f32
    %2 = vector.broadcast %cst : f32 to vector<288x4xf32>
    %3 = vector.extract_strided_slice %1 {offsets = [0, 0], sizes = [288, 4], strides = [1, 1]} : vector<342x4xf32> to vector<288x4xf32>
    %4 = arith.truncf %3 : vector<288x4xf32> to vector<288x4xbf16>
    %c0_2 = arith.constant 0 : index
    %c0_3 = arith.constant 0 : index
    %c0_4 = arith.constant 0 : index
    %5 = vector.load %arg3[%c0_2, %c0_3, %c0_4] : memref<9x4x4xbf16, #tpu.memory_space<vmem>>, vector<1x4x4xbf16>
    %6 = vector.shape_cast %5 : vector<1x4x4xbf16> to vector<4x4xbf16>
    %cst_5 = arith.constant dense<0.000000e+00> : vector<288x4xf32>
    %7 = tpu.matmul %4, %6, %cst_5 {dimension_numbers = #tpu.dot_dimension_numbers<[1], [0], [0], [1], [0, 0, 1, 1], [], []>} : vector<288x4xbf16>, vector<4x4xbf16>, vector<288x4xf32> -> vector<288x4xf32>
    %8 = arith.addf %2, %7 : vector<288x4xf32>
    %9 = vector.extract_strided_slice %1 {offsets = [1, 0], sizes = [288, 4], strides = [1, 1]} : vector<342x4xf32> to vector<288x4xf32>
    %10 = arith.truncf %9 : vector<288x4xf32> to vector<288x4xbf16>
    %c1 = arith.constant 1 : index
    %c0_6 = arith.constant 0 : index
    %c0_7 = arith.constant 0 : index
    %11 = vector.load %arg3[%c1, %c0_6, %c0_7] : memref<9x4x4xbf16, #tpu.memory_space<vmem>>, vector<1x4x4xbf16>
    %12 = vector.shape_cast %11 : vector<1x4x4xbf16> to vector<4x4xbf16>
    %cst_8 = arith.constant dense<0.000000e+00> : vector<288x4xf32>
    %13 = tpu.matmul %10, %12, %cst_8 {dimension_numbers = #tpu.dot_dimension_numbers<[1], [0], [0], [1], [0, 0, 1, 1], [], []>} : vector<288x4xbf16>, vector<4x4xbf16>, vector<288x4xf32> -> vector<288x4xf32>
    %14 = arith.addf %8, %13 : vector<288x4xf32>
    %15 = vector.extract_strided_slice %1 {offsets = [2, 0], sizes = [288, 4], strides = [1, 1]} : vector<342x4xf32> to vector<288x4xf32>
    %16 = arith.truncf %15 : vector<288x4xf32> to vector<288x4xbf16>
    %c2 = arith.constant 2 : index
    %c0_9 = arith.constant 0 : index
    %c0_10 = arith.constant 0 : index
    %17 = vector.load %arg3[%c2, %c0_9, %c0_10] : memref<9x4x4xbf16, #tpu.memory_space<vmem>>, vector<1x4x4xbf16>
    %18 = vector.shape_cast %17 : vector<1x4x4xbf16> to vector<4x4xbf16>
    %cst_11 = arith.constant dense<0.000000e+00> : vector<288x4xf32>
    %19 = tpu.matmul %16, %18, %cst_11 {dimension_numbers = #tpu.dot_dimension_numbers<[1], [0], [0], [1], [0, 0, 1, 1], [], []>} : vector<288x4xbf16>, vector<4x4xbf16>, vector<288x4xf32> -> vector<288x4xf32>
    %20 = arith.addf %14, %19 : vector<288x4xf32>
    %21 = vector.extract_strided_slice %1 {offsets = [18, 0], sizes = [288, 4], strides = [1, 1]} : vector<342x4xf32> to vector<288x4xf32>
    %22 = arith.truncf %21 : vector<288x4xf32> to vector<288x4xbf16>
    %c3 = arith.constant 3 : index
    %c0_12 = arith.constant 0 : index
    %c0_13 = arith.constant 0 : index
    %23 = vector.load %arg3[%c3, %c0_12, %c0_13] : memref<9x4x4xbf16, #tpu.memory_space<vmem>>, vector<1x4x4xbf16>
    %24 = vector.shape_cast %23 : vector<1x4x4xbf16> to vector<4x4xbf16>
    %cst_14 = arith.constant dense<0.000000e+00> : vector<288x4xf32>
    %25 = tpu.matmul %22, %24, %cst_14 {dimension_numbers = #tpu.dot_dimension_numbers<[1], [0], [0], [1], [0, 0, 1, 1], [], []>} : vector<288x4xbf16>, vector<4x4xbf16>, vector<288x4xf32> -> vector<288x4xf32>
    %26 = arith.addf %20, %25 : vector<288x4xf32>
    %27 = vector.extract_strided_slice %1 {offsets = [19, 0], sizes = [288, 4], strides = [1, 1]} : vector<342x4xf32> to vector<288x4xf32>
    %28 = arith.truncf %27 : vector<288x4xf32> to vector<288x4xbf16>
    %c4 = arith.constant 4 : index
    %c0_15 = arith.constant 0 : index
    %c0_16 = arith.constant 0 : index
    %29 = vector.load %arg3[%c4, %c0_15, %c0_16] : memref<9x4x4xbf16, #tpu.memory_space<vmem>>, vector<1x4x4xbf16>
    %30 = vector.shape_cast %29 : vector<1x4x4xbf16> to vector<4x4xbf16>
    %cst_17 = arith.constant dense<0.000000e+00> : vector<288x4xf32>
    %31 = tpu.matmul %28, %30, %cst_17 {dimension_numbers = #tpu.dot_dimension_numbers<[1], [0], [0], [1], [0, 0, 1, 1], [], []>} : vector<288x4xbf16>, vector<4x4xbf16>, vector<288x4xf32> -> vector<288x4xf32>
    %32 = arith.addf %26, %31 : vector<288x4xf32>
    %33 = vector.extract_strided_slice %1 {offsets = [20, 0], sizes = [288, 4], strides = [1, 1]} : vector<342x4xf32> to vector<288x4xf32>
    %34 = arith.truncf %33 : vector<288x4xf32> to vector<288x4xbf16>
    %c5 = arith.constant 5 : index
    %c0_18 = arith.constant 0 : index
    %c0_19 = arith.constant 0 : index
    %35 = vector.load %arg3[%c5, %c0_18, %c0_19] : memref<9x4x4xbf16, #tpu.memory_space<vmem>>, vector<1x4x4xbf16>
    %36 = vector.shape_cast %35 : vector<1x4x4xbf16> to vector<4x4xbf16>
    %cst_20 = arith.constant dense<0.000000e+00> : vector<288x4xf32>
    %37 = tpu.matmul %34, %36, %cst_20 {dimension_numbers = #tpu.dot_dimension_numbers<[1], [0], [0], [1], [0, 0, 1, 1], [], []>} : vector<288x4xbf16>, vector<4x4xbf16>, vector<288x4xf32> -> vector<288x4xf32>
    %38 = arith.addf %32, %37 : vector<288x4xf32>
    %39 = vector.extract_strided_slice %1 {offsets = [36, 0], sizes = [288, 4], strides = [1, 1]} : vector<342x4xf32> to vector<288x4xf32>
    %40 = arith.truncf %39 : vector<288x4xf32> to vector<288x4xbf16>
    %c6 = arith.constant 6 : index
    %c0_21 = arith.constant 0 : index
    %c0_22 = arith.constant 0 : index
    %41 = vector.load %arg3[%c6, %c0_21, %c0_22] : memref<9x4x4xbf16, #tpu.memory_space<vmem>>, vector<1x4x4xbf16>
    %42 = vector.shape_cast %41 : vector<1x4x4xbf16> to vector<4x4xbf16>
    %cst_23 = arith.constant dense<0.000000e+00> : vector<288x4xf32>
    %43 = tpu.matmul %40, %42, %cst_23 {dimension_numbers = #tpu.dot_dimension_numbers<[1], [0], [0], [1], [0, 0, 1, 1], [], []>} : vector<288x4xbf16>, vector<4x4xbf16>, vector<288x4xf32> -> vector<288x4xf32>
    %44 = arith.addf %38, %43 : vector<288x4xf32>
    %45 = vector.extract_strided_slice %1 {offsets = [37, 0], sizes = [288, 4], strides = [1, 1]} : vector<342x4xf32> to vector<288x4xf32>
    %46 = arith.truncf %45 : vector<288x4xf32> to vector<288x4xbf16>
    %c7 = arith.constant 7 : index
    %c0_24 = arith.constant 0 : index
    %c0_25 = arith.constant 0 : index
    %47 = vector.load %arg3[%c7, %c0_24, %c0_25] : memref<9x4x4xbf16, #tpu.memory_space<vmem>>, vector<1x4x4xbf16>
    %48 = vector.shape_cast %47 : vector<1x4x4xbf16> to vector<4x4xbf16>
    %cst_26 = arith.constant dense<0.000000e+00> : vector<288x4xf32>
    %49 = tpu.matmul %46, %48, %cst_26 {dimension_numbers = #tpu.dot_dimension_numbers<[1], [0], [0], [1], [0, 0, 1, 1], [], []>} : vector<288x4xbf16>, vector<4x4xbf16>, vector<288x4xf32> -> vector<288x4xf32>
    %50 = arith.addf %44, %49 : vector<288x4xf32>
    %51 = vector.extract_strided_slice %1 {offsets = [38, 0], sizes = [288, 4], strides = [1, 1]} : vector<342x4xf32> to vector<288x4xf32>
    %52 = arith.truncf %51 : vector<288x4xf32> to vector<288x4xbf16>
    %c8 = arith.constant 8 : index
    %c0_27 = arith.constant 0 : index
    %c0_28 = arith.constant 0 : index
    %53 = vector.load %arg3[%c8, %c0_27, %c0_28] : memref<9x4x4xbf16, #tpu.memory_space<vmem>>, vector<1x4x4xbf16>
    %54 = vector.shape_cast %53 : vector<1x4x4xbf16> to vector<4x4xbf16>
    %cst_29 = arith.constant dense<0.000000e+00> : vector<288x4xf32>
    %55 = tpu.matmul %52, %54, %cst_29 {dimension_numbers = #tpu.dot_dimension_numbers<[1], [0], [0], [1], [0, 0, 1, 1], [], []>} : vector<288x4xbf16>, vector<4x4xbf16>, vector<288x4xf32> -> vector<288x4xf32>
    %56 = arith.addf %50, %55 : vector<288x4xf32>
    %c0_30 = arith.constant 0 : index
    %c0_31 = arith.constant 0 : index
    %57 = vector.load %arg4[%c0_30, %c0_31] : memref<1x4xf32, #tpu.memory_space<vmem>>, vector<1x4xf32>
    %58 = vector.broadcast %57 : vector<1x4xf32> to vector<288x4xf32>
    %59 = arith.addf %56, %58 : vector<288x4xf32>
    %c0_32 = arith.constant 0 : index
    %60 = memref.load %arg1[%c0_32] : memref<1xf32, #tpu.memory_space<smem>>
    %cst_33 = arith.constant 0.000000e+00 : f32
    %61 = vector.broadcast %cst_33 : f32 to vector<288x4xf32>
    %62 = arith.cmpf ogt, %59, %61 : vector<288x4xf32>
    %63 = vector.broadcast %60 : f32 to vector<288x4xf32>
    %64 = arith.mulf %63, %59 : vector<288x4xf32>
    %65 = arith.select %62, %59, %64 : vector<288x4xi1>, vector<288x4xf32>
    %cst_34 = arith.constant 0.000000e+00 : f32
    %66 = vector.broadcast %cst_34 : f32 to vector<342x4xf32>
    %c0_35 = arith.constant 0 : index
    %c0_36 = arith.constant 0 : index
    %67 = vector.load %arg9[%c0_35, %c0_36] : memref<342x4xf32, #tpu.memory_space<vmem>>, vector<342x4xf32>
    tpu.vector_store %arg9[%c0_35, %c0_36], %66 {strides = array<i32>} : memref<342x4xf32, #tpu.memory_space<vmem>>, vector<342x4xf32>,
    %c0_37 = arith.constant 0 : index
    %c0_38 = arith.constant 0 : index
    %68 = vector.load %arg7[%c0_37, %c0_38] : memref<288x1xf32, #tpu.memory_space<vmem>>, vector<288x1xf32>
    %69 = vector.broadcast %68 : vector<288x1xf32> to vector<288x4xf32>
    %70 = arith.mulf %65, %69 : vector<288x4xf32>
    %c19 = arith.constant 19 : index
    %c0_39 = arith.constant 0 : index
    %71 = vector.load %arg9[%c19, %c0_39] : memref<342x4xf32, #tpu.memory_space<vmem>>, vector<288x4xf32>
    tpu.vector_store %arg9[%c19, %c0_39], %70 {strides = array<i32>} : memref<342x4xf32, #tpu.memory_space<vmem>>, vector<288x4xf32>,
    %c0_40 = arith.constant 0 : index
    %c0_41 = arith.constant 0 : index
    %72 = vector.load %arg9[%c0_40, %c0_41] : memref<342x4xf32, #tpu.memory_space<vmem>>, vector<342x4xf32>
    %cst_42 = arith.constant 0.000000e+00 : f32
    %73 = vector.broadcast %cst_42 : f32 to vector<288x4xf32>
    %74 = vector.extract_strided_slice %72 {offsets = [0, 0], sizes = [288, 4], strides = [1, 1]} : vector<342x4xf32> to vector<288x4xf32>
    %75 = arith.truncf %74 : vector<288x4xf32> to vector<288x4xbf16>
    %c0_43 = arith.constant 0 : index
    %c0_44 = arith.constant 0 : index
    %c0_45 = arith.constant 0 : index
    %76 = vector.load %arg5[%c0_43, %c0_44, %c0_45] : memref<9x4x4xbf16, #tpu.memory_space<vmem>>, vector<1x4x4xbf16>
    %77 = vector.shape_cast %76 : vector<1x4x4xbf16> to vector<4x4xbf16>
    %cst_46 = arith.constant dense<0.000000e+00> : vector<288x4xf32>
    %78 = tpu.matmul %75, %77, %cst_46 {dimension_numbers = #tpu.dot_dimension_numbers<[1], [0], [0], [1], [0, 0, 1, 1], [], []>} : vector<288x4xbf16>, vector<4x4xbf16>, vector<288x4xf32> -> vector<288x4xf32>
    %79 = arith.addf %73, %78 : vector<288x4xf32>
    %80 = vector.extract_strided_slice %72 {offsets = [1, 0], sizes = [288, 4], strides = [1, 1]} : vector<342x4xf32> to vector<288x4xf32>
    %81 = arith.truncf %80 : vector<288x4xf32> to vector<288x4xbf16>
    %c1_47 = arith.constant 1 : index
    %c0_48 = arith.constant 0 : index
    %c0_49 = arith.constant 0 : index
    %82 = vector.load %arg5[%c1_47, %c0_48, %c0_49] : memref<9x4x4xbf16, #tpu.memory_space<vmem>>, vector<1x4x4xbf16>
    %83 = vector.shape_cast %82 : vector<1x4x4xbf16> to vector<4x4xbf16>
    %cst_50 = arith.constant dense<0.000000e+00> : vector<288x4xf32>
    %84 = tpu.matmul %81, %83, %cst_50 {dimension_numbers = #tpu.dot_dimension_numbers<[1], [0], [0], [1], [0, 0, 1, 1], [], []>} : vector<288x4xbf16>, vector<4x4xbf16>, vector<288x4xf32> -> vector<288x4xf32>
    %85 = arith.addf %79, %84 : vector<288x4xf32>
    %86 = vector.extract_strided_slice %72 {offsets = [2, 0], sizes = [288, 4], strides = [1, 1]} : vector<342x4xf32> to vector<288x4xf32>
    %87 = arith.truncf %86 : vector<288x4xf32> to vector<288x4xbf16>
    %c2_51 = arith.constant 2 : index
    %c0_52 = arith.constant 0 : index
    %c0_53 = arith.constant 0 : index
    %88 = vector.load %arg5[%c2_51, %c0_52, %c0_53] : memref<9x4x4xbf16, #tpu.memory_space<vmem>>, vector<1x4x4xbf16>
    %89 = vector.shape_cast %88 : vector<1x4x4xbf16> to vector<4x4xbf16>
    %cst_54 = arith.constant dense<0.000000e+00> : vector<288x4xf32>
    %90 = tpu.matmul %87, %89, %cst_54 {dimension_numbers = #tpu.dot_dimension_numbers<[1], [0], [0], [1], [0, 0, 1, 1], [], []>} : vector<288x4xbf16>, vector<4x4xbf16>, vector<288x4xf32> -> vector<288x4xf32>
    %91 = arith.addf %85, %90 : vector<288x4xf32>
    %92 = vector.extract_strided_slice %72 {offsets = [18, 0], sizes = [288, 4], strides = [1, 1]} : vector<342x4xf32> to vector<288x4xf32>
    %93 = arith.truncf %92 : vector<288x4xf32> to vector<288x4xbf16>
    %c3_55 = arith.constant 3 : index
    %c0_56 = arith.constant 0 : index
    %c0_57 = arith.constant 0 : index
    %94 = vector.load %arg5[%c3_55, %c0_56, %c0_57] : memref<9x4x4xbf16, #tpu.memory_space<vmem>>, vector<1x4x4xbf16>
    %95 = vector.shape_cast %94 : vector<1x4x4xbf16> to vector<4x4xbf16>
    %cst_58 = arith.constant dense<0.000000e+00> : vector<288x4xf32>
    %96 = tpu.matmul %93, %95, %cst_58 {dimension_numbers = #tpu.dot_dimension_numbers<[1], [0], [0], [1], [0, 0, 1, 1], [], []>} : vector<288x4xbf16>, vector<4x4xbf16>, vector<288x4xf32> -> vector<288x4xf32>
    %97 = arith.addf %91, %96 : vector<288x4xf32>
    %98 = vector.extract_strided_slice %72 {offsets = [19, 0], sizes = [288, 4], strides = [1, 1]} : vector<342x4xf32> to vector<288x4xf32>
    %99 = arith.truncf %98 : vector<288x4xf32> to vector<288x4xbf16>
    %c4_59 = arith.constant 4 : index
    %c0_60 = arith.constant 0 : index
    %c0_61 = arith.constant 0 : index
    %100 = vector.load %arg5[%c4_59, %c0_60, %c0_61] : memref<9x4x4xbf16, #tpu.memory_space<vmem>>, vector<1x4x4xbf16>
    %101 = vector.shape_cast %100 : vector<1x4x4xbf16> to vector<4x4xbf16>
    %cst_62 = arith.constant dense<0.000000e+00> : vector<288x4xf32>
    %102 = tpu.matmul %99, %101, %cst_62 {dimension_numbers = #tpu.dot_dimension_numbers<[1], [0], [0], [1], [0, 0, 1, 1], [], []>} : vector<288x4xbf16>, vector<4x4xbf16>, vector<288x4xf32> -> vector<288x4xf32>
    %103 = arith.addf %97, %102 : vector<288x4xf32>
    %104 = vector.extract_strided_slice %72 {offsets = [20, 0], sizes = [288, 4], strides = [1, 1]} : vector<342x4xf32> to vector<288x4xf32>
    %105 = arith.truncf %104 : vector<288x4xf32> to vector<288x4xbf16>
    %c5_63 = arith.constant 5 : index
    %c0_64 = arith.constant 0 : index
    %c0_65 = arith.constant 0 : index
    %106 = vector.load %arg5[%c5_63, %c0_64, %c0_65] : memref<9x4x4xbf16, #tpu.memory_space<vmem>>, vector<1x4x4xbf16>
    %107 = vector.shape_cast %106 : vector<1x4x4xbf16> to vector<4x4xbf16>
    %cst_66 = arith.constant dense<0.000000e+00> : vector<288x4xf32>
    %108 = tpu.matmul %105, %107, %cst_66 {dimension_numbers = #tpu.dot_dimension_numbers<[1], [0], [0], [1], [0, 0, 1, 1], [], []>} : vector<288x4xbf16>, vector<4x4xbf16>, vector<288x4xf32> -> vector<288x4xf32>
    %109 = arith.addf %103, %108 : vector<288x4xf32>
    %110 = vector.extract_strided_slice %72 {offsets = [36, 0], sizes = [288, 4], strides = [1, 1]} : vector<342x4xf32> to vector<288x4xf32>
    %111 = arith.truncf %110 : vector<288x4xf32> to vector<288x4xbf16>
    %c6_67 = arith.constant 6 : index
    %c0_68 = arith.constant 0 : index
    %c0_69 = arith.constant 0 : index
    %112 = vector.load %arg5[%c6_67, %c0_68, %c0_69] : memref<9x4x4xbf16, #tpu.memory_space<vmem>>, vector<1x4x4xbf16>
    %113 = vector.shape_cast %112 : vector<1x4x4xbf16> to vector<4x4xbf16>
    %cst_70 = arith.constant dense<0.000000e+00> : vector<288x4xf32>
    %114 = tpu.matmul %111, %113, %cst_70 {dimension_numbers = #tpu.dot_dimension_numbers<[1], [0], [0], [1], [0, 0, 1, 1], [], []>} : vector<288x4xbf16>, vector<4x4xbf16>, vector<288x4xf32> -> vector<288x4xf32>
    %115 = arith.addf %109, %114 : vector<288x4xf32>
    %116 = vector.extract_strided_slice %72 {offsets = [37, 0], sizes = [288, 4], strides = [1, 1]} : vector<342x4xf32> to vector<288x4xf32>
    %117 = arith.truncf %116 : vector<288x4xf32> to vector<288x4xbf16>
    %c7_71 = arith.constant 7 : index
    %c0_72 = arith.constant 0 : index
    %c0_73 = arith.constant 0 : index
    %118 = vector.load %arg5[%c7_71, %c0_72, %c0_73] : memref<9x4x4xbf16, #tpu.memory_space<vmem>>, vector<1x4x4xbf16>
    %119 = vector.shape_cast %118 : vector<1x4x4xbf16> to vector<4x4xbf16>
    %cst_74 = arith.constant dense<0.000000e+00> : vector<288x4xf32>
    %120 = tpu.matmul %117, %119, %cst_74 {dimension_numbers = #tpu.dot_dimension_numbers<[1], [0], [0], [1], [0, 0, 1, 1], [], []>} : vector<288x4xbf16>, vector<4x4xbf16>, vector<288x4xf32> -> vector<288x4xf32>
    %121 = arith.addf %115, %120 : vector<288x4xf32>
    %122 = vector.extract_strided_slice %72 {offsets = [38, 0], sizes = [288, 4], strides = [1, 1]} : vector<342x4xf32> to vector<288x4xf32>
    %123 = arith.truncf %122 : vector<288x4xf32> to vector<288x4xbf16>
    %c8_75 = arith.constant 8 : index
    %c0_76 = arith.constant 0 : index
    %c0_77 = arith.constant 0 : index
    %124 = vector.load %arg5[%c8_75, %c0_76, %c0_77] : memref<9x4x4xbf16, #tpu.memory_space<vmem>>, vector<1x4x4xbf16>
    %125 = vector.shape_cast %124 : vector<1x4x4xbf16> to vector<4x4xbf16>
    %cst_78 = arith.constant dense<0.000000e+00> : vector<288x4xf32>
    %126 = tpu.matmul %123, %125, %cst_78 {dimension_numbers = #tpu.dot_dimension_numbers<[1], [0], [0], [1], [0, 0, 1, 1], [], []>} : vector<288x4xbf16>, vector<4x4xbf16>, vector<288x4xf32> -> vector<288x4xf32>
    %127 = arith.addf %121, %126 : vector<288x4xf32>
    %c0_79 = arith.constant 0 : index
    %c0_80 = arith.constant 0 : index
    %128 = vector.load %arg6[%c0_79, %c0_80] : memref<1x4xf32, #tpu.memory_space<vmem>>, vector<1x4xf32>
    %129 = vector.broadcast %128 : vector<1x4xf32> to vector<288x4xf32>
    %130 = arith.addf %127, %129 : vector<288x4xf32>
    %131 = vector.extract_strided_slice %1 {offsets = [19, 0], sizes = [288, 4], strides = [1, 1]} : vector<342x4xf32> to vector<288x4xf32>
    %132 = arith.addf %130, %131 : vector<288x4xf32>
    %c0_81 = arith.constant 0 : index
    %c0_82 = arith.constant 0 : index
    %c0_83 = arith.constant 0 : index
    %133 = vector.load %arg8[%c0_81, %c0_82, %c0_83] : memref<1x288x4xf32, #tpu.memory_space<vmem>>, vector<1x288x4xf32>
    %134 = vector.shape_cast %133 : vector<1x288x4xf32> to vector<288x4xf32>
    %135 = vector.shape_cast %132 : vector<288x4xf32> to vector<1x288x4xf32>
    tpu.vector_store %arg8[%c0_81, %c0_82, %c0_83], %135 {strides = array<i32>} : memref<1x288x4xf32, #tpu.memory_space<vmem>>, vector<1x288x4xf32>,
    return
  }
  func.func @transform_0(%arg0: i32) -> i32 {
    %c0_i32 = arith.constant 0 : i32
    %c0_i32_0 = arith.constant 0 : i32
    return %c0_i32 : i32
  }
  func.func @transform_1(%arg0: i32) -> (i32, i32, i32) {
    %c0_i32 = arith.constant 0 : i32
    %c0_i32_0 = arith.constant 0 : i32
    %c0_i32_1 = arith.constant 0 : i32
    return %arg0, %c0_i32, %c0_i32_0 : i32, i32, i32
  }
  func.func @transform_2(%arg0: i32) -> (i32, i32, i32) {
    %c0_i32 = arith.constant 0 : i32
    %c0_i32_0 = arith.constant 0 : i32
    %c0_i32_1 = arith.constant 0 : i32
    %c0_i32_2 = arith.constant 0 : i32
    return %c0_i32, %c0_i32_0, %c0_i32_1 : i32, i32, i32
  }
  func.func @transform_3(%arg0: i32) -> (i32, i32) {
    %c0_i32 = arith.constant 0 : i32
    %c0_i32_0 = arith.constant 0 : i32
    %c0_i32_1 = arith.constant 0 : i32
    return %c0_i32, %c0_i32_0 : i32, i32
  }
  func.func @transform_4(%arg0: i32) -> (i32, i32, i32) {
    %c0_i32 = arith.constant 0 : i32
    %c0_i32_0 = arith.constant 0 : i32
    %c0_i32_1 = arith.constant 0 : i32
    %c0_i32_2 = arith.constant 0 : i32
    return %c0_i32, %c0_i32_0, %c0_i32_1 : i32, i32, i32
  }
  func.func @transform_5(%arg0: i32) -> (i32, i32) {
    %c0_i32 = arith.constant 0 : i32
    %c0_i32_0 = arith.constant 0 : i32
    %c0_i32_1 = arith.constant 0 : i32
    return %c0_i32, %c0_i32_0 : i32, i32
  }
  func.func @transform_6(%arg0: i32) -> (i32, i32) {
    %c0_i32 = arith.constant 0 : i32
    %c0_i32_0 = arith.constant 0 : i32
    %c0_i32_1 = arith.constant 0 : i32
    return %c0_i32, %c0_i32_0 : i32, i32
  }
  func.func @transform_7(%arg0: i32) -> (i32, i32, i32) {
    %c0_i32 = arith.constant 0 : i32
    %c0_i32_0 = arith.constant 0 : i32
    %c0_i32_1 = arith.constant 0 : i32
    return %arg0, %c0_i32, %c0_i32_0 : i32, i32, i32
  }
}

</mosaic_0001>

<llo_original>
// kernel: residual_block_forward.1
$region0: #{residual_block_forward.1}
  #allocation0 [shape = 'u32[]', space=smem, size = 0x4, offset = 0x4, fixed_abs, tag = 'smem constant byte address 0x4 - core index']
  #allocation1 [shape = 'u32[144,128]{1,0:T(1,128)}', space=vmem, size = 0x12000, scoped, tag = 'internal scratch']
  #allocation2 [shape = 'f32[342,4]{1,0:T(8,128)}', space=vmem, size = 0x2b000, scoped, tag = 'scratch operand']
  #allocation3 [shape = 'f32[1]{0:T(128)S(6)}', space=smem, size = 0x200, scoped, tag = 'scoped memory for residual_block_forward.1']
  %s0 = inlined_call_operand.<no memory space> [shape: f32[1], index: 0, kind: input, shape index: {}]
  %s1 = inlined_call_operand.vmem [shape: f32[2,342,4], index: 1, kind: input, shape index: {}]
  %s2 = inlined_call_operand.vmem [shape: bf16[9,4,4], index: 2, kind: input, shape index: {}]
  %s3 = inlined_call_operand.vmem [shape: f32[1,4], index: 3, kind: input, shape index: {}]
  %s4 = inlined_call_operand.vmem [shape: bf16[9,4,4], index: 4, kind: input, shape index: {}]
  %s5 = inlined_call_operand.vmem [shape: f32[1,4], index: 5, kind: input, shape index: {}]
  %s6 = inlined_call_operand.vmem [shape: f32[288,1], index: 6, kind: input, shape index: {}]
  %s7 = inlined_call_operand.vmem [shape: f32[2,288,4], index: 7, kind: output, shape index: {}]
  %s8 = sld [smem:[#allocation0]]
  $region61: #{residual_block_forward.1} parent=0
    _
  %s10 = ssub.s32 1, %s8
  %s11 = scalar_select 0, %s10, %s8
  %12 = sst [smem:[#allocation3]] %s0
  loop: start=0, step=1, limit=4
  $region2: #{residual_block_forward.1} parent=0 // loop_pre_header
    _
  $region3: #{residual_block_forward.1} parent=0 // loop_header
    %s14 = sphi 0, %s18
    %p15 = scmp.ge.s32.totalorder %s14, 4
    %s22 = sphi 0, %s22
    %s24 = sphi 0, %s22
    %s25 = sphi 0, %s24
    %s39 = sphi 0, %s25
    %s45 = sphi 0, %s47
    %s48 = sphi 0, %s45
    %s49 = sphi 0, %s48
    %s65 = sphi 0, %s49
    %s69 = sphi 0, %s69
    %s71 = sphi 0, %s69
    %s72 = sphi 0, %s71
    %s86 = sphi 0, %s72
    %s90 = sphi 0, %s90
    %s92 = sphi 0, %s90
    %s93 = sphi 0, %s92
    %s107 = sphi 0, %s93
    %s111 = sphi 0, %s111
    %s113 = sphi 0, %s111
    %s114 = sphi 0, %s113
    %s128 = sphi 0, %s114
    %s132 = sphi 0, %s132
    %s134 = sphi 0, %s132
    %s135 = sphi 0, %s134
    %s149 = sphi 0, %s135
    %s153 = sphi 0, %s153
    %s155 = sphi 0, %s153
    %s156 = sphi 0, %s155
    %s170 = sphi 0, %s156
    %s176 = sphi 0, %s178
    %s179 = sphi 0, %s176
    %s180 = sphi 0, %s179
    %s196 = sphi 0, %s180
  $region4: #{residual_block_forward.1} parent=0 // loop_header_branch
    %17 = sbr.rel (%p15) target = $region8
  $region5: #{residual_block_forward.1} parent=0 // loop_body
    %s19 = ssub.s32 %s14, 1
    %s20 = ssub.s32 %s14, 2
    %s21 = sadd.s32 %s14, 1
    %s23 = sadd.s32 %s22, 1
    %p26 = scmp.eq.s32.totalorder %s14, 1
    %p27 = scmp.ne.s32.totalorder %s22, %s24
    %p28 = scmp.eq.s32.totalorder %s14, 0
    %p29 = por %p27, %p28
    %p30 = scmp.ne.s32.totalorder %s22, %s24
    %p31 = scmp.eq.s32.totalorder %s19, 1
    %p32 = por %p30, %p31
    %p33 = scmp.ne.s32.totalorder %s24, %s25
    %p34 = scmp.eq.s32.totalorder %s19, 0
    %p35 = por %p33, %p34
    %p36 = scmp.ne.s32.totalorder %s24, %s25
    %p37 = scmp.eq.s32.totalorder %s20, 1
    %p38 = por %p36, %p37
    %p40 = scmp.ne.s32.totalorder %s25, %s39
    %p41 = scmp.eq.s32.totalorder %s20, 0
    %p42 = por %p40, %p41
    %s43 = ssub.s32 %s14, %s21
    %p44 = scmp.eq.s32.totalorder %s43, 0
    %s46 = sadd.s32 %s45, 1
    %s47 = scalar_select %p44, %s45, %s46
    %p50 = pneg %p44
    %p51 = scmp.eq.s32.totalorder %s14, 1
    %p52 = por %p50, %p51
    %p53 = scmp.ne.s32.totalorder %s45, %s48
    %p54 = scmp.eq.s32.totalorder %s14, 0
    %p55 = por %p53, %p54
    %p56 = scmp.ne.s32.totalorder %s45, %s48
    %p57 = scmp.eq.s32.totalorder %s19, 1
    %p58 = por %p56, %p57
    %p59 = scmp.ne.s32.totalorder %s48, %s49
    %p60 = scmp.eq.s32.totalorder %s19, 0
    %p61 = por %p59, %p60
    %p62 = scmp.ne.s32.totalorder %s48, %s49
    %p63 = scmp.eq.s32.totalorder %s20, 1
    %p64 = por %p62, %p63
    %p66 = scmp.ne.s32.totalorder %s49, %s65
    %p67 = scmp.eq.s32.totalorder %s20, 0
    %p68 = por %p66, %p67
    %s70 = sadd.s32 %s69, 1
    %p73 = scmp.eq.s32.totalorder %s14, 1
    %p74 = scmp.ne.s32.totalorder %s69, %s71
    %p75 = scmp.eq.s32.totalorder %s14, 0
    %p76 = por %p74, %p75
    %p77 = scmp.ne.s32.totalorder %s69, %s71
    %p78 = scmp.eq.s32.totalorder %s19, 1
    %p79 = por %p77, %p78
    %p80 = scmp.ne.s32.totalorder %s71, %s72
    %p81 = scmp.eq.s32.totalorder %s19, 0
    %p82 = por %p80, %p81
    %p83 = scmp.ne.s32.totalorder %s71, %s72
    %p84 = scmp.eq.s32.totalorder %s20, 1
    %p85 = por %p83, %p84
    %p87 = scmp.ne.s32.totalorder %s72, %s86
    %p88 = scmp.eq.s32.totalorder %s20, 0
    %p89 = por %p87, %p88
    %s91 = sadd.s32 %s90, 1
    %p94 = scmp.eq.s32.totalorder %s14, 1
    %p95 = scmp.ne.s32.totalorder %s90, %s92
    %p96 = scmp.eq.s32.totalorder %s14, 0
    %p97 = por %p95, %p96
    %p98 = scmp.ne.s32.totalorder %s90, %s92
    %p99 = scmp.eq.s32.totalorder %s19, 1
    %p100 = por %p98, %p99
    %p101 = scmp.ne.s32.totalorder %s92, %s93
    %p102 = scmp.eq.s32.totalorder %s19, 0
    %p103 = por %p101, %p102
    %p104 = scmp.ne.s32.totalorder %s92, %s93
    %p105 = scmp.eq.s32.totalorder %s20, 1
    %p106 = por %p104, %p105
    %p108 = scmp.ne.s32.totalorder %s93, %s107
    %p109 = scmp.eq.s32.totalorder %s20, 0
    %p110 = por %p108, %p109
    %s112 = sadd.s32 %s111, 1
    %p115 = scmp.eq.s32.totalorder %s14, 1
    %p116 = scmp.ne.s32.totalorder %s111, %s113
    %p117 = scmp.eq.s32.totalorder %s14, 0
    %p118 = por %p116, %p117
    %p119 = scmp.ne.s32.totalorder %s111, %s113
    %p120 = scmp.eq.s32.totalorder %s19, 1
    %p121 = por %p119, %p120
    %p122 = scmp.ne.s32.totalorder %s113, %s114
    %p123 = scmp.eq.s32.totalorder %s19, 0
    %p124 = por %p122, %p123
    %p125 = scmp.ne.s32.totalorder %s113, %s114
    %p126 = scmp.eq.s32.totalorder %s20, 1
    %p127 = por %p125, %p126
    %p129 = scmp.ne.s32.totalorder %s114, %s128
    %p130 = scmp.eq.s32.totalorder %s20, 0
    %p131 = por %p129, %p130
    %s133 = sadd.s32 %s132, 1
    %p136 = scmp.eq.s32.totalorder %s14, 1
    %p137 = scmp.ne.s32.totalorder %s132, %s134
    %p138 = scmp.eq.s32.totalorder %s14, 0
    %p139 = por %p137, %p138
    %p140 = scmp.ne.s32.totalorder %s132, %s134
    %p141 = scmp.eq.s32.totalorder %s19, 1
    %p142 = por %p140, %p141
    %p143 = scmp.ne.s32.totalorder %s134, %s135
    %p144 = scmp.eq.s32.totalorder %s19, 0
    %p145 = por %p143, %p144
    %p146 = scmp.ne.s32.totalorder %s134, %s135
    %p147 = scmp.eq.s32.totalorder %s20, 1
    %p148 = por %p146, %p147
    %p150 = scmp.ne.s32.totalorder %s135, %s149
    %p151 = scmp.eq.s32.totalorder %s20, 0
    %p152 = por %p150, %p151
    %s154 = sadd.s32 %s153, 1
    %p157 = scmp.eq.s32.totalorder %s14, 1
    %p158 = scmp.ne.s32.totalorder %s153, %s155
    %p159 = scmp.eq.s32.totalorder %s14, 0
    %p160 = por %p158, %p159
    %p161 = scmp.ne.s32.totalorder %s153, %s155
    %p162 = scmp.eq.s32.totalorder %s19, 1
    %p163 = por %p161, %p162
    %p164 = scmp.ne.s32.totalorder %s155, %s156
    %p165 = scmp.eq.s32.totalorder %s19, 0
    %p166 = por %p164, %p165
    %p167 = scmp.ne.s32.totalorder %s155, %s156
    %p168 = scmp.eq.s32.totalorder %s20, 1
    %p169 = por %p167, %p168
    %p171 = scmp.ne.s32.totalorder %s156, %s170
    %p172 = scmp.eq.s32.totalorder %s20, 0
    %p173 = por %p171, %p172
    %s174 = ssub.s32 %s14, %s21
    %p175 = scmp.eq.s32.totalorder %s174, 0
    %s177 = sadd.s32 %s176, 1
    %s178 = scalar_select %p175, %s176, %s177
    %p181 = pneg %p175
    %p182 = scmp.eq.s32.totalorder %s14, 1
    %p183 = por %p181, %p182
    %p184 = scmp.ne.s32.totalorder %s176, %s179
    %p185 = scmp.eq.s32.totalorder %s14, 0
    %p186 = por %p184, %p185
    %p187 = scmp.ne.s32.totalorder %s176, %s179
    %p188 = scmp.eq.s32.totalorder %s19, 1
    %p189 = por %p187, %p188
    %p190 = scmp.ne.s32.totalorder %s179, %s180
    %p191 = scmp.eq.s32.totalorder %s19, 0
    %p192 = por %p190, %p191
    %p193 = scmp.ne.s32.totalorder %s179, %s180
    %p194 = scmp.eq.s32.totalorder %s20, 1
    %p195 = por %p193, %p194
    %p197 = scmp.ne.s32.totalorder %s180, %s196
    %p198 = scmp.eq.s32.totalorder %s20, 0
    %p199 = por %p197, %p198
    %p200 = scmp.le.s32.totalorder 1, %s14
    %p201 = scmp.lt.s32.totalorder %s14, 3
    %p202 = pnand %p200, %p201
    %p203 = pneg %p202
    // Predicated region
    $region9: #{residual_block_forward.1} parent=5 // pred_check
      _
    $region10: #{residual_block_forward.1} parent=5 // pred_check_branch
      %205 = sbr.rel (%p202) target = $region12
    $region11: #{residual_block_forward.1} parent=5 // pred_region
      %s206 = ssub.s32 %s14, 1
      // Predicated region
      $region13: #{residual_block_forward.1} parent=11 // pred_check
        %p207 = pneg %p35
      $region14: #{residual_block_forward.1} parent=11 // pred_check_branch
        %209 = sbr.rel (%p207) target = $region16
      $region15: #{residual_block_forward.1} parent=11 // pred_region
        _
      $region16: #{residual_block_forward.1} parent=11 // pred_fallthru
        _
      // Predicated region
      $region17: #{residual_block_forward.1} parent=11 // pred_check
        %p210 = pneg %p82
      $region18: #{residual_block_forward.1} parent=11 // pred_check_branch
        %212 = sbr.rel (%p210) target = $region20
      $region19: #{residual_block_forward.1} parent=11 // pred_region
        _
      $region20: #{residual_block_forward.1} parent=11 // pred_fallthru
        _
      // Predicated region
      $region21: #{residual_block_forward.1} parent=11 // pred_check
        %p213 = pneg %p103
      $region22: #{residual_block_forward.1} parent=11 // pred_check_branch
        %215 = sbr.rel (%p213) target = $region24
      $region23: #{residual_block_forward.1} parent=11 // pred_region
        _
      $region24: #{residual_block_forward.1} parent=11 // pred_fallthru
        _
      // Predicated region
      $region25: #{residual_block_forward.1} parent=11 // pred_check
        %p216 = pneg %p124
      $region26: #{residual_block_forward.1} parent=11 // pred_check_branch
        %218 = sbr.rel (%p216) target = $region28
      $region27: #{residual_block_forward.1} parent=11 // pred_region
        _
      $region28: #{residual_block_forward.1} parent=11 // pred_fallthru
        _
      // Predicated region
      $region29: #{residual_block_forward.1} parent=11 // pred_check
        %p219 = pneg %p145
      $region30: #{residual_block_forward.1} parent=11 // pred_check_branch
        %221 = sbr.rel (%p219) target = $region32
      $region31: #{residual_block_forward.1} parent=11 // pred_region
        _
      $region32: #{residual_block_forward.1} parent=11 // pred_fallthru
        _
      // Predicated region
      $region33: #{residual_block_forward.1} parent=11 // pred_check
        %p222 = pneg %p166
      $region34: #{residual_block_forward.1} parent=11 // pred_check_branch
        %224 = sbr.rel (%p222) target = $region36
      $region35: #{residual_block_forward.1} parent=11 // pred_region
        _
      $region36: #{residual_block_forward.1} parent=11 // pred_fallthru
        _
    $region12: #{residual_block_forward.1} parent=5 // pred_fallthru
      _
    %p225 = scmp.lt.s32.totalorder %s14, 2
    // Predicated region
    $region37: #{residual_block_forward.1} parent=5 // pred_check
      %p226 = pneg %p225
    $region38: #{residual_block_forward.1} parent=5 // pred_check_branch
      %228 = sbr.rel (%p226) target = $region40
    $region39: #{residual_block_forward.1} parent=5 // pred_region
      // Predicated region
      $region41: #{residual_block_forward.1} parent=39 // pred_check
        %p229 = pneg %p55
      $region42: #{residual_block_forward.1} parent=39 // pred_check_branch
        %231 = sbr.rel (%p229) target = $region44
      $region43: #{residual_block_forward.1} parent=39 // pred_region
        %p232 = scmp.lt.s32.totalorder %s14, 1
        %s233 = scalar_select %p232, %s14, 1
        %s234 = smul.addr %s233, 43
        %s235 = smul.addr %s234, 8
        %s236 = scalar_lea.vmem %s1, %s235
      $region44: #{residual_block_forward.1} parent=39 // pred_fallthru
        _
    $region40: #{residual_block_forward.1} parent=5 // pred_fallthru
      _
    %p237 = scmp.le.s32.totalorder 1, %s14
    %p238 = scmp.lt.s32.totalorder %s14, 3
    %p239 = pnand %p237, %p238
    %p240 = pneg %p239
    // Predicated region
    $region45: #{residual_block_forward.1} parent=5 // pred_check
      _
    $region46: #{residual_block_forward.1} parent=5 // pred_check_branch
      %242 = sbr.rel (%p239) target = $region48
    $region47: #{residual_block_forward.1} parent=5 // pred_region
      %s243 = ssub.s32 %s14, 1
      %p244 = pneg %p35
      %p245 = pneg %p32
      %p246 = scmp.lt.s32.totalorder %s19, 1
      %s247 = scalar_select %p246, %s19, 1
      %s248 = smul.addr %s247, 43
      %s249 = smul.addr %s248, 8
      %s250 = scalar_lea.vmem %s1, %s249
      %p251 = pneg %p61
      %p252 = pneg %p58
      %p253 = pneg %p82
      %p254 = pneg %p79
      %p255 = pneg %p103
      %p256 = pneg %p100
      %p257 = pneg %p124
      %p258 = pneg %p121
      %p259 = pneg %p145
      %p260 = pneg %p142
      %p261 = pneg %p166
      %p262 = pneg %p163
      %p263 = pneg %p192
      %p264 = pneg %p189
      %p265 = scmp.lt.s32.totalorder %s19, 1
      %s266 = scalar_select %p265, %s19, 1
      %s267 = smul.addr %s266, 36
      %s268 = smul.addr %s267, 8
      %s269 = scalar_lea.vmem %s7, %s268
      %p270 = scmp.lt.s32.totalorder %s19, 1
      %s271 = scalar_select %p270, %s19, 1
      %s272 = smul.addr %s271, 43
      %s273 = smul.addr %s272, 8
      %s274 = scalar_lea.vmem %s1, %s273
      %p275 = scmp.lt.s32.totalorder %s19, 1
      %s276 = scalar_select %p275, %s19, 1
      %s277 = smul.addr %s276, 36
      %s278 = smul.addr %s277, 8
      %s279 = scalar_lea.vmem %s7, %s278
      %v281 = vld [vmem:[%s274] sm:$0xff]
      %v282 = vld [vmem:[%s274 + $0x8] sm:$0xff]
      %v283 = vld [vmem:[%s274 + $0x10] sm:$0xff]
      %v284 = vld [vmem:[%s274 + $0x18] sm:$0xff]
      %v285 = vld [vmem:[%s274 + $0x20] sm:$0xff]
      %v286 = vld [vmem:[%s274 + $0x28] sm:$0xff]
      %v287 = vld [vmem:[%s274 + $0x30] sm:$0xff]
      %v288 = vld [vmem:[%s274 + $0x38] sm:$0xff]
      %v289 = vld [vmem:[%s274 + $0x40] sm:$0xff]
      %v290 = vld [vmem:[%s274 + $0x48] sm:$0xff]
      %v291 = vld [vmem:[%s274 + $0x50] sm:$0xff]
      %v292 = vld [vmem:[%s274 + $0x58] sm:$0xff]
      %v293 = vld [vmem:[%s274 + $0x60] sm:$0xff]
      %v294 = vld [vmem:[%s274 + $0x68] sm:$0xff]
      %v295 = vld [vmem:[%s274 + $0x70] sm:$0xff]
      %v296 = vld [vmem:[%s274 + $0x78] sm:$0xff]
      %v297 = vld [vmem:[%s274 + $0x80] sm:$0xff]
      %v298 = vld [vmem:[%s274 + $0x88] sm:$0xff]
      %v299 = vld [vmem:[%s274 + $0x90] sm:$0xff]
      %v300 = vld [vmem:[%s274 + $0x98] sm:$0xff]
      %v301 = vld [vmem:[%s274 + $0xa0] sm:$0xff]
      %v302 = vld [vmem:[%s274 + $0xa8] sm:$0xff]
      %v303 = vld [vmem:[%s274 + $0xb0] sm:$0xff]
      %v304 = vld [vmem:[%s274 + $0xb8] sm:$0xff]
      %v305 = vld [vmem:[%s274 + $0xc0] sm:$0xff]
      %v306 = vld [vmem:[%s274 + $0xc8] sm:$0xff]
      %v307 = vld [vmem:[%s274 + $0xd0] sm:$0xff]
      %v308 = vld [vmem:[%s274 + $0xd8] sm:$0xff]
      %v309 = vld [vmem:[%s274 + $0xe0] sm:$0xff]
      %v310 = vld [vmem:[%s274 + $0xe8] sm:$0xff]
      %v311 = vld [vmem:[%s274 + $0xf0] sm:$0xff]
      %v312 = vld [vmem:[%s274 + $0xf8] sm:$0xff]
      %v313 = vld [vmem:[%s274 + $0x100] sm:$0xff]
      %v314 = vld [vmem:[%s274 + $0x108] sm:$0xff]
      %v315 = vld [vmem:[%s274 + $0x110] sm:$0xff]
      %v316 = vld [vmem:[%s274 + $0x118] sm:$0xff]
      %v317 = vld [vmem:[%s274 + $0x120] sm:$0xff]
      %v318 = vld [vmem:[%s274 + $0x128] sm:$0xff]
      %v319 = vld [vmem:[%s274 + $0x130] sm:$0xff]
      %v320 = vld [vmem:[%s274 + $0x138] sm:$0xff]
      %v321 = vld [vmem:[%s274 + $0x140] sm:$0xff]
      %v322 = vpack.c.bf16 %v282, %v281
      %v323 = vpack.c.bf16 %v284, %v283
      %v324 = vpack.c.bf16 %v286, %v285
      %v325 = vpack.c.bf16 %v288, %v287
      %v326 = vpack.c.bf16 %v290, %v289
      %v327 = vpack.c.bf16 %v292, %v291
      %v328 = vpack.c.bf16 %v294, %v293
      %v329 = vpack.c.bf16 %v296, %v295
      %v330 = vpack.c.bf16 %v298, %v297
      %v331 = vpack.c.bf16 %v300, %v299
      %v332 = vpack.c.bf16 %v302, %v301
      %v333 = vpack.c.bf16 %v304, %v303
      %v334 = vpack.c.bf16 %v306, %v305
      %v335 = vpack.c.bf16 %v308, %v307
      %v336 = vpack.c.bf16 %v310, %v309
      %v337 = vpack.c.bf16 %v312, %v311
      %v338 = vpack.c.bf16 %v314, %v313
      %v339 = vpack.c.bf16 %v316, %v315
      %v340 = vld [vmem:[%s2] sm:$0x3]
      %v341 = vpack.c.bf16 %v317, %v317
      %s342 = scalar_lea.vmem %s2, 2
      %v343 = vld [vmem:[%s342] sm:$0x3]
      %vm344 = vsmask.f32 7424
      %v346 = vshrl.u32 %v322, 16
      %v348 = vshll.u32 %v322, 16
      %v350 = vrot.slane %v348, 1
      %v351 = vor.u32 %v346, %v350
      %v353 = vshll.u32 %v323, 16
      %v355 = vrot.slane %v353, 1
      %v356 = vsel %vm344, %v351, %v355
      %v357 = vshrl.u32 %v323, 16
      %v359 = vor.u32 %v357, %v355
      %v361 = vshll.u32 %v324, 16
      %v363 = vrot.slane %v361, 1
      %v364 = vsel %vm344, %v359, %v363
      %v365 = vshrl.u32 %v324, 16
      %v367 = vor.u32 %v365, %v363
      %v369 = vshll.u32 %v325, 16
      %v371 = vrot.slane %v369, 1
      %v372 = vsel %vm344, %v367, %v371
      %v373 = vshrl.u32 %v325, 16
      %v375 = vor.u32 %v373, %v371
      %v377 = vshll.u32 %v326, 16
      %v379 = vrot.slane %v377, 1
      %v380 = vsel %vm344, %v375, %v379
      %v381 = vshrl.u32 %v326, 16
      %v383 = vor.u32 %v381, %v379
      %v385 = vshll.u32 %v327, 16
      %v387 = vrot.slane %v385, 1
      %v388 = vsel %vm344, %v383, %v387
      %v389 = vshrl.u32 %v327, 16
      %v391 = vor.u32 %v389, %v387
      %v393 = vshll.u32 %v328, 16
      %v395 = vrot.slane %v393, 1
      %v396 = vsel %vm344, %v391, %v395
      %v397 = vshrl.u32 %v328, 16
      %v399 = vor.u32 %v397, %v395
      %v401 = vshll.u32 %v329, 16
      %v403 = vrot.slane %v401, 1
      %v404 = vsel %vm344, %v399, %v403
      %v405 = vshrl.u32 %v329, 16
      %v407 = vor.u32 %v405, %v403
      %v409 = vshll.u32 %v330, 16
      %v411 = vrot.slane %v409, 1
      %v412 = vsel %vm344, %v407, %v411
      %v413 = vshrl.u32 %v330, 16
      %v415 = vor.u32 %v413, %v411
      %v417 = vshll.u32 %v331, 16
      %v419 = vrot.slane %v417, 1
      %v420 = vsel %vm344, %v415, %v419
      %v421 = vshrl.u32 %v331, 16
      %v423 = vor.u32 %v421, %v419
      %v425 = vshll.u32 %v332, 16
      %v427 = vrot.slane %v425, 1
      %v428 = vsel %vm344, %v423, %v427
      %v429 = vshrl.u32 %v332, 16
      %v431 = vor.u32 %v429, %v427
      %v433 = vshll.u32 %v333, 16
      %v435 = vrot.slane %v433, 1
      %v436 = vsel %vm344, %v431, %v435
      %v437 = vshrl.u32 %v333, 16
      %v439 = vor.u32 %v437, %v435
      %v441 = vshll.u32 %v334, 16
      %v443 = vrot.slane %v441, 1
      %v444 = vsel %vm344, %v439, %v443
      %v445 = vshrl.u32 %v334, 16
      %v447 = vor.u32 %v445, %v443
      %v449 = vshll.u32 %v335, 16
      %v451 = vrot.slane %v449, 1
      %v452 = vsel %vm344, %v447, %v451
      %v453 = vshrl.u32 %v335, 16
      %v455 = vor.u32 %v453, %v451
      %v457 = vshll.u32 %v336, 16
      %v459 = vrot.slane %v457, 1
      %v460 = vsel %vm344, %v455, %v459
      %v461 = vshrl.u32 %v336, 16
      %v463 = vor.u32 %v461, %v459
      %v465 = vshll.u32 %v337, 16
      %v467 = vrot.slane %v465, 1
      %v468 = vsel %vm344, %v463, %v467
      %v469 = vshrl.u32 %v337, 16
      %v471 = vor.u32 %v469, %v467
      %v473 = vshll.u32 %v338, 16
      %v475 = vrot.slane %v473, 1
      %v476 = vsel %vm344, %v471, %v475
      %v477 = vshrl.u32 %v338, 16
      %v479 = vor.u32 %v477, %v475
      %v481 = vshll.u32 %v339, 16
      %v483 = vrot.slane %v481, 1
      %v484 = vsel %vm344, %v479, %v483
      %v485 = vshrl.u32 %v339, 16
      %v487 = vor.u32 %v485, %v483
      %v489 = vshll.u32 %v341, 16
      %v491 = vrot.slane %v489, 1
      %v492 = vsel %vm344, %v487, %v491
      %vm493 = vcmask 31744
      %v495 = vsel %vm493, %v356, 0
      %v498 = vsel %vm493, %v364, 0
      %v501 = vsel %vm493, %v372, 0
      %v504 = vsel %vm493, %v380, 0
      %v507 = vsel %vm493, %v388, 0
      %v510 = vsel %vm493, %v396, 0
      %v513 = vsel %vm493, %v404, 0
      %v516 = vsel %vm493, %v412, 0
      %v519 = vsel %vm493, %v420, 0
      %v522 = vsel %vm493, %v428, 0
      %v525 = vsel %vm493, %v436, 0
      %v528 = vsel %vm493, %v444, 0
      %v531 = vsel %vm493, %v452, 0
      %v534 = vsel %vm493, %v460, 0
      %v537 = vsel %vm493, %v468, 0
      %v540 = vsel %vm493, %v476, 0
      %v543 = vsel %vm493, %v484, 0
      %v546 = vsel %vm493, %v492, 0
      %vm548 = vcmask 1041408
      %v550 = vsel %vm548, %v343, 0
      %552 = vmatprep.subr.bf16.mxu0 0
      %553 = vmatpush1.bf16.msra.mxu0 %v550
      %554 = vmatprep.subr.bf16.mxu0 0
      %555 = vmatpush1.bf16.msra.mxu0 0
      %556 = vmatprep.subr.bf16.mxu0 0
      %557 = vmatpush1.bf16.msra.mxu0 0
      %558 = vmatprep.subr.bf16.mxu0 0
      %559 = vmatpush1.bf16.msra.mxu0 0
      %560 = vmatprep.subr.bf16.mxu0 0
      %561 = vmatpush1.bf16.msra.mxu0 0
      %562 = vmatprep.subr.bf16.mxu0 0
      %563 = vmatpush1.bf16.msra.mxu0 0
      %564 = vmatprep.subr.bf16.mxu0 0
      %565 = vmatpush1.bf16.msra.mxu0 0
      %566 = vmatprep.subr.bf16.mxu0 0
      %567 = vmatpush1.bf16.msra.mxu0 0
      %568 = vmatprep.subr.bf16.mxu0 0
      %569 = vmatpush1.bf16.msra.mxu0 0
      %570 = vmatprep.subr.bf16.mxu0 0
      %571 = vmatpush1.bf16.msra.mxu0 0
      %572 = vmatprep.subr.bf16.mxu0 0
      %573 = vmatpush1.bf16.msra.mxu0 0
      %574 = vmatprep.subr.bf16.mxu0 0
      %575 = vmatpush1.bf16.msra.mxu0 0
      %576 = vmatprep.subr.bf16.mxu0 0
      %577 = vmatpush1.bf16.msra.mxu0 0
      %578 = vmatprep.subr.bf16.mxu0 0
      %579 = vmatpush1.bf16.msra.mxu0 0
      %580 = vmatprep.subr.bf16.mxu0 0
      %581 = vmatpush1.bf16.msra.mxu0 0
      %582 = vmatprep.subr.bf16.mxu0 0
      %583 = vmatpush1.bf16.msra.mxu0 0
      %584 = vmatprep.mubr.bf16.mxu0 0
      %585 = vmatmul.mubr.bf16.gmra.mrb[0].mxu0 %v495
      %v586 = vpop.f32.mrb[0].mxu0
      %v587 = vadd.f32 0.0, %v586
      %v588 = vpop.f32.mrb[0].mxu0
      %v589 = vpop.f32.mrb[0].mxu0
      %v590 = vadd.f32 0.0, %v589
      %v591 = vpop.f32.mrb[0].mxu0
      %592 = vmatprep.mubr.bf16.mxu0 0
      %593 = vmatmul.mubr.bf16.gmra.mrb[0].mxu0 %v498
      %v594 = vpop.f32.mrb[0].mxu0
      %v595 = vadd.f32 0.0, %v594
      %v596 = vpop.f32.mrb[0].mxu0
      %v597 = vpop.f32.mrb[0].mxu0
      %v598 = vadd.f32 0.0, %v597
      %v599 = vpop.f32.mrb[0].mxu0
      %600 = vmatprep.mubr.bf16.mxu0 0
      %601 = vmatmul.mubr.bf16.gmra.mrb[0].mxu0 %v501
      %v602 = vpop.f32.mrb[0].mxu0
      %v603 = vadd.f32 0.0, %v602
      %v604 = vpop.f32.mrb[0].mxu0
      %v605 = vpop.f32.mrb[0].mxu0
      %v606 = vadd.f32 0.0, %v605
      %v607 = vpop.f32.mrb[0].mxu0
      %608 = vmatprep.mubr.bf16.mxu0 0
      %609 = vmatmul.mubr.bf16.gmra.mrb[0].mxu0 %v504
      %v610 = vpop.f32.mrb[0].mxu0
      %v611 = vadd.f32 0.0, %v610
      %v612 = vpop.f32.mrb[0].mxu0
      %v613 = vpop.f32.mrb[0].mxu0
      %v614 = vadd.f32 0.0, %v613
      %v615 = vpop.f32.mrb[0].mxu0
      %616 = vmatprep.mubr.bf16.mxu0 0
      %617 = vmatmul.mubr.bf16.gmra.mrb[0].mxu0 %v507
      %v618 = vpop.f32.mrb[0].mxu0
      %v619 = vadd.f32 0.0, %v618
      %v620 = vpop.f32.mrb[0].mxu0
      %v621 = vpop.f32.mrb[0].mxu0
      %v622 = vadd.f32 0.0, %v621
      %v623 = vpop.f32.mrb[0].mxu0
      %624 = vmatprep.mubr.bf16.mxu0 0
      %625 = vmatmul.mubr.bf16.gmra.mrb[0].mxu0 %v510
      %v626 = vpop.f32.mrb[0].mxu0
      %v627 = vadd.f32 0.0, %v626
      %v628 = vpop.f32.mrb[0].mxu0
      %v629 = vpop.f32.mrb[0].mxu0
      %v630 = vadd.f32 0.0, %v629
      %v631 = vpop.f32.mrb[0].mxu0
      %632 = vmatprep.mubr.bf16.mxu0 0
      %633 = vmatmul.mubr.bf16.gmra.mrb[0].mxu0 %v513
      %v634 = vpop.f32.mrb[0].mxu0
      %v635 = vadd.f32 0.0, %v634
      %v636 = vpop.f32.mrb[0].mxu0
      %v637 = vpop.f32.mrb[0].mxu0
      %v638 = vadd.f32 0.0, %v637
      %v639 = vpop.f32.mrb[0].mxu0
      %640 = vmatprep.mubr.bf16.mxu0 0
      %641 = vmatmul.mubr.bf16.gmra.mrb[0].mxu0 %v516
      %v642 = vpop.f32.mrb[0].mxu0
      %v643 = vadd.f32 0.0, %v642
      %v644 = vpop.f32.mrb[0].mxu0
      %v645 = vpop.f32.mrb[0].mxu0
      %v646 = vadd.f32 0.0, %v645
      %v647 = vpop.f32.mrb[0].mxu0
      %648 = vmatprep.mubr.bf16.mxu0 0
      %649 = vmatmul.mubr.bf16.gmra.mrb[0].mxu0 %v519
      %v650 = vpop.f32.mrb[0].mxu0
      %v651 = vadd.f32 0.0, %v650
      %v652 = vpop.f32.mrb[0].mxu0
      %v653 = vpop.f32.mrb[0].mxu0
      %v654 = vadd.f32 0.0, %v653
      %v655 = vpop.f32.mrb[0].mxu0
      %656 = vmatprep.mubr.bf16.mxu0 0
      %657 = vmatmul.mubr.bf16.gmra.mrb[0].mxu0 %v522
      %v658 = vpop.f32.mrb[0].mxu0
      %v659 = vadd.f32 0.0, %v658
      %v660 = vpop.f32.mrb[0].mxu0
      %v661 = vpop.f32.mrb[0].mxu0
      %v662 = vadd.f32 0.0, %v661
      %v663 = vpop.f32.mrb[0].mxu0
      %664 = vmatprep.mubr.bf16.mxu0 0
      %665 = vmatmul.mubr.bf16.gmra.mrb[0].mxu0 %v525
      %v666 = vpop.f32.mrb[0].mxu0
      %v667 = vadd.f32 0.0, %v666
      %v668 = vpop.f32.mrb[0].mxu0
      %v669 = vpop.f32.mrb[0].mxu0
      %v670 = vadd.f32 0.0, %v669
      %v671 = vpop.f32.mrb[0].mxu0
      %672 = vmatprep.mubr.bf16.mxu0 0
      %673 = vmatmul.mubr.bf16.gmra.mrb[0].mxu0 %v528
      %v674 = vpop.f32.mrb[0].mxu0
      %v675 = vadd.f32 0.0, %v674
      %v676 = vpop.f32.mrb[0].mxu0
      %v677 = vpop.f32.mrb[0].mxu0
      %v678 = vadd.f32 0.0, %v677
      %v679 = vpop.f32.mrb[0].mxu0
      %680 = vmatprep.mubr.bf16.mxu0 0
      %681 = vmatmul.mubr.bf16.gmra.mrb[0].mxu0 %v531
      %v682 = vpop.f32.mrb[0].mxu0
      %v683 = vadd.f32 0.0, %v682
      %v684 = vpop.f32.mrb[0].mxu0
      %v685 = vpop.f32.mrb[0].mxu0
      %v686 = vadd.f32 0.0, %v685
      %v687 = vpop.f32.mrb[0].mxu0
      %688 = vmatprep.mubr.bf16.mxu0 0
      %689 = vmatmul.mubr.bf16.gmra.mrb[0].mxu0 %v534
      %v690 = vpop.f32.mrb[0].mxu0
      %v691 = vadd.f32 0.0, %v690
      %v692 = vpop.f32.mrb[0].mxu0
      %v693 = vpop.f32.mrb[0].mxu0
      %v694 = vadd.f32 0.0, %v693
      %v695 = vpop.f32.mrb[0].mxu0
      %696 = vmatprep.mubr.bf16.mxu0 0
      %697 = vmatmul.mubr.bf16.gmra.mrb[0].mxu0 %v537
      %v698 = vpop.f32.mrb[0].mxu0
      %v699 = vadd.f32 0.0, %v698
      %v700 = vpop.f32.mrb[0].mxu0
      %v701 = vpop.f32.mrb[0].mxu0
      %v702 = vadd.f32 0.0, %v701
      %v703 = vpop.f32.mrb[0].mxu0
      %704 = vmatprep.mubr.bf16.mxu0 0
      %705 = vmatmul.mubr.bf16.gmra.mrb[0].mxu0 %v540
      %v706 = vpop.f32.mrb[0].mxu0
      %v707 = vadd.f32 0.0, %v706
      %v708 = vpop.f32.mrb[0].mxu0
      %v709 = vpop.f32.mrb[0].mxu0
      %v710 = vadd.f32 0.0, %v709
      %v711 = vpop.f32.mrb[0].mxu0
      %712 = vmatprep.mubr.bf16.mxu0 0
      %713 = vmatmul.mubr.bf16.gmra.mrb[0].mxu0 %v543
      %v714 = vpop.f32.mrb[0].mxu0
      %v715 = vadd.f32 0.0, %v714
      %v716 = vpop.f32.mrb[0].mxu0
      %v717 = vpop.f32.mrb[0].mxu0
      %v718 = vadd.f32 0.0, %v717
      %v719 = vpop.f32.mrb[0].mxu0
      %720 = vmatprep.mubr.bf16.mxu0 0
      %721 = vmatmul.mubr.bf16.gmra.mrb[0].mxu0 %v546
      %v722 = vpop.f32.mrb[0].mxu0
      %v723 = vadd.f32 0.0, %v722
      %v724 = vpop.f32.mrb[0].mxu0
      %v725 = vpop.f32.mrb[0].mxu0
      %v726 = vadd.f32 0.0, %v725
      %v727 = vpop.f32.mrb[0].mxu0
      %728 = vdwg.mxu0
      %v729 = vsel %vm493, %v322, 0
      %v731 = vsel %vm493, %v323, 0
      %v733 = vsel %vm493, %v324, 0
      %v735 = vsel %vm493, %v325, 0
      %v737 = vsel %vm493, %v326, 0
      %v739 = vsel %vm493, %v327, 0
      %v741 = vsel %vm493, %v328, 0
      %v743 = vsel %vm493, %v329, 0
      %v745 = vsel %vm493, %v330, 0
      %v747 = vsel %vm493, %v331, 0
      %v749 = vsel %vm493, %v332, 0
      %v751 = vsel %vm493, %v333, 0
      %v753 = vsel %vm493, %v334, 0
      %v755 = vsel %vm493, %v335, 0
      %v757 = vsel %vm493, %v336, 0
      %v759 = vsel %vm493, %v337, 0
      %v761 = vsel %vm493, %v338, 0
      %v763 = vsel %vm493, %v339, 0
      %v766 = vsel %vm548, %v340, 0
      %768 = vmatprep.subr.bf16.mxu0 0
      %769 = vmatpush1.bf16.msra.mxu0 %v766
      %770 = vmatprep.subr.bf16.mxu0 0
      %771 = vmatpush1.bf16.msra.mxu0 0
      %772 = vmatprep.subr.bf16.mxu0 0
      %773 = vmatpush1.bf16.msra.mxu0 0
      %774 = vmatprep.subr.bf16.mxu0 0
      %775 = vmatpush1.bf16.msra.mxu0 0
      %776 = vmatprep.subr.bf16.mxu0 0
      %777 = vmatpush1.bf16.msra.mxu0 0
      %778 = vmatprep.subr.bf16.mxu0 0
      %779 = vmatpush1.bf16.msra.mxu0 0
      %780 = vmatprep.subr.bf16.mxu0 0
      %781 = vmatpush1.bf16.msra.mxu0 0
      %782 = vmatprep.subr.bf16.mxu0 0
      %783 = vmatpush1.bf16.msra.mxu0 0
      %784 = vmatprep.subr.bf16.mxu0 0
      %785 = vmatpush1.bf16.msra.mxu0 0
      %786 = vmatprep.subr.bf16.mxu0 0
      %787 = vmatpush1.bf16.msra.mxu0 0
      %788 = vmatprep.subr.bf16.mxu0 0
      %789 = vmatpush1.bf16.msra.mxu0 0
      %790 = vmatprep.subr.bf16.mxu0 0
      %791 = vmatpush1.bf16.msra.mxu0 0
      %792 = vmatprep.subr.bf16.mxu0 0
      %793 = vmatpush1.bf16.msra.mxu0 0
      %794 = vmatprep.subr.bf16.mxu0 0
      %795 = vmatpush1.bf16.msra.mxu0 0
      %796 = vmatprep.subr.bf16.mxu0 0
      %797 = vmatpush1.bf16.msra.mxu0 0
      %798 = vmatprep.subr.bf16.mxu0 0
      %799 = vmatpush1.bf16.msra.mxu0 0
      %800 = vmatprep.mubr.bf16.mxu0 0
      %801 = vmatmul.mubr.bf16.gmra.mrb[0].mxu0 %v729
      %v802 = vpop.f32.mrb[0].mxu0
      %v803 = vadd.f32 %v587, %v802
      %v804 = vpop.f32.mrb[0].mxu0
      %v805 = vpop.f32.mrb[0].mxu0
      %v806 = vadd.f32 %v590, %v805
      %v807 = vpop.f32.mrb[0].mxu0
      %808 = vmatprep.mubr.bf16.mxu0 0
      %809 = vmatmul.mubr.bf16.gmra.mrb[0].mxu0 %v731
      %v810 = vpop.f32.mrb[0].mxu0
      %v811 = vadd.f32 %v595, %v810
      %v812 = vpop.f32.mrb[0].mxu0
      %v813 = vpop.f32.mrb[0].mxu0
      %v814 = vadd.f32 %v598, %v813
      %v815 = vpop.f32.mrb[0].mxu0
      %816 = vmatprep.mubr.bf16.mxu0 0
      %817 = vmatmul.mubr.bf16.gmra.mrb[0].mxu0 %v733
      %v818 = vpop.f32.mrb[0].mxu0
      %v819 = vadd.f32 %v603, %v818
      %v820 = vpop.f32.mrb[0].mxu0
      %v821 = vpop.f32.mrb[0].mxu0
      %v822 = vadd.f32 %v606, %v821
      %v823 = vpop.f32.mrb[0].mxu0
      %824 = vmatprep.mubr.bf16.mxu0 0
      %825 = vmatmul.mubr.bf16.gmra.mrb[0].mxu0 %v735
      %v826 = vpop.f32.mrb[0].mxu0
      %v827 = vadd.f32 %v611, %v826
      %v828 = vpop.f32.mrb[0].mxu0
      %v829 = vpop.f32.mrb[0].mxu0
      %v830 = vadd.f32 %v614, %v829
      %v831 = vpop.f32.mrb[0].mxu0
      %832 = vmatprep.mubr.bf16.mxu0 0
      %833 = vmatmul.mubr.bf16.gmra.mrb[0].mxu0 %v737
      %v834 = vpop.f32.mrb[0].mxu0
      %v835 = vadd.f32 %v619, %v834
      %v836 = vpop.f32.mrb[0].mxu0
      %v837 = vpop.f32.mrb[0].mxu0
      %v838 = vadd.f32 %v622, %v837
      %v839 = vpop.f32.mrb[0].mxu0
      %840 = vmatprep.mubr.bf16.mxu0 0
      %841 = vmatmul.mubr.bf16.gmra.mrb[0].mxu0 %v739
      %v842 = vpop.f32.mrb[0].mxu0
      %v843 = vadd.f32 %v627, %v842
      %v844 = vpop.f32.mrb[0].mxu0
      %v845 = vpop.f32.mrb[0].mxu0
      %v846 = vadd.f32 %v630, %v845
      %v847 = vpop.f32.mrb[0].mxu0
      %848 = vmatprep.mubr.bf16.mxu0 0
      %849 = vmatmul.mubr.bf16.gmra.mrb[0].mxu0 %v741
      %v850 = vpop.f32.mrb[0].mxu0
      %v851 = vadd.f32 %v635, %v850
      %v852 = vpop.f32.mrb[0].mxu0
      %v853 = vpop.f32.mrb[0].mxu0
      %v854 = vadd.f32 %v638, %v853
      %v855 = vpop.f32.mrb[0].mxu0
      %856 = vmatprep.mubr.bf16.mxu0 0
      %857 = vmatmul.mubr.bf16.gmra.mrb[0].mxu0 %v743
      %v858 = vpop.f32.mrb[0].mxu0
      %v859 = vadd.f32 %v643, %v858
      %v860 = vpop.f32.mrb[0].mxu0
      %v861 = vpop.f32.mrb[0].mxu0
      %v862 = vadd.f32 %v646, %v861
      %v863 = vpop.f32.mrb[0].mxu0
      %864 = vmatprep.mubr.bf16.mxu0 0
      %865 = vmatmul.mubr.bf16.gmra.mrb[0].mxu0 %v745
      %v866 = vpop.f32.mrb[0].mxu0
      %v867 = vadd.f32 %v651, %v866
      %v868 = vpop.f32.mrb[0].mxu0
      %v869 = vpop.f32.mrb[0].mxu0
      %v870 = vadd.f32 %v654, %v869
      %v871 = vpop.f32.mrb[0].mxu0
      %872 = vmatprep.mubr.bf16.mxu0 0
      %873 = vmatmul.mubr.bf16.gmra.mrb[0].mxu0 %v747
      %v874 = vpop.f32.mrb[0].mxu0
      %v875 = vadd.f32 %v659, %v874
      %v876 = vpop.f32.mrb[0].mxu0
      %v877 = vpop.f32.mrb[0].mxu0
      %v878 = vadd.f32 %v662, %v877
      %v879 = vpop.f32.mrb[0].mxu0
      %880 = vmatprep.mubr.bf16.mxu0 0
      %881 = vmatmul.mubr.bf16.gmra.mrb[0].mxu0 %v749
      %v882 = vpop.f32.mrb[0].mxu0
      %v883 = vadd.f32 %v667, %v882
      %v884 = vpop.f32.mrb[0].mxu0
      %v885 = vpop.f32.mrb[0].mxu0
      %v886 = vadd.f32 %v670, %v885
      %v887 = vpop.f32.mrb[0].mxu0
      %888 = vmatprep.mubr.bf16.mxu0 0
      %889 = vmatmul.mubr.bf16.gmra.mrb[0].mxu0 %v751
      %v890 = vpop.f32.mrb[0].mxu0
      %v891 = vadd.f32 %v675, %v890
      %v892 = vpop.f32.mrb[0].mxu0
      %v893 = vpop.f32.mrb[0].mxu0
      %v894 = vadd.f32 %v678, %v893
      %v895 = vpop.f32.mrb[0].mxu0
      %896 = vmatprep.mubr.bf16.mxu0 0
      %897 = vmatmul.mubr.bf16.gmra.mrb[0].mxu0 %v753
      %v898 = vpop.f32.mrb[0].mxu0
      %v899 = vadd.f32 %v683, %v898
      %v900 = vpop.f32.mrb[0].mxu0
      %v901 = vpop.f32.mrb[0].mxu0
      %v902 = vadd.f32 %v686, %v901
      %v903 = vpop.f32.mrb[0].mxu0
      %904 = vmatprep.mubr.bf16.mxu0 0
      %905 = vmatmul.mubr.bf16.gmra.mrb[0].mxu0 %v755
      %v906 = vpop.f32.mrb[0].mxu0
      %v907 = vadd.f32 %v691, %v906
      %v908 = vpop.f32.mrb[0].mxu0
      %v909 = vpop.f32.mrb[0].mxu0
      %v910 = vadd.f32 %v694, %v909
      %v911 = vpop.f32.mrb[0].mxu0
      %912 = vmatprep.mubr.bf16.mxu0 0
      %913 = vmatmul.mubr.bf16.gmra.mrb[0].mxu0 %v757
      %v914 = vpop.f32.mrb[0].mxu0
      %v915 = vadd.f32 %v699, %v914
      %v916 = vpop.f32.mrb[0].mxu0
      %v917 = vpop.f32.mrb[0].mxu0
      %v918 = vadd.f32 %v702, %v917
      %v919 = vpop.f32.mrb[0].mxu0
      %920 = vmatprep.mubr.bf16.mxu0 0
      %921 = vmatmul.mubr.bf16.gmra.mrb[0].mxu0 %v759
      %v922 = vpop.f32.mrb[0].mxu0
      %v923 = vadd.f32 %v707, %v922
      %v924 = vpop.f32.mrb[0].mxu0
      %v925 = vpop.f32.mrb[0].mxu0
      %v926 = vadd.f32 %v710, %v925
      %v927 = vpop.f32.mrb[0].mxu0
      %928 = vmatprep.mubr.bf16.mxu0 0
      %929 = vmatmul.mubr.bf16.gmra.mrb[0].mxu0 %v761
      %v930 = vpop.f32.mrb[0].mxu0
      %v931 = vadd.f32 %v715, %v930
      %v932 = vpop.f32.mrb[0].mxu0
      %v933 = vpop.f32.mrb[0].mxu0
      %v934 = vadd.f32 %v718, %v933
      %v935 = vpop.f32.mrb[0].mxu0
      %936 = vmatprep.mubr.bf16.mxu0 0
      %937 = vmatmul.mubr.bf16.gmra.mrb[0].mxu0 %v763
      %v938 = vpop.f32.mrb[0].mxu0
      %v939 = vadd.f32 %v723, %v938
      %v940 = vpop.f32.mrb[0].mxu0
      %v941 = vpop.f32.mrb[0].mxu0
      %v942 = vadd.f32 %v726, %v941
      %v943 = vpop.f32.mrb[0].mxu0
      %944 = vdwg.mxu0
      %s945 = scalar_lea.vmem %s2, 4
      %v946 = vld [vmem:[%s945] sm:$0x3]
      %vm966 = vcmask 1046528
      %v967 = vrot.slane %v322, 1
      %v968 = vrot.slane %v323, 1
      %v969 = vsel %vm966, %v967, %v968
      %v970 = vrot.slane %v324, 1
      %v971 = vsel %vm966, %v968, %v970
      %v972 = vrot.slane %v325, 1
      %v973 = vsel %vm966, %v970, %v972
      %v974 = vrot.slane %v326, 1
      %v975 = vsel %vm966, %v972, %v974
      %v976 = vrot.slane %v327, 1
      %v977 = vsel %vm966, %v974, %v976
      %v978 = vrot.slane %v328, 1
      %v979 = vsel %vm966, %v976, %v978
      %v980 = vrot.slane %v329, 1
      %v981 = vsel %vm966, %v978, %v980
      %v982 = vrot.slane %v330, 1
      %v983 = vsel %vm966, %v980, %v982
      %v984 = vrot.slane %v331, 1
      %v985 = vsel %vm966, %v982, %v984
      %v986 = vrot.slane %v332, 1
      %v987 = vsel %vm966, %v984, %v986
      %v988 = vrot.slane %v333, 1
      %v989 = vsel %vm966, %v986, %v988
      %v990 = vrot.slane %v334, 1
      %v991 = vsel %vm966, %v988, %v990
      %v992 = vrot.slane %v335, 1
      %v993 = vsel %vm966, %v990, %v992
      %v994 = vrot.slane %v336, 1
      %v995 = vsel %vm966, %v992, %v994
      %v996 = vrot.slane %v337, 1
      %v997 = vsel %vm966, %v994, %v996
      %v998 = vrot.slane %v338, 1
      %v999 = vsel %vm966, %v996, %v998
      %v1000 = vrot.slane %v339, 1
      %v1001 = vsel %vm966, %v998, %v1000
      %v1002 = vrot.slane %v341, 1
      %v1003 = vsel %vm966, %v1000, %v1002
      %v1005 = vsel %vm493, %v969, 0
      %v1008 = vsel %vm493, %v971, 0
      %v1011 = vsel %vm493, %v973, 0
      %v1014 = vsel %vm493, %v975, 0
      %v1017 = vsel %vm493, %v977, 0
      %v1020 = vsel %vm493, %v979, 0
      %v1023 = vsel %vm493, %v981, 0
      %v1026 = vsel %vm493, %v983, 0
      %v1029 = vsel %vm493, %v985, 0
      %v1032 = vsel %vm493, %v987, 0
      %v1035 = vsel %vm493, %v989, 0
      %v1038 = vsel %vm493, %v991, 0
      %v1041 = vsel %vm493, %v993, 0
      %v1044 = vsel %vm493, %v995, 0
      %v1047 = vsel %vm493, %v997, 0
      %v1050 = vsel %vm493, %v999, 0
      %v1053 = vsel %vm493, %v1001, 0
      %v1056 = vsel %vm493, %v1003, 0
      %v1059 = vsel %vm548, %v946, 0
      %1061 = vmatprep.subr.bf16.mxu0 0
      %1062 = vmatpush1.bf16.msra.mxu0 %v1059
      %1063 = vmatprep.subr.bf16.mxu0 0
      %1064 = vmatpush1.bf16.msra.mxu0 0
      %1065 = vmatprep.subr.bf16.mxu0 0
      %1066 = vmatpush1.bf16.msra.mxu0 0
      %1067 = vmatprep.subr.bf16.mxu0 0
      %1068 = vmatpush1.bf16.msra.mxu0 0
      %1069 = vmatprep.subr.bf16.mxu0 0
      %1070 = vmatpush1.bf16.msra.mxu0 0
      %1071 = vmatprep.subr.bf16.mxu0 0
      %1072 = vmatpush1.bf16.msra.mxu0 0
      %1073 = vmatprep.subr.bf16.mxu0 0
      %1074 = vmatpush1.bf16.msra.mxu0 0
      %1075 = vmatprep.subr.bf16.mxu0 0
      %1076 = vmatpush1.bf16.msra.mxu0 0
      %1077 = vmatprep.subr.bf16.mxu0 0
      %1078 = vmatpush1.bf16.msra.mxu0 0
      %1079 = vmatprep.subr.bf16.mxu0 0
      %1080 = vmatpush1.bf16.msra.mxu0 0
      %1081 = vmatprep.subr.bf16.mxu0 0
      %1082 = vmatpush1.bf16.msra.mxu0 0
      %1083 = vmatprep.subr.bf16.mxu0 0
      %1084 = vmatpush1.bf16.msra.mxu0 0
      %1085 = vmatprep.subr.bf16.mxu0 0
      %1086 = vmatpush1.bf16.msra.mxu0 0
      %1087 = vmatprep.subr.bf16.mxu0 0
      %1088 = vmatpush1.bf16.msra.mxu0 0
      %1089 = vmatprep.subr.bf16.mxu0 0
      %1090 = vmatpush1.bf16.msra.mxu0 0
      %1091 = vmatprep.subr.bf16.mxu0 0
      %1092 = vmatpush1.bf16.msra.mxu0 0
      %1093 = vmatprep.mubr.bf16.mxu0 0
      %1094 = vmatmul.mubr.bf16.gmra.mrb[0].mxu0 %v1005
      %v1095 = vpop.f32.mrb[0].mxu0
      %v1096 = vadd.f32 0.0, %v1095
      %v1097 = vpop.f32.mrb[0].mxu0
      %v1098 = vpop.f32.mrb[0].mxu0
      %v1099 = vadd.f32 0.0, %v1098
      %v1100 = vpop.f32.mrb[0].mxu0
      %1101 = vmatprep.mubr.bf16.mxu0 0
      %1102 = vmatmul.mubr.bf16.gmra.mrb[0].mxu0 %v1008
      %v1103 = vpop.f32.mrb[0].mxu0
      %v1104 = vadd.f32 0.0, %v1103
      %v1105 = vpop.f32.mrb[0].mxu0
      %v1106 = vpop.f32.mrb[0].mxu0
      %v1107 = vadd.f32 0.0, %v1106
      %v1108 = vpop.f32.mrb[0].mxu0
      %1109 = vmatprep.mubr.bf16.mxu0 0
      %1110 = vmatmul.mubr.bf16.gmra.mrb[0].mxu0 %v1011
      %v1111 = vpop.f32.mrb[0].mxu0
      %v1112 = vadd.f32 0.0, %v1111
      %v1113 = vpop.f32.mrb[0].mxu0
      %v1114 = vpop.f32.mrb[0].mxu0
      %v1115 = vadd.f32 0.0, %v1114
      %v1116 = vpop.f32.mrb[0].mxu0
      %1117 = vmatprep.mubr.bf16.mxu0 0
      %1118 = vmatmul.mubr.bf16.gmra.mrb[0].mxu0 %v1014
      %v1119 = vpop.f32.mrb[0].mxu0
      %v1120 = vadd.f32 0.0, %v1119
      %v1121 = vpop.f32.mrb[0].mxu0
      %v1122 = vpop.f32.mrb[0].mxu0
      %v1123 = vadd.f32 0.0, %v1122
      %v1124 = vpop.f32.mrb[0].mxu0
      %1125 = vmatprep.mubr.bf16.mxu0 0
      %1126 = vmatmul.mubr.bf16.gmra.mrb[0].mxu0 %v1017
      %v1127 = vpop.f32.mrb[0].mxu0
      %v1128 = vadd.f32 0.0, %v1127
      %v1129 = vpop.f32.mrb[0].mxu0
      %v1130 = vpop.f32.mrb[0].mxu0
      %v1131 = vadd.f32 0.0, %v1130
      %v1132 = vpop.f32.mrb[0].mxu0
      %1133 = vmatprep.mubr.bf16.mxu0 0
      %1134 = vmatmul.mubr.bf16.gmra.mrb[0].mxu0 %v1020
      %v1135 = vpop.f32.mrb[0].mxu0
      %v1136 = vadd.f32 0.0, %v1135
      %v1137 = vpop.f32.mrb[0].mxu0
      %v1138 = vpop.f32.mrb[0].mxu0
      %v1139 = vadd.f32 0.0, %v1138
      %v1140 = vpop.f32.mrb[0].mxu0
      %1141 = vmatprep.mubr.bf16.mxu0 0
      %1142 = vmatmul.mubr.bf16.gmra.mrb[0].mxu0 %v1023
      %v1143 = vpop.f32.mrb[0].mxu0
      %v1144 = vadd.f32 0.0, %v1143
      %v1145 = vpop.f32.mrb[0].mxu0
      %v1146 = vpop.f32.mrb[0].mxu0
      %v1147 = vadd.f32 0.0, %v1146
      %v1148 = vpop.f32.mrb[0].mxu0
      %1149 = vmatprep.mubr.bf16.mxu0 0
      %1150 = vmatmul.mubr.bf16.gmra.mrb[0].mxu0 %v1026
      %v1151 = vpop.f32.mrb[0].mxu0
      %v1152 = vadd.f32 0.0, %v1151
      %v1153 = vpop.f32.mrb[0].mxu0
      %v1154 = vpop.f32.mrb[0].mxu0
      %v1155 = vadd.f32 0.0, %v1154
      %v1156 = vpop.f32.mrb[0].mxu0
      %1157 = vmatprep.mubr.bf16.mxu0 0
      %1158 = vmatmul.mubr.bf16.gmra.mrb[0].mxu0 %v1029
      %v1159 = vpop.f32.mrb[0].mxu0
      %v1160 = vadd.f32 0.0, %v1159
      %v1161 = vpop.f32.mrb[0].mxu0
      %v1162 = vpop.f32.mrb[0].mxu0
      %v1163 = vadd.f32 0.0, %v1162
      %v1164 = vpop.f32.mrb[0].mxu0
      %1165 = vmatprep.mubr.bf16.mxu0 0
      %1166 = vmatmul.mubr.bf16.gmra.mrb[0].mxu0 %v1032
      %v1167 = vpop.f32.mrb[0].mxu0
      %v1168 = vadd.f32 0.0, %v1167
      %v1169 = vpop.f32.mrb[0].mxu0
      %v1170 = vpop.f32.mrb[0].mxu0
      %v1171 = vadd.f32 0.0, %v1170
      %v1172 = vpop.f32.mrb[0].mxu0
      %1173 = vmatprep.mubr.bf16.mxu0 0
      %1174 = vmatmul.mubr.bf16.gmra.mrb[0].mxu0 %v1035
      %v1175 = vpop.f32.mrb[0].mxu0
      %v1176 = vadd.f32 0.0, %v1175
      %v1177 = vpop.f32.mrb[0].mxu0
      %v1178 = vpop.f32.mrb[0].mxu0
      %v1179 = vadd.f32 0.0, %v1178
      %v1180 = vpop.f32.mrb[0].mxu0
      %1181 = vmatprep.mubr.bf16.mxu0 0
      %1182 = vmatmul.mubr.bf16.gmra.mrb[0].mxu0 %v1038
      %v1183 = vpop.f32.mrb[0].mxu0
      %v1184 = vadd.f32 0.0, %v1183
      %v1185 = vpop.f32.mrb[0].mxu0
      %v1186 = vpop.f32.mrb[0].mxu0
      %v1187 = vadd.f32 0.0, %v1186
      %v1188 = vpop.f32.mrb[0].mxu0
      %1189 = vmatprep.mubr.bf16.mxu0 0
      %1190 = vmatmul.mubr.bf16.gmra.mrb[0].mxu0 %v1041
      %v1191 = vpop.f32.mrb[0].mxu0
      %v1192 = vadd.f32 0.0, %v1191
      %v1193 = vpop.f32.mrb[0].mxu0
      %v1194 = vpop.f32.mrb[0].mxu0
      %v1195 = vadd.f32 0.0, %v1194
      %v1196 = vpop.f32.mrb[0].mxu0
      %1197 = vmatprep.mubr.bf16.mxu0 0
      %1198 = vmatmul.mubr.bf16.gmra.mrb[0].mxu0 %v1044
      %v1199 = vpop.f32.mrb[0].mxu0
      %v1200 = vadd.f32 0.0, %v1199
      %v1201 = vpop.f32.mrb[0].mxu0
      %v1202 = vpop.f32.mrb[0].mxu0
      %v1203 = vadd.f32 0.0, %v1202
      %v1204 = vpop.f32.mrb[0].mxu0
      %1205 = vmatprep.mubr.bf16.mxu0 0
      %1206 = vmatmul.mubr.bf16.gmra.mrb[0].mxu0 %v1047
      %v1207 = vpop.f32.mrb[0].mxu0
      %v1208 = vadd.f32 0.0, %v1207
      %v1209 = vpop.f32.mrb[0].mxu0
      %v1210 = vpop.f32.mrb[0].mxu0
      %v1211 = vadd.f32 0.0, %v1210
      %v1212 = vpop.f32.mrb[0].mxu0
      %1213 = vmatprep.mubr.bf16.mxu0 0
      %1214 = vmatmul.mubr.bf16.gmra.mrb[0].mxu0 %v1050
      %v1215 = vpop.f32.mrb[0].mxu0
      %v1216 = vadd.f32 0.0, %v1215
      %v1217 = vpop.f32.mrb[0].mxu0
      %v1218 = vpop.f32.mrb[0].mxu0
      %v1219 = vadd.f32 0.0, %v1218
      %v1220 = vpop.f32.mrb[0].mxu0
      %1221 = vmatprep.mubr.bf16.mxu0 0
      %1222 = vmatmul.mubr.bf16.gmra.mrb[0].mxu0 %v1053
      %v1223 = vpop.f32.mrb[0].mxu0
      %v1224 = vadd.f32 0.0, %v1223
      %v1225 = vpop.f32.mrb[0].mxu0
      %v1226 = vpop.f32.mrb[0].mxu0
      %v1227 = vadd.f32 0.0, %v1226
      %v1228 = vpop.f32.mrb[0].mxu0
      %1229 = vmatprep.mubr.bf16.mxu0 0
      %1230 = vmatmul.mubr.bf16.gmra.mrb[0].mxu0 %v1056
      %v1231 = vpop.f32.mrb[0].mxu0
      %v1232 = vadd.f32 0.0, %v1231
      %v1233 = vpop.f32.mrb[0].mxu0
      %v1234 = vpop.f32.mrb[0].mxu0
      %v1235 = vadd.f32 0.0, %v1234
      %v1236 = vpop.f32.mrb[0].mxu0
      %1237 = vdwg.mxu0
      %v1238 = vadd.f32 %v803, %v1096
      %v1239 = vadd.f32 %v806, %v1099
      %v1240 = vadd.f32 %v811, %v1104
      %v1241 = vadd.f32 %v814, %v1107
      %v1242 = vadd.f32 %v819, %v1112
      %v1243 = vadd.f32 %v822, %v1115
      %v1244 = vadd.f32 %v827, %v1120
      %v1245 = vadd.f32 %v830, %v1123
      %v1246 = vadd.f32 %v835, %v1128
      %v1247 = vadd.f32 %v838, %v1131
      %v1248 = vadd.f32 %v843, %v1136
      %v1249 = vadd.f32 %v846, %v1139
      %v1250 = vadd.f32 %v851, %v1144
      %v1251 = vadd.f32 %v854, %v1147
      %v1252 = vadd.f32 %v859, %v1152
      %v1253 = vadd.f32 %v862, %v1155
      %v1254 = vadd.f32 %v867, %v1160
      %v1255 = vadd.f32 %v870, %v1163
      %v1256 = vadd.f32 %v875, %v1168
      %v1257 = vadd.f32 %v878, %v1171
      %v1258 = vadd.f32 %v883, %v1176
      %v1259 = vadd.f32 %v886, %v1179
      %v1260 = vadd.f32 %v891, %v1184
      %v1261 = vadd.f32 %v894, %v1187
      %v1262 = vadd.f32 %v899, %v1192
      %v1263 = vadd.f32 %v902, %v1195
      %v1264 = vadd.f32 %v907, %v1200
      %v1265 = vadd.f32 %v910, %v1203
      %v1266 = vadd.f32 %v915, %v1208
      %v1267 = vadd.f32 %v918, %v1211
      %v1268 = vadd.f32 %v923, %v1216
      %v1269 = vadd.f32 %v926, %v1219
      %v1270 = vadd.f32 %v931, %v1224
      %v1271 = vadd.f32 %v934, %v1227
      %v1272 = vadd.f32 %v939, %v1232
      %v1273 = vadd.f32 %v942, %v1235
      %v1274 = vpack.c.bf16 %v318, %v317
      %v1275 = vpack.c.bf16 %v319, %v319
      %s1276 = scalar_lea.vmem %s2, 6
      %v1277 = vld [vmem:[%s1276] sm:$0x3]
      %v1280 = vrot.slane %v1274, 1
      %v1281 = vsel %vm966, %v1000, %v1280
      %v1282 = vrot.slane %v1275, 1
      %v1283 = vsel %vm966, %v1280, %v1282
      %v1285 = vsel %vm493, %v1281, 0
      %v1288 = vsel %vm493, %v1283, 0
      %v1291 = vsel %vm548, %v1277, 0
      %1293 = vmatprep.subr.bf16.mxu0 0
      %1294 = vmatpush1.bf16.msra.mxu0 %v1291
      %1295 = vmatprep.subr.bf16.mxu0 0
      %1296 = vmatpush1.bf16.msra.mxu0 0
      %1297 = vmatprep.subr.bf16.mxu0 0
      %1298 = vmatpush1.bf16.msra.mxu0 0
      %1299 = vmatprep.subr.bf16.mxu0 0
      %1300 = vmatpush1.bf16.msra.mxu0 0
      %1301 = vmatprep.subr.bf16.mxu0 0
      %1302 = vmatpush1.bf16.msra.mxu0 0
      %1303 = vmatprep.subr.bf16.mxu0 0
      %1304 = vmatpush1.bf16.msra.mxu0 0
      %1305 = vmatprep.subr.bf16.mxu0 0
      %1306 = vmatpush1.bf16.msra.mxu0 0
      %1307 = vmatprep.subr.bf16.mxu0 0
      %1308 = vmatpush1.bf16.msra.mxu0 0
      %1309 = vmatprep.subr.bf16.mxu0 0
      %1310 = vmatpush1.bf16.msra.mxu0 0
      %1311 = vmatprep.subr.bf16.mxu0 0
      %1312 = vmatpush1.bf16.msra.mxu0 0
      %1313 = vmatprep.subr.bf16.mxu0 0
      %1314 = vmatpush1.bf16.msra.mxu0 0
      %1315 = vmatprep.subr.bf16.mxu0 0
      %1316 = vmatpush1.bf16.msra.mxu0 0
      %1317 = vmatprep.subr.bf16.mxu0 0
      %1318 = vmatpush1.bf16.msra.mxu0 0
      %1319 = vmatprep.subr.bf16.mxu0 0
      %1320 = vmatpush1.bf16.msra.mxu0 0
      %1321 = vmatprep.subr.bf16.mxu0 0
      %1322 = vmatpush1.bf16.msra.mxu0 0
      %1323 = vmatprep.subr.bf16.mxu0 0
      %1324 = vmatpush1.bf16.msra.mxu0 0
      %1325 = vmatprep.mubr.bf16.mxu0 0
      %1326 = vmatmul.mubr.bf16.gmra.mrb[0].mxu0 %v1008
      %v1327 = vpop.f32.mrb[0].mxu0
      %v1328 = vadd.f32 0.0, %v1327
      %v1329 = vpop.f32.mrb[0].mxu0
      %v1330 = vpop.f32.mrb[0].mxu0
      %v1331 = vadd.f32 0.0, %v1330
      %v1332 = vpop.f32.mrb[0].mxu0
      %1333 = vmatprep.mubr.bf16.mxu0 0
      %1334 = vmatmul.mubr.bf16.gmra.mrb[0].mxu0 %v1011
      %v1335 = vpop.f32.mrb[0].mxu0
      %v1336 = vadd.f32 0.0, %v1335
      %v1337 = vpop.f32.mrb[0].mxu0
      %v1338 = vpop.f32.mrb[0].mxu0
      %v1339 = vadd.f32 0.0, %v1338
      %v1340 = vpop.f32.mrb[0].mxu0
      %1341 = vmatprep.mubr.bf16.mxu0 0
      %1342 = vmatmul.mubr.bf16.gmra.mrb[0].mxu0 %v1014
      %v1343 = vpop.f32.mrb[0].mxu0
      %v1344 = vadd.f32 0.0, %v1343
      %v1345 = vpop.f32.mrb[0].mxu0
      %v1346 = vpop.f32.mrb[0].mxu0
      %v1347 = vadd.f32 0.0, %v1346
      %v1348 = vpop.f32.mrb[0].mxu0
      %1349 = vmatprep.mubr.bf16.mxu0 0
      %1350 = vmatmul.mubr.bf16.gmra.mrb[0].mxu0 %v1017
      %v1351 = vpop.f32.mrb[0].mxu0
      %v1352 = vadd.f32 0.0, %v1351
      %v1353 = vpop.f32.mrb[0].mxu0
      %v1354 = vpop.f32.mrb[0].mxu0
      %v1355 = vadd.f32 0.0, %v1354
      %v1356 = vpop.f32.mrb[0].mxu0
      %1357 = vmatprep.mubr.bf16.mxu0 0
      %1358 = vmatmul.mubr.bf16.gmra.mrb[0].mxu0 %v1020
      %v1359 = vpop.f32.mrb[0].mxu0
      %v1360 = vadd.f32 0.0, %v1359
      %v1361 = vpop.f32.mrb[0].mxu0
      %v1362 = vpop.f32.mrb[0].mxu0
      %v1363 = vadd.f32 0.0, %v1362
      %v1364 = vpop.f32.mrb[0].mxu0
      %1365 = vmatprep.mubr.bf16.mxu0 0
      %1366 = vmatmul.mubr.bf16.gmra.mrb[0].mxu0 %v1023
      %v1367 = vpop.f32.mrb[0].mxu0
      %v1368 = vadd.f32 0.0, %v1367
      %v1369 = vpop.f32.mrb[0].mxu0
      %v1370 = vpop.f32.mrb[0].mxu0
      %v1371 = vadd.f32 0.0, %v1370
      %v1372 = vpop.f32.mrb[0].mxu0
      %1373 = vmatprep.mubr.bf16.mxu0 0
      %1374 = vmatmul.mubr.bf16.gmra.mrb[0].mxu0 %v1026
      %v1375 = vpop.f32.mrb[0].mxu0
      %v1376 = vadd.f32 0.0, %v1375
      %v1377 = vpop.f32.mrb[0].mxu0
      %v1378 = vpop.f32.mrb[0].mxu0
      %v1379 = vadd.f32 0.0, %v1378
      %v1380 = vpop.f32.mrb[0].mxu0
      %1381 = vmatprep.mubr.bf16.mxu0 0
      %1382 = vmatmul.mubr.bf16.gmra.mrb[0].mxu0 %v1029
      %v1383 = vpop.f32.mrb[0].mxu0
      %v1384 = vadd.f32 0.0, %v1383
      %v1385 = vpop.f32.mrb[0].mxu0
      %v1386 = vpop.f32.mrb[0].mxu0
      %v1387 = vadd.f32 0.0, %v1386
      %v1388 = vpop.f32.mrb[0].mxu0
      %1389 = vmatprep.mubr.bf16.mxu0 0
      %1390 = vmatmul.mubr.bf16.gmra.mrb[0].mxu0 %v1032
      %v1391 = vpop.f32.mrb[0].mxu0
      %v1392 = vadd.f32 0.0, %v1391
      %v1393 = vpop.f32.mrb[0].mxu0
      %v1394 = vpop.f32.mrb[0].mxu0
      %v1395 = vadd.f32 0.0, %v1394
      %v1396 = vpop.f32.mrb[0].mxu0
      %1397 = vmatprep.mubr.bf16.mxu0 0
      %1398 = vmatmul.mubr.bf16.gmra.mrb[0].mxu0 %v1035
      %v1399 = vpop.f32.mrb[0].mxu0
      %v1400 = vadd.f32 0.0, %v1399
      %v1401 = vpop.f32.mrb[0].mxu0
      %v1402 = vpop.f32.mrb[0].mxu0
      %v1403 = vadd.f32 0.0, %v1402
      %v1404 = vpop.f32.mrb[0].mxu0
      %1405 = vmatprep.mubr.bf16.mxu0 0
      %1406 = vmatmul.mubr.bf16.gmra.mrb[0].mxu0 %v1038
      %v1407 = vpop.f32.mrb[0].mxu0
      %v1408 = vadd.f32 0.0, %v1407
      %v1409 = vpop.f32.mrb[0].mxu0
      %v1410 = vpop.f32.mrb[0].mxu0
      %v1411 = vadd.f32 0.0, %v1410
      %v1412 = vpop.f32.mrb[0].mxu0
      %1413 = vmatprep.mubr.bf16.mxu0 0
      %1414 = vmatmul.mubr.bf16.gmra.mrb[0].mxu0 %v1041
      %v1415 = vpop.f32.mrb[0].mxu0
      %v1416 = vadd.f32 0.0, %v1415
      %v1417 = vpop.f32.mrb[0].mxu0
      %v1418 = vpop.f32.mrb[0].mxu0
      %v1419 = vadd.f32 0.0, %v1418
      %v1420 = vpop.f32.mrb[0].mxu0
      %1421 = vmatprep.mubr.bf16.mxu0 0
      %1422 = vmatmul.mubr.bf16.gmra.mrb[0].mxu0 %v1044
      %v1423 = vpop.f32.mrb[0].mxu0
      %v1424 = vadd.f32 0.0, %v1423
      %v1425 = vpop.f32.mrb[0].mxu0
      %v1426 = vpop.f32.mrb[0].mxu0
      %v1427 = vadd.f32 0.0, %v1426
      %v1428 = vpop.f32.mrb[0].mxu0
      %1429 = vmatprep.mubr.bf16.mxu0 0
      %1430 = vmatmul.mubr.bf16.gmra.mrb[0].mxu0 %v1047
      %v1431 = vpop.f32.mrb[0].mxu0
      %v1432 = vadd.f32 0.0, %v1431
      %v1433 = vpop.f32.mrb[0].mxu0
      %v1434 = vpop.f32.mrb[0].mxu0
      %v1435 = vadd.f32 0.0, %v1434
      %v1436 = vpop.f32.mrb[0].mxu0
      %1437 = vmatprep.mubr.bf16.mxu0 0
      %1438 = vmatmul.mubr.bf16.gmra.mrb[0].mxu0 %v1050
      %v1439 = vpop.f32.mrb[0].mxu0
      %v1440 = vadd.f32 0.0, %v1439
      %v1441 = vpop.f32.mrb[0].mxu0
      %v1442 = vpop.f32.mrb[0].mxu0
      %v1443 = vadd.f32 0.0, %v1442
      %v1444 = vpop.f32.mrb[0].mxu0
      %1445 = vmatprep.mubr.bf16.mxu0 0
      %1446 = vmatmul.mubr.bf16.gmra.mrb[0].mxu0 %v1053
      %v1447 = vpop.f32.mrb[0].mxu0
      %v1448 = vadd.f32 0.0, %v1447
      %v1449 = vpop.f32.mrb[0].mxu0
      %v1450 = vpop.f32.mrb[0].mxu0
      %v1451 = vadd.f32 0.0, %v1450
      %v1452 = vpop.f32.mrb[0].mxu0
      %1453 = vmatprep.mubr.bf16.mxu0 0
      %1454 = vmatmul.mubr.bf16.gmra.mrb[0].mxu0 %v1285
      %v1455 = vpop.f32.mrb[0].mxu0
      %v1456 = vadd.f32 0.0, %v1455
      %v1457 = vpop.f32.mrb[0].mxu0
      %v1458 = vpop.f32.mrb[0].mxu0
      %v1459 = vadd.f32 0.0, %v1458
      %v1460 = vpop.f32.mrb[0].mxu0
      %1461 = vmatprep.mubr.bf16.mxu0 0
      %1462 = vmatmul.mubr.bf16.gmra.mrb[0].mxu0 %v1288
      %v1463 = vpop.f32.mrb[0].mxu0
      %v1464 = vadd.f32 0.0, %v1463
      %v1465 = vpop.f32.mrb[0].mxu0
      %v1466 = vpop.f32.mrb[0].mxu0
      %v1467 = vadd.f32 0.0, %v1466
      %v1468 = vpop.f32.mrb[0].mxu0
      %1469 = vdwg.mxu0
      %v1470 = vadd.f32 %v1238, %v1328
      %v1471 = vadd.f32 %v1239, %v1331
      %v1472 = vadd.f32 %v1240, %v1336
      %v1473 = vadd.f32 %v1241, %v1339
      %v1474 = vadd.f32 %v1242, %v1344
      %v1475 = vadd.f32 %v1243, %v1347
      %v1476 = vadd.f32 %v1244, %v1352
      %v1477 = vadd.f32 %v1245, %v1355
      %v1478 = vadd.f32 %v1246, %v1360
      %v1479 = vadd.f32 %v1247, %v1363
      %v1480 = vadd.f32 %v1248, %v1368
      %v1481 = vadd.f32 %v1249, %v1371
      %v1482 = vadd.f32 %v1250, %v1376
      %v1483 = vadd.f32 %v1251, %v1379
      %v1484 = vadd.f32 %v1252, %v1384
      %v1485 = vadd.f32 %v1253, %v1387
      %v1486 = vadd.f32 %v1254, %v1392
      %v1487 = vadd.f32 %v1255, %v1395
      %v1488 = vadd.f32 %v1256, %v1400
      %v1489 = vadd.f32 %v1257, %v1403
      %v1490 = vadd.f32 %v1258, %v1408
      %v1491 = vadd.f32 %v1259, %v1411
      %v1492 = vadd.f32 %v1260, %v1416
      %v1493 = vadd.f32 %v1261, %v1419
      %v1494 = vadd.f32 %v1262, %v1424
      %v1495 = vadd.f32 %v1263, %v1427
      %v1496 = vadd.f32 %v1264, %v1432
      %v1497 = vadd.f32 %v1265, %v1435
      %v1498 = vadd.f32 %v1266, %v1440
      %v1499 = vadd.f32 %v1267, %v1443
      %v1500 = vadd.f32 %v1268, %v1448
      %v1501 = vadd.f32 %v1269, %v1451
      %v1502 = vadd.f32 %v1270, %v1456
      %v1503 = vadd.f32 %v1271, %v1459
      %v1504 = vadd.f32 %v1272, %v1464
      %v1505 = vadd.f32 %v1273, %v1467
      %s1506 = scalar_lea.vmem %s2, 8
      %v1507 = vld [vmem:[%s1506] sm:$0x3]
      %vm1508 = vsmask.f32 6400
      %v1509 = vrot.slane %v357, 1
      %v1510 = vrot.slane %v353, 2
      %v1511 = vor.u32 %v1509, %v1510
      %v1512 = vrot.slane %v365, 1
      %v1513 = vrot.slane %v361, 2
      %v1514 = vor.u32 %v1512, %v1513
      %v1515 = vsel %vm1508, %v1511, %v1514
      %v1516 = vrot.slane %v373, 1
      %v1517 = vrot.slane %v369, 2
      %v1518 = vor.u32 %v1516, %v1517
      %v1519 = vsel %vm1508, %v1514, %v1518
      %v1520 = vrot.slane %v381, 1
      %v1521 = vrot.slane %v377, 2
      %v1522 = vor.u32 %v1520, %v1521
      %v1523 = vsel %vm1508, %v1518, %v1522
      %v1524 = vrot.slane %v389, 1
      %v1525 = vrot.slane %v385, 2
      %v1526 = vor.u32 %v1524, %v1525
      %v1527 = vsel %vm1508, %v1522, %v1526
      %v1528 = vrot.slane %v397, 1
      %v1529 = vrot.slane %v393, 2
      %v1530 = vor.u32 %v1528, %v1529
      %v1531 = vsel %vm1508, %v1526, %v1530
      %v1532 = vrot.slane %v405, 1
      %v1533 = vrot.slane %v401, 2
      %v1534 = vor.u32 %v1532, %v1533
      %v1535 = vsel %vm1508, %v1530, %v1534
      %v1536 = vrot.slane %v413, 1
      %v1537 = vrot.slane %v409, 2
      %v1538 = vor.u32 %v1536, %v1537
      %v1539 = vsel %vm1508, %v1534, %v1538
      %v1540 = vrot.slane %v421, 1
      %v1541 = vrot.slane %v417, 2
      %v1542 = vor.u32 %v1540, %v1541
      %v1543 = vsel %vm1508, %v1538, %v1542
      %v1544 = vrot.slane %v429, 1
      %v1545 = vrot.slane %v425, 2
      %v1546 = vor.u32 %v1544, %v1545
      %v1547 = vsel %vm1508, %v1542, %v1546
      %v1548 = vrot.slane %v437, 1
      %v1549 = vrot.slane %v433, 2
      %v1550 = vor.u32 %v1548, %v1549
      %v1551 = vsel %vm1508, %v1546, %v1550
      %v1552 = vrot.slane %v445, 1
      %v1553 = vrot.slane %v441, 2
      %v1554 = vor.u32 %v1552, %v1553
      %v1555 = vsel %vm1508, %v1550, %v1554
      %v1556 = vrot.slane %v453, 1
      %v1557 = vrot.slane %v449, 2
      %v1558 = vor.u32 %v1556, %v1557
      %v1559 = vsel %vm1508, %v1554, %v1558
      %v1560 = vrot.slane %v461, 1
      %v1561 = vrot.slane %v457, 2
      %v1562 = vor.u32 %v1560, %v1561
      %v1563 = vsel %vm1508, %v1558, %v1562
      %v1564 = vrot.slane %v469, 1
      %v1565 = vrot.slane %v465, 2
      %v1566 = vor.u32 %v1564, %v1565
      %v1567 = vsel %vm1508, %v1562, %v1566
      %v1568 = vrot.slane %v477, 1
      %v1569 = vrot.slane %v473, 2
      %v1570 = vor.u32 %v1568, %v1569
      %v1571 = vsel %vm1508, %v1566, %v1570
      %v1572 = vrot.slane %v485, 1
      %v1573 = vrot.slane %v481, 2
      %v1574 = vor.u32 %v1572, %v1573
      %v1575 = vsel %vm1508, %v1570, %v1574
      %v1577 = vshrl.u32 %v1274, 16
      %v1579 = vrot.slane %v1577, 1
      %v1580 = vshll.u32 %v1274, 16
      %v1582 = vrot.slane %v1580, 2
      %v1583 = vor.u32 %v1579, %v1582
      %v1584 = vsel %vm1508, %v1574, %v1583
      %v1586 = vshrl.u32 %v1275, 16
      %v1588 = vrot.slane %v1586, 1
      %v1589 = vshll.u32 %v1275, 16
      %v1591 = vrot.slane %v1589, 2
      %v1592 = vor.u32 %v1588, %v1591
      %v1593 = vsel %vm1508, %v1583, %v1592
      %v1595 = vsel %vm493, %v1515, 0
      %v1598 = vsel %vm493, %v1519, 0
      %v1601 = vsel %vm493, %v1523, 0
      %v1604 = vsel %vm493, %v1527, 0
      %v1607 = vsel %vm493, %v1531, 0
      %v1610 = vsel %vm493, %v1535, 0
      %v1613 = vsel %vm493, %v1539, 0
      %v1616 = vsel %vm493, %v1543, 0
      %v1619 = vsel %vm493, %v1547, 0
      %v1622 = vsel %vm493, %v1551, 0
      %v1625 = vsel %vm493, %v1555, 0
      %v1628 = vsel %vm493, %v1559, 0
      %v1631 = vsel %vm493, %v1563, 0
      %v1634 = vsel %vm493, %v1567, 0
      %v1637 = vsel %vm493, %v1571, 0
      %v1640 = vsel %vm493, %v1575, 0
      %v1643 = vsel %vm493, %v1584, 0
      %v1646 = vsel %vm493, %v1593, 0
      %v1649 = vsel %vm548, %v1507, 0
      %1651 = vmatprep.subr.bf16.mxu0 0
      %1652 = vmatpush1.bf16.msra.mxu0 %v1649
      %1653 = vmatprep.subr.bf16.mxu0 0
      %1654 = vmatpush1.bf16.msra.mxu0 0
      %1655 = vmatprep.subr.bf16.mxu0 0
      %1656 = vmatpush1.bf16.msra.mxu0 0
      %1657 = vmatprep.subr.bf16.mxu0 0
      %1658 = vmatpush1.bf16.msra.mxu0 0
      %1659 = vmatprep.subr.bf16.mxu0 0
      %1660 = vmatpush1.bf16.msra.mxu0 0
      %1661 = vmatprep.subr.bf16.mxu0 0
      %1662 = vmatpush1.bf16.msra.mxu0 0
      %1663 = vmatprep.subr.bf16.mxu0 0
      %1664 = vmatpush1.bf16.msra.mxu0 0
      %1665 = vmatprep.subr.bf16.mxu0 0
      %1666 = vmatpush1.bf16.msra.mxu0 0
      %1667 = vmatprep.subr.bf16.mxu0 0
      %1668 = vmatpush1.bf16.msra.mxu0 0
      %1669 = vmatprep.subr.bf16.mxu0 0
      %1670 = vmatpush1.bf16.msra.mxu0 0
      %1671 = vmatprep.subr.bf16.mxu0 0
      %1672 = vmatpush1.bf16.msra.mxu0 0
      %1673 = vmatprep.subr.bf16.mxu0 0
      %1674 = vmatpush1.bf16.msra.mxu0 0
      %1675 = vmatprep.subr.bf16.mxu0 0
      %1676 = vmatpush1.bf16.msra.mxu0 0
      %1677 = vmatprep.subr.bf16.mxu0 0
      %1678 = vmatpush1.bf16.msra.mxu0 0
      %1679 = vmatprep.subr.bf16.mxu0 0
      %1680 = vmatpush1.bf16.msra.mxu0 0
      %1681 = vmatprep.subr.bf16.mxu0 0
      %1682 = vmatpush1.bf16.msra.mxu0 0
      %1683 = vmatprep.mubr.bf16.mxu0 0
      %1684 = vmatmul.mubr.bf16.gmra.mrb[0].mxu0 %v1595
      %v1685 = vpop.f32.mrb[0].mxu0
      %v1686 = vadd.f32 0.0, %v1685
      %v1687 = vpop.f32.mrb[0].mxu0
      %v1688 = vpop.f32.mrb[0].mxu0
      %v1689 = vadd.f32 0.0, %v1688
      %v1690 = vpop.f32.mrb[0].mxu0
      %1691 = vmatprep.mubr.bf16.mxu0 0
      %1692 = vmatmul.mubr.bf16.gmra.mrb[0].mxu0 %v1598
      %v1693 = vpop.f32.mrb[0].mxu0
      %v1694 = vadd.f32 0.0, %v1693
      %v1695 = vpop.f32.mrb[0].mxu0
      %v1696 = vpop.f32.mrb[0].mxu0
      %v1697 = vadd.f32 0.0, %v1696
      %v1698 = vpop.f32.mrb[0].mxu0
      %1699 = vmatprep.mubr.bf16.mxu0 0
      %1700 = vmatmul.mubr.bf16.gmra.mrb[0].mxu0 %v1601
      %v1701 = vpop.f32.mrb[0].mxu0
      %v1702 = vadd.f32 0.0, %v1701
      %v1703 = vpop.f32.mrb[0].mxu0
      %v1704 = vpop.f32.mrb[0].mxu0
      %v1705 = vadd.f32 0.0, %v1704
      %v1706 = vpop.f32.mrb[0].mxu0
      %1707 = vmatprep.mubr.bf16.mxu0 0
      %1708 = vmatmul.mubr.bf16.gmra.mrb[0].mxu0 %v1604
      %v1709 = vpop.f32.mrb[0].mxu0
      %v1710 = vadd.f32 0.0, %v1709
      %v1711 = vpop.f32.mrb[0].mxu0
      %v1712 = vpop.f32.mrb[0].mxu0
      %v1713 = vadd.f32 0.0, %v1712
      %v1714 = vpop.f32.mrb[0].mxu0
      %1715 = vmatprep.mubr.bf16.mxu0 0
      %1716 = vmatmul.mubr.bf16.gmra.mrb[0].mxu0 %v1607
      %v1717 = vpop.f32.mrb[0].mxu0
      %v1718 = vadd.f32 0.0, %v1717
      %v1719 = vpop.f32.mrb[0].mxu0
      %v1720 = vpop.f32.mrb[0].mxu0
      %v1721 = vadd.f32 0.0, %v1720
      %v1722 = vpop.f32.mrb[0].mxu0
      %1723 = vmatprep.mubr.bf16.mxu0 0
      %1724 = vmatmul.mubr.bf16.gmra.mrb[0].mxu0 %v1610
      %v1725 = vpop.f32.mrb[0].mxu0
      %v1726 = vadd.f32 0.0, %v1725
      %v1727 = vpop.f32.mrb[0].mxu0
      %v1728 = vpop.f32.mrb[0].mxu0
      %v1729 = vadd.f32 0.0, %v1728
      %v1730 = vpop.f32.mrb[0].mxu0
      %1731 = vmatprep.mubr.bf16.mxu0 0
      %1732 = vmatmul.mubr.bf16.gmra.mrb[0].mxu0 %v1613
      %v1733 = vpop.f32.mrb[0].mxu0
      %v1734 = vadd.f32 0.0, %v1733
      %v1735 = vpop.f32.mrb[0].mxu0
      %v1736 = vpop.f32.mrb[0].mxu0
      %v1737 = vadd.f32 0.0, %v1736
      %v1738 = vpop.f32.mrb[0].mxu0
      %1739 = vmatprep.mubr.bf16.mxu0 0
      %1740 = vmatmul.mubr.bf16.gmra.mrb[0].mxu0 %v1616
      %v1741 = vpop.f32.mrb[0].mxu0
      %v1742 = vadd.f32 0.0, %v1741
      %v1743 = vpop.f32.mrb[0].mxu0
      %v1744 = vpop.f32.mrb[0].mxu0
      %v1745 = vadd.f32 0.0, %v1744
      %v1746 = vpop.f32.mrb[0].mxu0
      %1747 = vmatprep.mubr.bf16.mxu0 0
      %1748 = vmatmul.mubr.bf16.gmra.mrb[0].mxu0 %v1619
      %v1749 = vpop.f32.mrb[0].mxu0
      %v1750 = vadd.f32 0.0, %v1749
      %v1751 = vpop.f32.mrb[0].mxu0
      %v1752 = vpop.f32.mrb[0].mxu0
      %v1753 = vadd.f32 0.0, %v1752
      %v1754 = vpop.f32.mrb[0].mxu0
      %1755 = vmatprep.mubr.bf16.mxu0 0
      %1756 = vmatmul.mubr.bf16.gmra.mrb[0].mxu0 %v1622
      %v1757 = vpop.f32.mrb[0].mxu0
      %v1758 = vadd.f32 0.0, %v1757
      %v1759 = vpop.f32.mrb[0].mxu0
      %v1760 = vpop.f32.mrb[0].mxu0
      %v1761 = vadd.f32 0.0, %v1760
      %v1762 = vpop.f32.mrb[0].mxu0
      %1763 = vmatprep.mubr.bf16.mxu0 0
      %1764 = vmatmul.mubr.bf16.gmra.mrb[0].mxu0 %v1625
      %v1765 = vpop.f32.mrb[0].mxu0
      %v1766 = vadd.f32 0.0, %v1765
      %v1767 = vpop.f32.mrb[0].mxu0
      %v1768 = vpop.f32.mrb[0].mxu0
      %v1769 = vadd.f32 0.0, %v1768
      %v1770 = vpop.f32.mrb[0].mxu0
      %1771 = vmatprep.mubr.bf16.mxu0 0
      %1772 = vmatmul.mubr.bf16.gmra.mrb[0].mxu0 %v1628
      %v1773 = vpop.f32.mrb[0].mxu0
      %v1774 = vadd.f32 0.0, %v1773
      %v1775 = vpop.f32.mrb[0].mxu0
      %v1776 = vpop.f32.mrb[0].mxu0
      %v1777 = vadd.f32 0.0, %v1776
      %v1778 = vpop.f32.mrb[0].mxu0
      %1779 = vmatprep.mubr.bf16.mxu0 0
      %1780 = vmatmul.mubr.bf16.gmra.mrb[0].mxu0 %v1631
      %v1781 = vpop.f32.mrb[0].mxu0
      %v1782 = vadd.f32 0.0, %v1781
      %v1783 = vpop.f32.mrb[0].mxu0
      %v1784 = vpop.f32.mrb[0].mxu0
      %v1785 = vadd.f32 0.0, %v1784
      %v1786 = vpop.f32.mrb[0].mxu0
      %1787 = vmatprep.mubr.bf16.mxu0 0
      %1788 = vmatmul.mubr.bf16.gmra.mrb[0].mxu0 %v1634
      %v1789 = vpop.f32.mrb[0].mxu0
      %v1790 = vadd.f32 0.0, %v1789
      %v1791 = vpop.f32.mrb[0].mxu0
      %v1792 = vpop.f32.mrb[0].mxu0
      %v1793 = vadd.f32 0.0, %v1792
      %v1794 = vpop.f32.mrb[0].mxu0
      %1795 = vmatprep.mubr.bf16.mxu0 0
      %1796 = vmatmul.mubr.bf16.gmra.mrb[0].mxu0 %v1637
      %v1797 = vpop.f32.mrb[0].mxu0
      %v1798 = vadd.f32 0.0, %v1797
      %v1799 = vpop.f32.mrb[0].mxu0
      %v1800 = vpop.f32.mrb[0].mxu0
      %v1801 = vadd.f32 0.0, %v1800
      %v1802 = vpop.f32.mrb[0].mxu0
      %1803 = vmatprep.mubr.bf16.mxu0 0
      %1804 = vmatmul.mubr.bf16.gmra.mrb[0].mxu0 %v1640
      %v1805 = vpop.f32.mrb[0].mxu0
      %v1806 = vadd.f32 0.0, %v1805
      %v1807 = vpop.f32.mrb[0].mxu0
      %v1808 = vpop.f32.mrb[0].mxu0
      %v1809 = vadd.f32 0.0, %v1808
      %v1810 = vpop.f32.mrb[0].mxu0
      %1811 = vmatprep.mubr.bf16.mxu0 0
      %1812 = vmatmul.mubr.bf16.gmra.mrb[0].mxu0 %v1643
      %v1813 = vpop.f32.mrb[0].mxu0
      %v1814 = vadd.f32 0.0, %v1813
      %v1815 = vpop.f32.mrb[0].mxu0
      %v1816 = vpop.f32.mrb[0].mxu0
      %v1817 = vadd.f32 0.0, %v1816
      %v1818 = vpop.f32.mrb[0].mxu0
      %1819 = vmatprep.mubr.bf16.mxu0 0
      %1820 = vmatmul.mubr.bf16.gmra.mrb[0].mxu0 %v1646
      %v1821 = vpop.f32.mrb[0].mxu0
      %v1822 = vadd.f32 0.0, %v1821
      %v1823 = vpop.f32.mrb[0].mxu0
      %v1824 = vpop.f32.mrb[0].mxu0
      %v1825 = vadd.f32 0.0, %v1824
      %v1826 = vpop.f32.mrb[0].mxu0
      %1827 = vdwg.mxu0
      %v1828 = vadd.f32 %v1470, %v1686
      %v1829 = vadd.f32 %v1471, %v1689
      %v1830 = vadd.f32 %v1472, %v1694
      %v1831 = vadd.f32 %v1473, %v1697
      %v1832 = vadd.f32 %v1474, %v1702
      %v1833 = vadd.f32 %v1475, %v1705
      %v1834 = vadd.f32 %v1476, %v1710
      %v1835 = vadd.f32 %v1477, %v1713
      %v1836 = vadd.f32 %v1478, %v1718
      %v1837 = vadd.f32 %v1479, %v1721
      %v1838 = vadd.f32 %v1480, %v1726
      %v1839 = vadd.f32 %v1481, %v1729
      %v1840 = vadd.f32 %v1482, %v1734
      %v1841 = vadd.f32 %v1483, %v1737
      %v1842 = vadd.f32 %v1484, %v1742
      %v1843 = vadd.f32 %v1485, %v1745
      %v1844 = vadd.f32 %v1486, %v1750
      %v1845 = vadd.f32 %v1487, %v1753
      %v1846 = vadd.f32 %v1488, %v1758
      %v1847 = vadd.f32 %v1489, %v1761
      %v1848 = vadd.f32 %v1490, %v1766
      %v1849 = vadd.f32 %v1491, %v1769
      %v1850 = vadd.f32 %v1492, %v1774
      %v1851 = vadd.f32 %v1493, %v1777
      %v1852 = vadd.f32 %v1494, %v1782
      %v1853 = vadd.f32 %v1495, %v1785
      %v1854 = vadd.f32 %v1496, %v1790
      %v1855 = vadd.f32 %v1497, %v1793
      %v1856 = vadd.f32 %v1498, %v1798
      %v1857 = vadd.f32 %v1499, %v1801
      %v1858 = vadd.f32 %v1500, %v1806
      %v1859 = vadd.f32 %v1501, %v1809
      %v1860 = vadd.f32 %v1502, %v1814
      %v1861 = vadd.f32 %v1503, %v1817
      %v1862 = vadd.f32 %v1504, %v1822
      %v1863 = vadd.f32 %v1505, %v1825
      %s1864 = scalar_lea.vmem %s2, 10
      %v1865 = vld [vmem:[%s1864] sm:$0x3]
      %vm1866 = vcmask 1045504
      %v1867 = vrot.slane %v323, 2
      %v1868 = vrot.slane %v324, 2
      %v1869 = vsel %vm1866, %v1867, %v1868
      %v1870 = vrot.slane %v325, 2
      %v1871 = vsel %vm1866, %v1868, %v1870
      %v1872 = vrot.slane %v326, 2
      %v1873 = vsel %vm1866, %v1870, %v1872
      %v1874 = vrot.slane %v327, 2
      %v1875 = vsel %vm1866, %v1872, %v1874
      %v1876 = vrot.slane %v328, 2
      %v1877 = vsel %vm1866, %v1874, %v1876
      %v1878 = vrot.slane %v329, 2
      %v1879 = vsel %vm1866, %v1876, %v1878
      %v1880 = vrot.slane %v330, 2
      %v1881 = vsel %vm1866, %v1878, %v1880
      %v1882 = vrot.slane %v331, 2
      %v1883 = vsel %vm1866, %v1880, %v1882
      %v1884 = vrot.slane %v332, 2
      %v1885 = vsel %vm1866, %v1882, %v1884
      %v1886 = vrot.slane %v333, 2
      %v1887 = vsel %vm1866, %v1884, %v1886
      %v1888 = vrot.slane %v334, 2
      %v1889 = vsel %vm1866, %v1886, %v1888
      %v1890 = vrot.slane %v335, 2
      %v1891 = vsel %vm1866, %v1888, %v1890
      %v1892 = vrot.slane %v336, 2
      %v1893 = vsel %vm1866, %v1890, %v1892
      %v1894 = vrot.slane %v337, 2
      %v1895 = vsel %vm1866, %v1892, %v1894
      %v1896 = vrot.slane %v338, 2
      %v1897 = vsel %vm1866, %v1894, %v1896
      %v1898 = vrot.slane %v339, 2
      %v1899 = vsel %vm1866, %v1896, %v1898
      %v1900 = vrot.slane %v1274, 2
      %v1901 = vsel %vm1866, %v1898, %v1900
      %v1902 = vrot.slane %v1275, 2
      %v1903 = vsel %vm1866, %v1900, %v1902
      %v1905 = vsel %vm493, %v1869, 0
      %v1908 = vsel %vm493, %v1871, 0
      %v1911 = vsel %vm493, %v1873, 0
      %v1914 = vsel %vm493, %v1875, 0
      %v1917 = vsel %vm493, %v1877, 0
      %v1920 = vsel %vm493, %v1879, 0
      %v1923 = vsel %vm493, %v1881, 0
      %v1926 = vsel %vm493, %v1883, 0
      %v1929 = vsel %vm493, %v1885, 0
      %v1932 = vsel %vm493, %v1887, 0
      %v1935 = vsel %vm493, %v1889, 0
      %v1938 = vsel %vm493, %v1891, 0
      %v1941 = vsel %vm493, %v1893, 0
      %v1944 = vsel %vm493, %v1895, 0
      %v1947 = vsel %vm493, %v1897, 0
      %v1950 = vsel %vm493, %v1899, 0
      %v1953 = vsel %vm493, %v1901, 0
      %v1956 = vsel %vm493, %v1903, 0
      %v1959 = vsel %vm548, %v1865, 0
      %1961 = vmatprep.subr.bf16.mxu0 0
      %1962 = vmatpush1.bf16.msra.mxu0 %v1959
      %1963 = vmatprep.subr.bf16.mxu0 0
      %1964 = vmatpush1.bf16.msra.mxu0 0
      %1965 = vmatprep.subr.bf16.mxu0 0
      %1966 = vmatpush1.bf16.msra.mxu0 0
      %1967 = vmatprep.subr.bf16.mxu0 0
      %1968 = vmatpush1.bf16.msra.mxu0 0
      %1969 = vmatprep.subr.bf16.mxu0 0
      %1970 = vmatpush1.bf16.msra.mxu0 0
      %1971 = vmatprep.subr.bf16.mxu0 0
      %1972 = vmatpush1.bf16.msra.mxu0 0
      %1973 = vmatprep.subr.bf16.mxu0 0
      %1974 = vmatpush1.bf16.msra.mxu0 0
      %1975 = vmatprep.subr.bf16.mxu0 0
      %1976 = vmatpush1.bf16.msra.mxu0 0
      %1977 = vmatprep.subr.bf16.mxu0 0
      %1978 = vmatpush1.bf16.msra.mxu0 0
      %1979 = vmatprep.subr.bf16.mxu0 0
      %1980 = vmatpush1.bf16.msra.mxu0 0
      %1981 = vmatprep.subr.bf16.mxu0 0
      %1982 = vmatpush1.bf16.msra.mxu0 0
      %1983 = vmatprep.subr.bf16.mxu0 0
      %1984 = vmatpush1.bf16.msra.mxu0 0
      %1985 = vmatprep.subr.bf16.mxu0 0
      %1986 = vmatpush1.bf16.msra.mxu0 0
      %1987 = vmatprep.subr.bf16.mxu0 0
      %1988 = vmatpush1.bf16.msra.mxu0 0
      %1989 = vmatprep.subr.bf16.mxu0 0
      %1990 = vmatpush1.bf16.msra.mxu0 0
      %1991 = vmatprep.subr.bf16.mxu0 0
      %1992 = vmatpush1.bf16.msra.mxu0 0
      %1993 = vmatprep.mubr.bf16.mxu0 0
      %1994 = vmatmul.mubr.bf16.gmra.mrb[0].mxu0 %v1905
      %v1995 = vpop.f32.mrb[0].mxu0
      %v1996 = vadd.f32 0.0, %v1995
      %v1997 = vpop.f32.mrb[0].mxu0
      %v1998 = vpop.f32.mrb[0].mxu0
      %v1999 = vadd.f32 0.0, %v1998
      %v2000 = vpop.f32.mrb[0].mxu0
      %2001 = vmatprep.mubr.bf16.mxu0 0
      %2002 = vmatmul.mubr.bf16.gmra.mrb[0].mxu0 %v1908
      %v2003 = vpop.f32.mrb[0].mxu0
      %v2004 = vadd.f32 0.0, %v2003
      %v2005 = vpop.f32.mrb[0].mxu0
      %v2006 = vpop.f32.mrb[0].mxu0
      %v2007 = vadd.f32 0.0, %v2006
      %v2008 = vpop.f32.mrb[0].mxu0
      %2009 = vmatprep.mubr.bf16.mxu0 0
      %2010 = vmatmul.mubr.bf16.gmra.mrb[0].mxu0 %v1911
      %v2011 = vpop.f32.mrb[0].mxu0
      %v2012 = vadd.f32 0.0, %v2011
      %v2013 = vpop.f32.mrb[0].mxu0
      %v2014 = vpop.f32.mrb[0].mxu0
      %v2015 = vadd.f32 0.0, %v2014
      %v2016 = vpop.f32.mrb[0].mxu0
      %2017 = vmatprep.mubr.bf16.mxu0 0
      %2018 = vmatmul.mubr.bf16.gmra.mrb[0].mxu0 %v1914
      %v2019 = vpop.f32.mrb[0].mxu0
      %v2020 = vadd.f32 0.0, %v2019
      %v2021 = vpop.f32.mrb[0].mxu0
      %v2022 = vpop.f32.mrb[0].mxu0
      %v2023 = vadd.f32 0.0, %v2022
      %v2024 = vpop.f32.mrb[0].mxu0
      %2025 = vmatprep.mubr.bf16.mxu0 0
      %2026 = vmatmul.mubr.bf16.gmra.mrb[0].mxu0 %v1917
      %v2027 = vpop.f32.mrb[0].mxu0
      %v2028 = vadd.f32 0.0, %v2027
      %v2029 = vpop.f32.mrb[0].mxu0
      %v2030 = vpop.f32.mrb[0].mxu0
      %v2031 = vadd.f32 0.0, %v2030
      %v2032 = vpop.f32.mrb[0].mxu0
      %2033 = vmatprep.mubr.bf16.mxu0 0
      %2034 = vmatmul.mubr.bf16.gmra.mrb[0].mxu0 %v1920
      %v2035 = vpop.f32.mrb[0].mxu0
      %v2036 = vadd.f32 0.0, %v2035
      %v2037 = vpop.f32.mrb[0].mxu0
      %v2038 = vpop.f32.mrb[0].mxu0
      %v2039 = vadd.f32 0.0, %v2038
      %v2040 = vpop.f32.mrb[0].mxu0
      %2041 = vmatprep.mubr.bf16.mxu0 0
      %2042 = vmatmul.mubr.bf16.gmra.mrb[0].mxu0 %v1923
      %v2043 = vpop.f32.mrb[0].mxu0
      %v2044 = vadd.f32 0.0, %v2043
      %v2045 = vpop.f32.mrb[0].mxu0
      %v2046 = vpop.f32.mrb[0].mxu0
      %v2047 = vadd.f32 0.0, %v2046
      %v2048 = vpop.f32.mrb[0].mxu0
      %2049 = vmatprep.mubr.bf16.mxu0 0
      %2050 = vmatmul.mubr.bf16.gmra.mrb[0].mxu0 %v1926
      %v2051 = vpop.f32.mrb[0].mxu0
      %v2052 = vadd.f32 0.0, %v2051
      %v2053 = vpop.f32.mrb[0].mxu0
      %v2054 = vpop.f32.mrb[0].mxu0
      %v2055 = vadd.f32 0.0, %v2054
      %v2056 = vpop.f32.mrb[0].mxu0
      %2057 = vmatprep.mubr.bf16.mxu0 0
      %2058 = vmatmul.mubr.bf16.gmra.mrb[0].mxu0 %v1929
      %v2059 = vpop.f32.mrb[0].mxu0
      %v2060 = vadd.f32 0.0, %v2059
      %v2061 = vpop.f32.mrb[0].mxu0
      %v2062 = vpop.f32.mrb[0].mxu0
      %v2063 = vadd.f32 0.0, %v2062
      %v2064 = vpop.f32.mrb[0].mxu0
      %2065 = vmatprep.mubr.bf16.mxu0 0
      %2066 = vmatmul.mubr.bf16.gmra.mrb[0].mxu0 %v1932
      %v2067 = vpop.f32.mrb[0].mxu0
      %v2068 = vadd.f32 0.0, %v2067
      %v2069 = vpop.f32.mrb[0].mxu0
      %v2070 = vpop.f32.mrb[0].mxu0
      %v2071 = vadd.f32 0.0, %v2070
      %v2072 = vpop.f32.mrb[0].mxu0
      %2073 = vmatprep.mubr.bf16.mxu0 0
      %2074 = vmatmul.mubr.bf16.gmra.mrb[0].mxu0 %v1935
      %v2075 = vpop.f32.mrb[0].mxu0
      %v2076 = vadd.f32 0.0, %v2075
      %v2077 = vpop.f32.mrb[0].mxu0
      %v2078 = vpop.f32.mrb[0].mxu0
      %v2079 = vadd.f32 0.0, %v2078
      %v2080 = vpop.f32.mrb[0].mxu0
      %2081 = vmatprep.mubr.bf16.mxu0 0
      %2082 = vmatmul.mubr.bf16.gmra.mrb[0].mxu0 %v1938
      %v2083 = vpop.f32.mrb[0].mxu0
      %v2084 = vadd.f32 0.0, %v2083
      %v2085 = vpop.f32.mrb[0].mxu0
      %v2086 = vpop.f32.mrb[0].mxu0
      %v2087 = vadd.f32 0.0, %v2086
      %v2088 = vpop.f32.mrb[0].mxu0
      %2089 = vmatprep.mubr.bf16.mxu0 0
      %2090 = vmatmul.mubr.bf16.gmra.mrb[0].mxu0 %v1941
      %v2091 = vpop.f32.mrb[0].mxu0
      %v2092 = vadd.f32 0.0, %v2091
      %v2093 = vpop.f32.mrb[0].mxu0
      %v2094 = vpop.f32.mrb[0].mxu0
      %v2095 = vadd.f32 0.0, %v2094
      %v2096 = vpop.f32.mrb[0].mxu0
      %2097 = vmatprep.mubr.bf16.mxu0 0
      %2098 = vmatmul.mubr.bf16.gmra.mrb[0].mxu0 %v1944
      %v2099 = vpop.f32.mrb[0].mxu0
      %v2100 = vadd.f32 0.0, %v2099
      %v2101 = vpop.f32.mrb[0].mxu0
      %v2102 = vpop.f32.mrb[0].mxu0
      %v2103 = vadd.f32 0.0, %v2102
      %v2104 = vpop.f32.mrb[0].mxu0
      %2105 = vmatprep.mubr.bf16.mxu0 0
      %2106 = vmatmul.mubr.bf16.gmra.mrb[0].mxu0 %v1947
      %v2107 = vpop.f32.mrb[0].mxu0
      %v2108 = vadd.f32 0.0, %v2107
      %v2109 = vpop.f32.mrb[0].mxu0
      %v2110 = vpop.f32.mrb[0].mxu0
      %v2111 = vadd.f32 0.0, %v2110
      %v2112 = vpop.f32.mrb[0].mxu0
      %2113 = vmatprep.mubr.bf16.mxu0 0
      %2114 = vmatmul.mubr.bf16.gmra.mrb[0].mxu0 %v1950
      %v2115 = vpop.f32.mrb[0].mxu0
      %v2116 = vadd.f32 0.0, %v2115
      %v2117 = vpop.f32.mrb[0].mxu0
      %v2118 = vpop.f32.mrb[0].mxu0
      %v2119 = vadd.f32 0.0, %v2118
      %v2120 = vpop.f32.mrb[0].mxu0
      %2121 = vmatprep.mubr.bf16.mxu0 0
      %2122 = vmatmul.mubr.bf16.gmra.mrb[0].mxu0 %v1953
      %v2123 = vpop.f32.mrb[0].mxu0
      %v2124 = vadd.f32 0.0, %v2123
      %v2125 = vpop.f32.mrb[0].mxu0
      %v2126 = vpop.f32.mrb[0].mxu0
      %v2127 = vadd.f32 0.0, %v2126
      %v2128 = vpop.f32.mrb[0].mxu0
      %2129 = vmatprep.mubr.bf16.mxu0 0
      %2130 = vmatmul.mubr.bf16.gmra.mrb[0].mxu0 %v1956
      %v2131 = vpop.f32.mrb[0].mxu0
      %v2132 = vadd.f32 0.0, %v2131
      %v2133 = vpop.f32.mrb[0].mxu0
      %v2134 = vpop.f32.mrb[0].mxu0
      %v2135 = vadd.f32 0.0, %v2134
      %v2136 = vpop.f32.mrb[0].mxu0
      %2137 = vdwg.mxu0
      %v2138 = vadd.f32 %v1828, %v1996
      %v2139 = vadd.f32 %v1829, %v1999
      %v2140 = vadd.f32 %v1830, %v2004
      %v2141 = vadd.f32 %v1831, %v2007
      %v2142 = vadd.f32 %v1832, %v2012
      %v2143 = vadd.f32 %v1833, %v2015
      %v2144 = vadd.f32 %v1834, %v2020
      %v2145 = vadd.f32 %v1835, %v2023
      %v2146 = vadd.f32 %v1836, %v2028
      %v2147 = vadd.f32 %v1837, %v2031
      %v2148 = vadd.f32 %v1838, %v2036
      %v2149 = vadd.f32 %v1839, %v2039
      %v2150 = vadd.f32 %v1840, %v2044
      %v2151 = vadd.f32 %v1841, %v2047
      %v2152 = vadd.f32 %v1842, %v2052
      %v2153 = vadd.f32 %v1843, %v2055
      %v2154 = vadd.f32 %v1844, %v2060
      %v2155 = vadd.f32 %v1845, %v2063
      %v2156 = vadd.f32 %v1846, %v2068
      %v2157 = vadd.f32 %v1847, %v2071
      %v2158 = vadd.f32 %v1848, %v2076
      %v2159 = vadd.f32 %v1849, %v2079
      %v2160 = vadd.f32 %v1850, %v2084
      %v2161 = vadd.f32 %v1851, %v2087
      %v2162 = vadd.f32 %v1852, %v2092
      %v2163 = vadd.f32 %v1853, %v2095
      %v2164 = vadd.f32 %v1854, %v2100
      %v2165 = vadd.f32 %v1855, %v2103
      %v2166 = vadd.f32 %v1856, %v2108
      %v2167 = vadd.f32 %v1857, %v2111
      %v2168 = vadd.f32 %v1858, %v2116
      %v2169 = vadd.f32 %v1859, %v2119
      %v2170 = vadd.f32 %v1860, %v2124
      %v2171 = vadd.f32 %v1861, %v2127
      %v2172 = vadd.f32 %v1862, %v2132
      %v2173 = vadd.f32 %v1863, %v2135
      %v2174 = vpack.c.bf16 %v320, %v319
      %v2175 = vpack.c.bf16 %v321, %v321
      %s2176 = scalar_lea.vmem %s2, 12
      %v2177 = vld [vmem:[%s2176] sm:$0x3]
      %v2180 = vrot.slane %v2174, 2
      %v2181 = vsel %vm1866, %v1900, %v2180
      %v2182 = vrot.slane %v2175, 2
      %v2183 = vsel %vm1866, %v2180, %v2182
      %v2185 = vsel %vm493, %v2181, 0
      %v2188 = vsel %vm493, %v2183, 0
      %v2191 = vsel %vm548, %v2177, 0
      %2193 = vmatprep.subr.bf16.mxu0 0
      %2194 = vmatpush1.bf16.msra.mxu0 %v2191
      %2195 = vmatprep.subr.bf16.mxu0 0
      %2196 = vmatpush1.bf16.msra.mxu0 0
      %2197 = vmatprep.subr.bf16.mxu0 0
      %2198 = vmatpush1.bf16.msra.mxu0 0
      %2199 = vmatprep.subr.bf16.mxu0 0
      %2200 = vmatpush1.bf16.msra.mxu0 0
      %2201 = vmatprep.subr.bf16.mxu0 0
      %2202 = vmatpush1.bf16.msra.mxu0 0
      %2203 = vmatprep.subr.bf16.mxu0 0
      %2204 = vmatpush1.bf16.msra.mxu0 0
      %2205 = vmatprep.subr.bf16.mxu0 0
      %2206 = vmatpush1.bf16.msra.mxu0 0
      %2207 = vmatprep.subr.bf16.mxu0 0
      %2208 = vmatpush1.bf16.msra.mxu0 0
      %2209 = vmatprep.subr.bf16.mxu0 0
      %2210 = vmatpush1.bf16.msra.mxu0 0
      %2211 = vmatprep.subr.bf16.mxu0 0
      %2212 = vmatpush1.bf16.msra.mxu0 0
      %2213 = vmatprep.subr.bf16.mxu0 0
      %2214 = vmatpush1.bf16.msra.mxu0 0
      %2215 = vmatprep.subr.bf16.mxu0 0
      %2216 = vmatpush1.bf16.msra.mxu0 0
      %2217 = vmatprep.subr.bf16.mxu0 0
      %2218 = vmatpush1.bf16.msra.mxu0 0
      %2219 = vmatprep.subr.bf16.mxu0 0
      %2220 = vmatpush1.bf16.msra.mxu0 0
      %2221 = vmatprep.subr.bf16.mxu0 0
      %2222 = vmatpush1.bf16.msra.mxu0 0
      %2223 = vmatprep.subr.bf16.mxu0 0
      %2224 = vmatpush1.bf16.msra.mxu0 0
      %2225 = vmatprep.mubr.bf16.mxu0 0
      %2226 = vmatmul.mubr.bf16.gmra.mrb[0].mxu0 %v1908
      %v2227 = vpop.f32.mrb[0].mxu0
      %v2228 = vadd.f32 0.0, %v2227
      %v2229 = vpop.f32.mrb[0].mxu0
      %v2230 = vpop.f32.mrb[0].mxu0
      %v2231 = vadd.f32 0.0, %v2230
      %v2232 = vpop.f32.mrb[0].mxu0
      %2233 = vmatprep.mubr.bf16.mxu0 0
      %2234 = vmatmul.mubr.bf16.gmra.mrb[0].mxu0 %v1911
      %v2235 = vpop.f32.mrb[0].mxu0
      %v2236 = vadd.f32 0.0, %v2235
      %v2237 = vpop.f32.mrb[0].mxu0
      %v2238 = vpop.f32.mrb[0].mxu0
      %v2239 = vadd.f32 0.0, %v2238
      %v2240 = vpop.f32.mrb[0].mxu0
      %2241 = vmatprep.mubr.bf16.mxu0 0
      %2242 = vmatmul.mubr.bf16.gmra.mrb[0].mxu0 %v1914
      %v2243 = vpop.f32.mrb[0].mxu0
      %v2244 = vadd.f32 0.0, %v2243
      %v2245 = vpop.f32.mrb[0].mxu0
      %v2246 = vpop.f32.mrb[0].mxu0
      %v2247 = vadd.f32 0.0, %v2246
      %v2248 = vpop.f32.mrb[0].mxu0
      %2249 = vmatprep.mubr.bf16.mxu0 0
      %2250 = vmatmul.mubr.bf16.gmra.mrb[0].mxu0 %v1917
      %v2251 = vpop.f32.mrb[0].mxu0
      %v2252 = vadd.f32 0.0, %v2251
      %v2253 = vpop.f32.mrb[0].mxu0
      %v2254 = vpop.f32.mrb[0].mxu0
      %v2255 = vadd.f32 0.0, %v2254
      %v2256 = vpop.f32.mrb[0].mxu0
      %2257 = vmatprep.mubr.bf16.mxu0 0
      %2258 = vmatmul.mubr.bf16.gmra.mrb[0].mxu0 %v1920
      %v2259 = vpop.f32.mrb[0].mxu0
      %v2260 = vadd.f32 0.0, %v2259
      %v2261 = vpop.f32.mrb[0].mxu0
      %v2262 = vpop.f32.mrb[0].mxu0
      %v2263 = vadd.f32 0.0, %v2262
      %v2264 = vpop.f32.mrb[0].mxu0
      %2265 = vmatprep.mubr.bf16.mxu0 0
      %2266 = vmatmul.mubr.bf16.gmra.mrb[0].mxu0 %v1923
      %v2267 = vpop.f32.mrb[0].mxu0
      %v2268 = vadd.f32 0.0, %v2267
      %v2269 = vpop.f32.mrb[0].mxu0
      %v2270 = vpop.f32.mrb[0].mxu0
      %v2271 = vadd.f32 0.0, %v2270
      %v2272 = vpop.f32.mrb[0].mxu0
      %2273 = vmatprep.mubr.bf16.mxu0 0
      %2274 = vmatmul.mubr.bf16.gmra.mrb[0].mxu0 %v1926
      %v2275 = vpop.f32.mrb[0].mxu0
      %v2276 = vadd.f32 0.0, %v2275
      %v2277 = vpop.f32.mrb[0].mxu0
      %v2278 = vpop.f32.mrb[0].mxu0
      %v2279 = vadd.f32 0.0, %v2278
      %v2280 = vpop.f32.mrb[0].mxu0
      %2281 = vmatprep.mubr.bf16.mxu0 0
      %2282 = vmatmul.mubr.bf16.gmra.mrb[0].mxu0 %v1929
      %v2283 = vpop.f32.mrb[0].mxu0
      %v2284 = vadd.f32 0.0, %v2283
      %v2285 = vpop.f32.mrb[0].mxu0
      %v2286 = vpop.f32.mrb[0].mxu0
      %v2287 = vadd.f32 0.0, %v2286
      %v2288 = vpop.f32.mrb[0].mxu0
      %2289 = vmatprep.mubr.bf16.mxu0 0
      %2290 = vmatmul.mubr.bf16.gmra.mrb[0].mxu0 %v1932
      %v2291 = vpop.f32.mrb[0].mxu0
      %v2292 = vadd.f32 0.0, %v2291
      %v2293 = vpop.f32.mrb[0].mxu0
      %v2294 = vpop.f32.mrb[0].mxu0
      %v2295 = vadd.f32 0.0, %v2294
      %v2296 = vpop.f32.mrb[0].mxu0
      %2297 = vmatprep.mubr.bf16.mxu0 0
      %2298 = vmatmul.mubr.bf16.gmra.mrb[0].mxu0 %v1935
      %v2299 = vpop.f32.mrb[0].mxu0
      %v2300 = vadd.f32 0.0, %v2299
      %v2301 = vpop.f32.mrb[0].mxu0
      %v2302 = vpop.f32.mrb[0].mxu0
      %v2303 = vadd.f32 0.0, %v2302
      %v2304 = vpop.f32.mrb[0].mxu0
      %2305 = vmatprep.mubr.bf16.mxu0 0
      %2306 = vmatmul.mubr.bf16.gmra.mrb[0].mxu0 %v1938
      %v2307 = vpop.f32.mrb[0].mxu0
      %v2308 = vadd.f32 0.0, %v2307
      %v2309 = vpop.f32.mrb[0].mxu0
      %v2310 = vpop.f32.mrb[0].mxu0
      %v2311 = vadd.f32 0.0, %v2310
      %v2312 = vpop.f32.mrb[0].mxu0
      %2313 = vmatprep.mubr.bf16.mxu0 0
      %2314 = vmatmul.mubr.bf16.gmra.mrb[0].mxu0 %v1941
      %v2315 = vpop.f32.mrb[0].mxu0
      %v2316 = vadd.f32 0.0, %v2315
      %v2317 = vpop.f32.mrb[0].mxu0
      %v2318 = vpop.f32.mrb[0].mxu0
      %v2319 = vadd.f32 0.0, %v2318
      %v2320 = vpop.f32.mrb[0].mxu0
      %2321 = vmatprep.mubr.bf16.mxu0 0
      %2322 = vmatmul.mubr.bf16.gmra.mrb[0].mxu0 %v1944
      %v2323 = vpop.f32.mrb[0].mxu0
      %v2324 = vadd.f32 0.0, %v2323
      %v2325 = vpop.f32.mrb[0].mxu0
      %v2326 = vpop.f32.mrb[0].mxu0
      %v2327 = vadd.f32 0.0, %v2326
      %v2328 = vpop.f32.mrb[0].mxu0
      %2329 = vmatprep.mubr.bf16.mxu0 0
      %2330 = vmatmul.mubr.bf16.gmra.mrb[0].mxu0 %v1947
      %v2331 = vpop.f32.mrb[0].mxu0
      %v2332 = vadd.f32 0.0, %v2331
      %v2333 = vpop.f32.mrb[0].mxu0
      %v2334 = vpop.f32.mrb[0].mxu0
      %v2335 = vadd.f32 0.0, %v2334
      %v2336 = vpop.f32.mrb[0].mxu0
      %2337 = vmatprep.mubr.bf16.mxu0 0
      %2338 = vmatmul.mubr.bf16.gmra.mrb[0].mxu0 %v1950
      %v2339 = vpop.f32.mrb[0].mxu0
      %v2340 = vadd.f32 0.0, %v2339
      %v2341 = vpop.f32.mrb[0].mxu0
      %v2342 = vpop.f32.mrb[0].mxu0
      %v2343 = vadd.f32 0.0, %v2342
      %v2344 = vpop.f32.mrb[0].mxu0
      %2345 = vmatprep.mubr.bf16.mxu0 0
      %2346 = vmatmul.mubr.bf16.gmra.mrb[0].mxu0 %v1953
      %v2347 = vpop.f32.mrb[0].mxu0
      %v2348 = vadd.f32 0.0, %v2347
      %v2349 = vpop.f32.mrb[0].mxu0
      %v2350 = vpop.f32.mrb[0].mxu0
      %v2351 = vadd.f32 0.0, %v2350
      %v2352 = vpop.f32.mrb[0].mxu0
      %2353 = vmatprep.mubr.bf16.mxu0 0
      %2354 = vmatmul.mubr.bf16.gmra.mrb[0].mxu0 %v2185
      %v2355 = vpop.f32.mrb[0].mxu0
      %v2356 = vadd.f32 0.0, %v2355
      %v2357 = vpop.f32.mrb[0].mxu0
      %v2358 = vpop.f32.mrb[0].mxu0
      %v2359 = vadd.f32 0.0, %v2358
      %v2360 = vpop.f32.mrb[0].mxu0
      %2361 = vmatprep.mubr.bf16.mxu0 0
      %2362 = vmatmul.mubr.bf16.gmra.mrb[0].mxu0 %v2188
      %v2363 = vpop.f32.mrb[0].mxu0
      %v2364 = vadd.f32 0.0, %v2363
      %v2365 = vpop.f32.mrb[0].mxu0
      %v2366 = vpop.f32.mrb[0].mxu0
      %v2367 = vadd.f32 0.0, %v2366
      %v2368 = vpop.f32.mrb[0].mxu0
      %2369 = vdwg.mxu0
      %v2370 = vadd.f32 %v2138, %v2228
      %v2371 = vadd.f32 %v2139, %v2231
      %v2372 = vadd.f32 %v2140, %v2236
      %v2373 = vadd.f32 %v2141, %v2239
      %v2374 = vadd.f32 %v2142, %v2244
      %v2375 = vadd.f32 %v2143, %v2247
      %v2376 = vadd.f32 %v2144, %v2252
      %v2377 = vadd.f32 %v2145, %v2255
      %v2378 = vadd.f32 %v2146, %v2260
      %v2379 = vadd.f32 %v2147, %v2263
      %v2380 = vadd.f32 %v2148, %v2268
      %v2381 = vadd.f32 %v2149, %v2271
      %v2382 = vadd.f32 %v2150, %v2276
      %v2383 = vadd.f32 %v2151, %v2279
      %v2384 = vadd.f32 %v2152, %v2284
      %v2385 = vadd.f32 %v2153, %v2287
      %v2386 = vadd.f32 %v2154, %v2292
      %v2387 = vadd.f32 %v2155, %v2295
      %v2388 = vadd.f32 %v2156, %v2300
      %v2389 = vadd.f32 %v2157, %v2303
      %v2390 = vadd.f32 %v2158, %v2308
      %v2391 = vadd.f32 %v2159, %v2311
      %v2392 = vadd.f32 %v2160, %v2316
      %v2393 = vadd.f32 %v2161, %v2319
      %v2394 = vadd.f32 %v2162, %v2324
      %v2395 = vadd.f32 %v2163, %v2327
      %v2396 = vadd.f32 %v2164, %v2332
      %v2397 = vadd.f32 %v2165, %v2335
      %v2398 = vadd.f32 %v2166, %v2340
      %v2399 = vadd.f32 %v2167, %v2343
      %v2400 = vadd.f32 %v2168, %v2348
      %v2401 = vadd.f32 %v2169, %v2351
      %v2402 = vadd.f32 %v2170, %v2356
      %v2403 = vadd.f32 %v2171, %v2359
      %v2404 = vadd.f32 %v2172, %v2364
      %v2405 = vadd.f32 %v2173, %v2367
      %s2406 = scalar_lea.vmem %s2, 14
      %v2407 = vld [vmem:[%s2406] sm:$0x3]
      %vm2408 = vsmask.f32 5376
      %v2409 = vrot.slane %v365, 2
      %v2410 = vrot.slane %v361, 3
      %v2411 = vor.u32 %v2409, %v2410
      %v2412 = vrot.slane %v373, 2
      %v2413 = vrot.slane %v369, 3
      %v2414 = vor.u32 %v2412, %v2413
      %v2415 = vsel %vm2408, %v2411, %v2414
      %v2416 = vrot.slane %v381, 2
      %v2417 = vrot.slane %v377, 3
      %v2418 = vor.u32 %v2416, %v2417
      %v2419 = vsel %vm2408, %v2414, %v2418
      %v2420 = vrot.slane %v389, 2
      %v2421 = vrot.slane %v385, 3
      %v2422 = vor.u32 %v2420, %v2421
      %v2423 = vsel %vm2408, %v2418, %v2422
      %v2424 = vrot.slane %v397, 2
      %v2425 = vrot.slane %v393, 3
      %v2426 = vor.u32 %v2424, %v2425
      %v2427 = vsel %vm2408, %v2422, %v2426
      %v2428 = vrot.slane %v405, 2
      %v2429 = vrot.slane %v401, 3
      %v2430 = vor.u32 %v2428, %v2429
      %v2431 = vsel %vm2408, %v2426, %v2430
      %v2432 = vrot.slane %v413, 2
      %v2433 = vrot.slane %v409, 3
      %v2434 = vor.u32 %v2432, %v2433
      %v2435 = vsel %vm2408, %v2430, %v2434
      %v2436 = vrot.slane %v421, 2
      %v2437 = vrot.slane %v417, 3
      %v2438 = vor.u32 %v2436, %v2437
      %v2439 = vsel %vm2408, %v2434, %v2438
      %v2440 = vrot.slane %v429, 2
      %v2441 = vrot.slane %v425, 3
      %v2442 = vor.u32 %v2440, %v2441
      %v2443 = vsel %vm2408, %v2438, %v2442
      %v2444 = vrot.slane %v437, 2
      %v2445 = vrot.slane %v433, 3
      %v2446 = vor.u32 %v2444, %v2445
      %v2447 = vsel %vm2408, %v2442, %v2446
      %v2448 = vrot.slane %v445, 2
      %v2449 = vrot.slane %v441, 3
      %v2450 = vor.u32 %v2448, %v2449
      %v2451 = vsel %vm2408, %v2446, %v2450
      %v2452 = vrot.slane %v453, 2
      %v2453 = vrot.slane %v449, 3
      %v2454 = vor.u32 %v2452, %v2453
      %v2455 = vsel %vm2408, %v2450, %v2454
      %v2456 = vrot.slane %v461, 2
      %v2457 = vrot.slane %v457, 3
      %v2458 = vor.u32 %v2456, %v2457
      %v2459 = vsel %vm2408, %v2454, %v2458
      %v2460 = vrot.slane %v469, 2
      %v2461 = vrot.slane %v465, 3
      %v2462 = vor.u32 %v2460, %v2461
      %v2463 = vsel %vm2408, %v2458, %v2462
      %v2464 = vrot.slane %v477, 2
      %v2465 = vrot.slane %v473, 3
      %v2466 = vor.u32 %v2464, %v2465
      %v2467 = vsel %vm2408, %v2462, %v2466
      %v2468 = vrot.slane %v485, 2
      %v2469 = vrot.slane %v481, 3
      %v2470 = vor.u32 %v2468, %v2469
      %v2471 = vsel %vm2408, %v2466, %v2470
      %v2472 = vrot.slane %v1577, 2
      %v2473 = vrot.slane %v1580, 3
      %v2474 = vor.u32 %v2472, %v2473
      %v2475 = vsel %vm2408, %v2470, %v2474
      %v2477 = vshrl.u32 %v2174, 16
      %v2479 = vrot.slane %v2477, 2
      %v2480 = vshll.u32 %v2174, 16
      %v2482 = vrot.slane %v2480, 3
      %v2483 = vor.u32 %v2479, %v2482
      %v2484 = vsel %vm2408, %v2474, %v2483
      %v2486 = vshrl.u32 %v2175, 16
      %v2488 = vrot.slane %v2486, 2
      %v2489 = vshll.u32 %v2175, 16
      %v2491 = vrot.slane %v2489, 3
      %v2492 = vor.u32 %v2488, %v2491
      %v2493 = vsel %vm2408, %v2483, %v2492
      %v2495 = vsel %vm493, %v2415, 0
      %v2498 = vsel %vm493, %v2419, 0
      %v2501 = vsel %vm493, %v2423, 0
      %v2504 = vsel %vm493, %v2427, 0
      %v2507 = vsel %vm493, %v2431, 0
      %v2510 = vsel %vm493, %v2435, 0
      %v2513 = vsel %vm493, %v2439, 0
      %v2516 = vsel %vm493, %v2443, 0
      %v2519 = vsel %vm493, %v2447, 0
      %v2522 = vsel %vm493, %v2451, 0
      %v2525 = vsel %vm493, %v2455, 0
      %v2528 = vsel %vm493, %v2459, 0
      %v2531 = vsel %vm493, %v2463, 0
      %v2534 = vsel %vm493, %v2467, 0
      %v2537 = vsel %vm493, %v2471, 0
      %v2540 = vsel %vm493, %v2475, 0
      %v2543 = vsel %vm493, %v2484, 0
      %v2546 = vsel %vm493, %v2493, 0
      %v2549 = vsel %vm548, %v2407, 0
      %2551 = vmatprep.subr.bf16.mxu0 0
      %2552 = vmatpush1.bf16.msra.mxu0 %v2549
      %2553 = vmatprep.subr.bf16.mxu0 0
      %2554 = vmatpush1.bf16.msra.mxu0 0
      %2555 = vmatprep.subr.bf16.mxu0 0
      %2556 = vmatpush1.bf16.msra.mxu0 0
      %2557 = vmatprep.subr.bf16.mxu0 0
      %2558 = vmatpush1.bf16.msra.mxu0 0
      %2559 = vmatprep.subr.bf16.mxu0 0
      %2560 = vmatpush1.bf16.msra.mxu0 0
      %2561 = vmatprep.subr.bf16.mxu0 0
      %2562 = vmatpush1.bf16.msra.mxu0 0
      %2563 = vmatprep.subr.bf16.mxu0 0
      %2564 = vmatpush1.bf16.msra.mxu0 0
      %2565 = vmatprep.subr.bf16.mxu0 0
      %2566 = vmatpush1.bf16.msra.mxu0 0
      %2567 = vmatprep.subr.bf16.mxu0 0
      %2568 = vmatpush1.bf16.msra.mxu0 0
      %2569 = vmatprep.subr.bf16.mxu0 0
      %2570 = vmatpush1.bf16.msra.mxu0 0
      %2571 = vmatprep.subr.bf16.mxu0 0
      %2572 = vmatpush1.bf16.msra.mxu0 0
      %2573 = vmatprep.subr.bf16.mxu0 0
      %2574 = vmatpush1.bf16.msra.mxu0 0
      %2575 = vmatprep.subr.bf16.mxu0 0
      %2576 = vmatpush1.bf16.msra.mxu0 0
      %2577 = vmatprep.subr.bf16.mxu0 0
      %2578 = vmatpush1.bf16.msra.mxu0 0
      %2579 = vmatprep.subr.bf16.mxu0 0
      %2580 = vmatpush1.bf16.msra.mxu0 0
      %2581 = vmatprep.subr.bf16.mxu0 0
      %2582 = vmatpush1.bf16.msra.mxu0 0
      %2583 = vmatprep.mubr.bf16.mxu0 0
      %2584 = vmatmul.mubr.bf16.gmra.mrb[0].mxu0 %v2495
      %v2585 = vpop.f32.mrb[0].mxu0
      %v2586 = vadd.f32 0.0, %v2585
      %v2587 = vpop.f32.mrb[0].mxu0
      %v2588 = vpop.f32.mrb[0].mxu0
      %v2589 = vadd.f32 0.0, %v2588
      %v2590 = vpop.f32.mrb[0].mxu0
      %2591 = vmatprep.mubr.bf16.mxu0 0
      %2592 = vmatmul.mubr.bf16.gmra.mrb[0].mxu0 %v2498
      %v2593 = vpop.f32.mrb[0].mxu0
      %v2594 = vadd.f32 0.0, %v2593
      %v2595 = vpop.f32.mrb[0].mxu0
      %v2596 = vpop.f32.mrb[0].mxu0
      %v2597 = vadd.f32 0.0, %v2596
      %v2598 = vpop.f32.mrb[0].mxu0
      %2599 = vmatprep.mubr.bf16.mxu0 0
      %2600 = vmatmul.mubr.bf16.gmra.mrb[0].mxu0 %v2501
      %v2601 = vpop.f32.mrb[0].mxu0
      %v2602 = vadd.f32 0.0, %v2601
      %v2603 = vpop.f32.mrb[0].mxu0
      %v2604 = vpop.f32.mrb[0].mxu0
      %v2605 = vadd.f32 0.0, %v2604
      %v2606 = vpop.f32.mrb[0].mxu0
      %2607 = vmatprep.mubr.bf16.mxu0 0
      %2608 = vmatmul.mubr.bf16.gmra.mrb[0].mxu0 %v2504
      %v2609 = vpop.f32.mrb[0].mxu0
      %v2610 = vadd.f32 0.0, %v2609
      %v2611 = vpop.f32.mrb[0].mxu0
      %v2612 = vpop.f32.mrb[0].mxu0
      %v2613 = vadd.f32 0.0, %v2612
      %v2614 = vpop.f32.mrb[0].mxu0
      %2615 = vmatprep.mubr.bf16.mxu0 0
      %2616 = vmatmul.mubr.bf16.gmra.mrb[0].mxu0 %v2507
      %v2617 = vpop.f32.mrb[0].mxu0
      %v2618 = vadd.f32 0.0, %v2617
      %v2619 = vpop.f32.mrb[0].mxu0
      %v2620 = vpop.f32.mrb[0].mxu0
      %v2621 = vadd.f32 0.0, %v2620
      %v2622 = vpop.f32.mrb[0].mxu0
      %2623 = vmatprep.mubr.bf16.mxu0 0
      %2624 = vmatmul.mubr.bf16.gmra.mrb[0].mxu0 %v2510
      %v2625 = vpop.f32.mrb[0].mxu0
      %v2626 = vadd.f32 0.0, %v2625
      %v2627 = vpop.f32.mrb[0].mxu0
      %v2628 = vpop.f32.mrb[0].mxu0
      %v2629 = vadd.f32 0.0, %v2628
      %v2630 = vpop.f32.mrb[0].mxu0
      %2631 = vmatprep.mubr.bf16.mxu0 0
      %2632 = vmatmul.mubr.bf16.gmra.mrb[0].mxu0 %v2513
      %v2633 = vpop.f32.mrb[0].mxu0
      %v2634 = vadd.f32 0.0, %v2633
      %v2635 = vpop.f32.mrb[0].mxu0
      %v2636 = vpop.f32.mrb[0].mxu0
      %v2637 = vadd.f32 0.0, %v2636
      %v2638 = vpop.f32.mrb[0].mxu0
      %2639 = vmatprep.mubr.bf16.mxu0 0
      %2640 = vmatmul.mubr.bf16.gmra.mrb[0].mxu0 %v2516
      %v2641 = vpop.f32.mrb[0].mxu0
      %v2642 = vadd.f32 0.0, %v2641
      %v2643 = vpop.f32.mrb[0].mxu0
      %v2644 = vpop.f32.mrb[0].mxu0
      %v2645 = vadd.f32 0.0, %v2644
      %v2646 = vpop.f32.mrb[0].mxu0
      %2647 = vmatprep.mubr.bf16.mxu0 0
      %2648 = vmatmul.mubr.bf16.gmra.mrb[0].mxu0 %v2519
      %v2649 = vpop.f32.mrb[0].mxu0
      %v2650 = vadd.f32 0.0, %v2649
      %v2651 = vpop.f32.mrb[0].mxu0
      %v2652 = vpop.f32.mrb[0].mxu0
      %v2653 = vadd.f32 0.0, %v2652
      %v2654 = vpop.f32.mrb[0].mxu0
      %2655 = vmatprep.mubr.bf16.mxu0 0
      %2656 = vmatmul.mubr.bf16.gmra.mrb[0].mxu0 %v2522
      %v2657 = vpop.f32.mrb[0].mxu0
      %v2658 = vadd.f32 0.0, %v2657
      %v2659 = vpop.f32.mrb[0].mxu0
      %v2660 = vpop.f32.mrb[0].mxu0
      %v2661 = vadd.f32 0.0, %v2660
      %v2662 = vpop.f32.mrb[0].mxu0
      %2663 = vmatprep.mubr.bf16.mxu0 0
      %2664 = vmatmul.mubr.bf16.gmra.mrb[0].mxu0 %v2525
      %v2665 = vpop.f32.mrb[0].mxu0
      %v2666 = vadd.f32 0.0, %v2665
      %v2667 = vpop.f32.mrb[0].mxu0
      %v2668 = vpop.f32.mrb[0].mxu0
      %v2669 = vadd.f32 0.0, %v2668
      %v2670 = vpop.f32.mrb[0].mxu0
      %2671 = vmatprep.mubr.bf16.mxu0 0
      %2672 = vmatmul.mubr.bf16.gmra.mrb[0].mxu0 %v2528
      %v2673 = vpop.f32.mrb[0].mxu0
      %v2674 = vadd.f32 0.0, %v2673
      %v2675 = vpop.f32.mrb[0].mxu0
      %v2676 = vpop.f32.mrb[0].mxu0
      %v2677 = vadd.f32 0.0, %v2676
      %v2678 = vpop.f32.mrb[0].mxu0
      %2679 = vmatprep.mubr.bf16.mxu0 0
      %2680 = vmatmul.mubr.bf16.gmra.mrb[0].mxu0 %v2531
      %v2681 = vpop.f32.mrb[0].mxu0
      %v2682 = vadd.f32 0.0, %v2681
      %v2683 = vpop.f32.mrb[0].mxu0
      %v2684 = vpop.f32.mrb[0].mxu0
      %v2685 = vadd.f32 0.0, %v2684
      %v2686 = vpop.f32.mrb[0].mxu0
      %2687 = vmatprep.mubr.bf16.mxu0 0
      %2688 = vmatmul.mubr.bf16.gmra.mrb[0].mxu0 %v2534
      %v2689 = vpop.f32.mrb[0].mxu0
      %v2690 = vadd.f32 0.0, %v2689
      %v2691 = vpop.f32.mrb[0].mxu0
      %v2692 = vpop.f32.mrb[0].mxu0
      %v2693 = vadd.f32 0.0, %v2692
      %v2694 = vpop.f32.mrb[0].mxu0
      %2695 = vmatprep.mubr.bf16.mxu0 0
      %2696 = vmatmul.mubr.bf16.gmra.mrb[0].mxu0 %v2537
      %v2697 = vpop.f32.mrb[0].mxu0
      %v2698 = vadd.f32 0.0, %v2697
      %v2699 = vpop.f32.mrb[0].mxu0
      %v2700 = vpop.f32.mrb[0].mxu0
      %v2701 = vadd.f32 0.0, %v2700
      %v2702 = vpop.f32.mrb[0].mxu0
      %2703 = vmatprep.mubr.bf16.mxu0 0
      %2704 = vmatmul.mubr.bf16.gmra.mrb[0].mxu0 %v2540
      %v2705 = vpop.f32.mrb[0].mxu0
      %v2706 = vadd.f32 0.0, %v2705
      %v2707 = vpop.f32.mrb[0].mxu0
      %v2708 = vpop.f32.mrb[0].mxu0
      %v2709 = vadd.f32 0.0, %v2708
      %v2710 = vpop.f32.mrb[0].mxu0
      %2711 = vmatprep.mubr.bf16.mxu0 0
      %2712 = vmatmul.mubr.bf16.gmra.mrb[0].mxu0 %v2543
      %v2713 = vpop.f32.mrb[0].mxu0
      %v2714 = vadd.f32 0.0, %v2713
      %v2715 = vpop.f32.mrb[0].mxu0
      %v2716 = vpop.f32.mrb[0].mxu0
      %v2717 = vadd.f32 0.0, %v2716
      %v2718 = vpop.f32.mrb[0].mxu0
      %2719 = vmatprep.mubr.bf16.mxu0 0
      %2720 = vmatmul.mubr.bf16.gmra.mrb[0].mxu0 %v2546
      %v2721 = vpop.f32.mrb[0].mxu0
      %v2722 = vadd.f32 0.0, %v2721
      %v2723 = vpop.f32.mrb[0].mxu0
      %v2724 = vpop.f32.mrb[0].mxu0
      %v2725 = vadd.f32 0.0, %v2724
      %v2726 = vpop.f32.mrb[0].mxu0
      %2727 = vdwg.mxu0
      %v2728 = vadd.f32 %v2370, %v2586
      %v2729 = vadd.f32 %v2371, %v2589
      %v2730 = vadd.f32 %v2372, %v2594
      %v2731 = vadd.f32 %v2373, %v2597
      %v2732 = vadd.f32 %v2374, %v2602
      %v2733 = vadd.f32 %v2375, %v2605
      %v2734 = vadd.f32 %v2376, %v2610
      %v2735 = vadd.f32 %v2377, %v2613
      %v2736 = vadd.f32 %v2378, %v2618
      %v2737 = vadd.f32 %v2379, %v2621
      %v2738 = vadd.f32 %v2380, %v2626
      %v2739 = vadd.f32 %v2381, %v2629
      %v2740 = vadd.f32 %v2382, %v2634
      %v2741 = vadd.f32 %v2383, %v2637
      %v2742 = vadd.f32 %v2384, %v2642
      %v2743 = vadd.f32 %v2385, %v2645
      %v2744 = vadd.f32 %v2386, %v2650
      %v2745 = vadd.f32 %v2387, %v2653
      %v2746 = vadd.f32 %v2388, %v2658
      %v2747 = vadd.f32 %v2389, %v2661
      %v2748 = vadd.f32 %v2390, %v2666
      %v2749 = vadd.f32 %v2391, %v2669
      %v2750 = vadd.f32 %v2392, %v2674
      %v2751 = vadd.f32 %v2393, %v2677
      %v2752 = vadd.f32 %v2394, %v2682
      %v2753 = vadd.f32 %v2395, %v2685
      %v2754 = vadd.f32 %v2396, %v2690
      %v2755 = vadd.f32 %v2397, %v2693
      %v2756 = vadd.f32 %v2398, %v2698
      %v2757 = vadd.f32 %v2399, %v2701
      %v2758 = vadd.f32 %v2400, %v2706
      %v2759 = vadd.f32 %v2401, %v2709
      %v2760 = vadd.f32 %v2402, %v2714
      %v2761 = vadd.f32 %v2403, %v2717
      %v2762 = vadd.f32 %v2404, %v2722
      %v2763 = vadd.f32 %v2405, %v2725
      %s2764 = scalar_lea.vmem %s2, 16
      %v2765 = vld [vmem:[%s2764] sm:$0x3]
      %vm2766 = vcmask 1044480
      %v2767 = vrot.slane %v324, 3
      %v2768 = vrot.slane %v325, 3
      %v2769 = vsel %vm2766, %v2767, %v2768
      %v2770 = vrot.slane %v326, 3
      %v2771 = vsel %vm2766, %v2768, %v2770
      %v2772 = vrot.slane %v327, 3
      %v2773 = vsel %vm2766, %v2770, %v2772
      %v2774 = vrot.slane %v328, 3
      %v2775 = vsel %vm2766, %v2772, %v2774
      %v2776 = vrot.slane %v329, 3
      %v2777 = vsel %vm2766, %v2774, %v2776
      %v2778 = vrot.slane %v330, 3
      %v2779 = vsel %vm2766, %v2776, %v2778
      %v2780 = vrot.slane %v331, 3
      %v2781 = vsel %vm2766, %v2778, %v2780
      %v2782 = vrot.slane %v332, 3
      %v2783 = vsel %vm2766, %v2780, %v2782
      %v2784 = vrot.slane %v333, 3
      %v2785 = vsel %vm2766, %v2782, %v2784
      %v2786 = vrot.slane %v334, 3
      %v2787 = vsel %vm2766, %v2784, %v2786
      %v2788 = vrot.slane %v335, 3
      %v2789 = vsel %vm2766, %v2786, %v2788
      %v2790 = vrot.slane %v336, 3
      %v2791 = vsel %vm2766, %v2788, %v2790
      %v2792 = vrot.slane %v337, 3
      %v2793 = vsel %vm2766, %v2790, %v2792
      %v2794 = vrot.slane %v338, 3
      %v2795 = vsel %vm2766, %v2792, %v2794
      %v2796 = vrot.slane %v339, 3
      %v2797 = vsel %vm2766, %v2794, %v2796
      %v2798 = vrot.slane %v1274, 3
      %v2799 = vsel %vm2766, %v2796, %v2798
      %v2800 = vrot.slane %v2174, 3
      %v2801 = vsel %vm2766, %v2798, %v2800
      %v2802 = vrot.slane %v2175, 3
      %v2803 = vsel %vm2766, %v2800, %v2802
      %v2805 = vsel %vm493, %v2769, 0
      %v2808 = vsel %vm493, %v2771, 0
      %v2811 = vsel %vm493, %v2773, 0
      %v2814 = vsel %vm493, %v2775, 0
      %v2817 = vsel %vm493, %v2777, 0
      %v2820 = vsel %vm493, %v2779, 0
      %v2823 = vsel %vm493, %v2781, 0
      %v2826 = vsel %vm493, %v2783, 0
      %v2829 = vsel %vm493, %v2785, 0
      %v2832 = vsel %vm493, %v2787, 0
      %v2835 = vsel %vm493, %v2789, 0
      %v2838 = vsel %vm493, %v2791, 0
      %v2841 = vsel %vm493, %v2793, 0
      %v2844 = vsel %vm493, %v2795, 0
      %v2847 = vsel %vm493, %v2797, 0
      %v2850 = vsel %vm493, %v2799, 0
      %v2853 = vsel %vm493, %v2801, 0
      %v2856 = vsel %vm493, %v2803, 0
      %v2859 = vsel %vm548, %v2765, 0
      %2861 = vmatprep.subr.bf16.mxu0 0
      %2862 = vmatpush1.bf16.msra.mxu0 %v2859
      %2863 = vmatprep.subr.bf16.mxu0 0
      %2864 = vmatpush1.bf16.msra.mxu0 0
      %2865 = vmatprep.subr.bf16.mxu0 0
      %2866 = vmatpush1.bf16.msra.mxu0 0
      %2867 = vmatprep.subr.bf16.mxu0 0
      %2868 = vmatpush1.bf16.msra.mxu0 0
      %2869 = vmatprep.subr.bf16.mxu0 0
      %2870 = vmatpush1.bf16.msra.mxu0 0
      %2871 = vmatprep.subr.bf16.mxu0 0
      %2872 = vmatpush1.bf16.msra.mxu0 0
      %2873 = vmatprep.subr.bf16.mxu0 0
      %2874 = vmatpush1.bf16.msra.mxu0 0
      %2875 = vmatprep.subr.bf16.mxu0 0
      %2876 = vmatpush1.bf16.msra.mxu0 0
      %2877 = vmatprep.subr.bf16.mxu0 0
      %2878 = vmatpush1.bf16.msra.mxu0 0
      %2879 = vmatprep.subr.bf16.mxu0 0
      %2880 = vmatpush1.bf16.msra.mxu0 0
      %2881 = vmatprep.subr.bf16.mxu0 0
      %2882 = vmatpush1.bf16.msra.mxu0 0
      %2883 = vmatprep.subr.bf16.mxu0 0
      %2884 = vmatpush1.bf16.msra.mxu0 0
      %2885 = vmatprep.subr.bf16.mxu0 0
      %2886 = vmatpush1.bf16.msra.mxu0 0
      %2887 = vmatprep.subr.bf16.mxu0 0
      %2888 = vmatpush1.bf16.msra.mxu0 0
      %2889 = vmatprep.subr.bf16.mxu0 0
      %2890 = vmatpush1.bf16.msra.mxu0 0
      %2891 = vmatprep.subr.bf16.mxu0 0
      %2892 = vmatpush1.bf16.msra.mxu0 0
      %2893 = vmatprep.mubr.bf16.mxu0 0
      %2894 = vmatmul.mubr.bf16.gmra.mrb[0].mxu0 %v2805
      %v2895 = vpop.f32.mrb[0].mxu0
      %v2896 = vadd.f32 0.0, %v2895
      %v2897 = vpop.f32.mrb[0].mxu0
      %v2898 = vpop.f32.mrb[0].mxu0
      %v2899 = vadd.f32 0.0, %v2898
      %v2900 = vpop.f32.mrb[0].mxu0
      %2901 = vmatprep.mubr.bf16.mxu0 0
      %2902 = vmatmul.mubr.bf16.gmra.mrb[0].mxu0 %v2808
      %v2903 = vpop.f32.mrb[0].mxu0
      %v2904 = vadd.f32 0.0, %v2903
      %v2905 = vpop.f32.mrb[0].mxu0
      %v2906 = vpop.f32.mrb[0].mxu0
      %v2907 = vadd.f32 0.0, %v2906
      %v2908 = vpop.f32.mrb[0].mxu0
      %2909 = vmatprep.mubr.bf16.mxu0 0
      %2910 = vmatmul.mubr.bf16.gmra.mrb[0].mxu0 %v2811
      %v2911 = vpop.f32.mrb[0].mxu0
      %v2912 = vadd.f32 0.0, %v2911
      %v2913 = vpop.f32.mrb[0].mxu0
      %v2914 = vpop.f32.mrb[0].mxu0
      %v2915 = vadd.f32 0.0, %v2914
      %v2916 = vpop.f32.mrb[0].mxu0
      %2917 = vmatprep.mubr.bf16.mxu0 0
      %2918 = vmatmul.mubr.bf16.gmra.mrb[0].mxu0 %v2814
      %v2919 = vpop.f32.mrb[0].mxu0
      %v2920 = vadd.f32 0.0, %v2919
      %v2921 = vpop.f32.mrb[0].mxu0
      %v2922 = vpop.f32.mrb[0].mxu0
      %v2923 = vadd.f32 0.0, %v2922
      %v2924 = vpop.f32.mrb[0].mxu0
      %2925 = vmatprep.mubr.bf16.mxu0 0
      %2926 = vmatmul.mubr.bf16.gmra.mrb[0].mxu0 %v2817
      %v2927 = vpop.f32.mrb[0].mxu0
      %v2928 = vadd.f32 0.0, %v2927
      %v2929 = vpop.f32.mrb[0].mxu0
      %v2930 = vpop.f32.mrb[0].mxu0
      %v2931 = vadd.f32 0.0, %v2930
      %v2932 = vpop.f32.mrb[0].mxu0
      %2933 = vmatprep.mubr.bf16.mxu0 0
      %2934 = vmatmul.mubr.bf16.gmra.mrb[0].mxu0 %v2820
      %v2935 = vpop.f32.mrb[0].mxu0
      %v2936 = vadd.f32 0.0, %v2935
      %v2937 = vpop.f32.mrb[0].mxu0
      %v2938 = vpop.f32.mrb[0].mxu0
      %v2939 = vadd.f32 0.0, %v2938
      %v2940 = vpop.f32.mrb[0].mxu0
      %2941 = vmatprep.mubr.bf16.mxu0 0
      %2942 = vmatmul.mubr.bf16.gmra.mrb[0].mxu0 %v2823
      %v2943 = vpop.f32.mrb[0].mxu0
      %v2944 = vadd.f32 0.0, %v2943
      %v2945 = vpop.f32.mrb[0].mxu0
      %v2946 = vpop.f32.mrb[0].mxu0
      %v2947 = vadd.f32 0.0, %v2946
      %v2948 = vpop.f32.mrb[0].mxu0
      %2949 = vmatprep.mubr.bf16.mxu0 0
      %2950 = vmatmul.mubr.bf16.gmra.mrb[0].mxu0 %v2826
      %v2951 = vpop.f32.mrb[0].mxu0
      %v2952 = vadd.f32 0.0, %v2951
      %v2953 = vpop.f32.mrb[0].mxu0
      %v2954 = vpop.f32.mrb[0].mxu0
      %v2955 = vadd.f32 0.0, %v2954
      %v2956 = vpop.f32.mrb[0].mxu0
      %2957 = vmatprep.mubr.bf16.mxu0 0
      %2958 = vmatmul.mubr.bf16.gmra.mrb[0].mxu0 %v2829
      %v2959 = vpop.f32.mrb[0].mxu0
      %v2960 = vadd.f32 0.0, %v2959
      %v2961 = vpop.f32.mrb[0].mxu0
      %v2962 = vpop.f32.mrb[0].mxu0
      %v2963 = vadd.f32 0.0, %v2962
      %v2964 = vpop.f32.mrb[0].mxu0
      %2965 = vmatprep.mubr.bf16.mxu0 0
      %2966 = vmatmul.mubr.bf16.gmra.mrb[0].mxu0 %v2832
      %v2967 = vpop.f32.mrb[0].mxu0
      %v2968 = vadd.f32 0.0, %v2967
      %v2969 = vpop.f32.mrb[0].mxu0
      %v2970 = vpop.f32.mrb[0].mxu0
      %v2971 = vadd.f32 0.0, %v2970
      %v2972 = vpop.f32.mrb[0].mxu0
      %2973 = vmatprep.mubr.bf16.mxu0 0
      %2974 = vmatmul.mubr.bf16.gmra.mrb[0].mxu0 %v2835
      %v2975 = vpop.f32.mrb[0].mxu0
      %v2976 = vadd.f32 0.0, %v2975
      %v2977 = vpop.f32.mrb[0].mxu0
      %v2978 = vpop.f32.mrb[0].mxu0
      %v2979 = vadd.f32 0.0, %v2978
      %v2980 = vpop.f32.mrb[0].mxu0
      %2981 = vmatprep.mubr.bf16.mxu0 0
      %2982 = vmatmul.mubr.bf16.gmra.mrb[0].mxu0 %v2838
      %v2983 = vpop.f32.mrb[0].mxu0
      %v2984 = vadd.f32 0.0, %v2983
      %v2985 = vpop.f32.mrb[0].mxu0
      %v2986 = vpop.f32.mrb[0].mxu0
      %v2987 = vadd.f32 0.0, %v2986
      %v2988 = vpop.f32.mrb[0].mxu0
      %2989 = vmatprep.mubr.bf16.mxu0 0
      %2990 = vmatmul.mubr.bf16.gmra.mrb[0].mxu0 %v2841
      %v2991 = vpop.f32.mrb[0].mxu0
      %v2992 = vadd.f32 0.0, %v2991
      %v2993 = vpop.f32.mrb[0].mxu0
      %v2994 = vpop.f32.mrb[0].mxu0
      %v2995 = vadd.f32 0.0, %v2994
      %v2996 = vpop.f32.mrb[0].mxu0
      %2997 = vmatprep.mubr.bf16.mxu0 0
      %2998 = vmatmul.mubr.bf16.gmra.mrb[0].mxu0 %v2844
      %v2999 = vpop.f32.mrb[0].mxu0
      %v3000 = vadd.f32 0.0, %v2999
      %v3001 = vpop.f32.mrb[0].mxu0
      %v3002 = vpop.f32.mrb[0].mxu0
      %v3003 = vadd.f32 0.0, %v3002
      %v3004 = vpop.f32.mrb[0].mxu0
      %3005 = vmatprep.mubr.bf16.mxu0 0
      %3006 = vmatmul.mubr.bf16.gmra.mrb[0].mxu0 %v2847
      %v3007 = vpop.f32.mrb[0].mxu0
      %v3008 = vadd.f32 0.0, %v3007
      %v3009 = vpop.f32.mrb[0].mxu0
      %v3010 = vpop.f32.mrb[0].mxu0
      %v3011 = vadd.f32 0.0, %v3010
      %v3012 = vpop.f32.mrb[0].mxu0
      %3013 = vmatprep.mubr.bf16.mxu0 0
      %3014 = vmatmul.mubr.bf16.gmra.mrb[0].mxu0 %v2850
      %v3015 = vpop.f32.mrb[0].mxu0
      %v3016 = vadd.f32 0.0, %v3015
      %v3017 = vpop.f32.mrb[0].mxu0
      %v3018 = vpop.f32.mrb[0].mxu0
      %v3019 = vadd.f32 0.0, %v3018
      %v3020 = vpop.f32.mrb[0].mxu0
      %3021 = vmatprep.mubr.bf16.mxu0 0
      %3022 = vmatmul.mubr.bf16.gmra.mrb[0].mxu0 %v2853
      %v3023 = vpop.f32.mrb[0].mxu0
      %v3024 = vadd.f32 0.0, %v3023
      %v3025 = vpop.f32.mrb[0].mxu0
      %v3026 = vpop.f32.mrb[0].mxu0
      %v3027 = vadd.f32 0.0, %v3026
      %v3028 = vpop.f32.mrb[0].mxu0
      %3029 = vmatprep.mubr.bf16.mxu0 0
      %3030 = vmatmul.mubr.bf16.gmra.mrb[0].mxu0 %v2856
      %v3031 = vpop.f32.mrb[0].mxu0
      %v3032 = vadd.f32 0.0, %v3031
      %v3033 = vpop.f32.mrb[0].mxu0
      %v3034 = vpop.f32.mrb[0].mxu0
      %v3035 = vadd.f32 0.0, %v3034
      %v3036 = vpop.f32.mrb[0].mxu0
      %3037 = vdwg.mxu0
      %v3038 = vadd.f32 %v2728, %v2896
      %v3039 = vadd.f32 %v2729, %v2899
      %v3040 = vadd.f32 %v2730, %v2904
      %v3041 = vadd.f32 %v2731, %v2907
      %v3042 = vadd.f32 %v2732, %v2912
      %v3043 = vadd.f32 %v2733, %v2915
      %v3044 = vadd.f32 %v2734, %v2920
      %v3045 = vadd.f32 %v2735, %v2923
      %v3046 = vadd.f32 %v2736, %v2928
      %v3047 = vadd.f32 %v2737, %v2931
      %v3048 = vadd.f32 %v2738, %v2936
      %v3049 = vadd.f32 %v2739, %v2939
      %v3050 = vadd.f32 %v2740, %v2944
      %v3051 = vadd.f32 %v2741, %v2947
      %v3052 = vadd.f32 %v2742, %v2952
      %v3053 = vadd.f32 %v2743, %v2955
      %v3054 = vadd.f32 %v2744, %v2960
      %v3055 = vadd.f32 %v2745, %v2963
      %v3056 = vadd.f32 %v2746, %v2968
      %v3057 = vadd.f32 %v2747, %v2971
      %v3058 = vadd.f32 %v2748, %v2976
      %v3059 = vadd.f32 %v2749, %v2979
      %v3060 = vadd.f32 %v2750, %v2984
      %v3061 = vadd.f32 %v2751, %v2987
      %v3062 = vadd.f32 %v2752, %v2992
      %v3063 = vadd.f32 %v2753, %v2995
      %v3064 = vadd.f32 %v2754, %v3000
      %v3065 = vadd.f32 %v2755, %v3003
      %v3066 = vadd.f32 %v2756, %v3008
      %v3067 = vadd.f32 %v2757, %v3011
      %v3068 = vadd.f32 %v2758, %v3016
      %v3069 = vadd.f32 %v2759, %v3019
      %v3070 = vadd.f32 %v2760, %v3024
      %v3071 = vadd.f32 %v2761, %v3027
      %v3072 = vadd.f32 %v2762, %v3032
      %v3073 = vadd.f32 %v2763, %v3035
      %v3074 = vld [vmem:[%s3] sm:$0x1]
      %v3076 = vlaneseq
      %v3077 = vshrl.u32 %v3076, 7
      %v3078 = vsub.s32 0, %v3077
      %v3079 = vrot.slane %v3074, %v3078
      %v3081 = vadd.f32 %v3038, %v3079
      %v3082 = vadd.f32 %v3039, %v3079
      %v3083 = vadd.f32 %v3040, %v3079
      %v3084 = vadd.f32 %v3041, %v3079
      %v3085 = vadd.f32 %v3042, %v3079
      %v3086 = vadd.f32 %v3043, %v3079
      %v3087 = vadd.f32 %v3044, %v3079
      %v3088 = vadd.f32 %v3045, %v3079
      %v3089 = vadd.f32 %v3046, %v3079
      %v3090 = vadd.f32 %v3047, %v3079
      %v3091 = vadd.f32 %v3048, %v3079
      %v3092 = vadd.f32 %v3049, %v3079
      %v3093 = vadd.f32 %v3050, %v3079
      %v3094 = vadd.f32 %v3051, %v3079
      %v3095 = vadd.f32 %v3052, %v3079
      %v3096 = vadd.f32 %v3053, %v3079
      %v3097 = vadd.f32 %v3054, %v3079
      %v3098 = vadd.f32 %v3055, %v3079
      %v3099 = vadd.f32 %v3056, %v3079
      %v3100 = vadd.f32 %v3057, %v3079
      %v3101 = vadd.f32 %v3058, %v3079
      %v3102 = vadd.f32 %v3059, %v3079
      %v3103 = vadd.f32 %v3060, %v3079
      %v3104 = vadd.f32 %v3061, %v3079
      %v3105 = vadd.f32 %v3062, %v3079
      %v3106 = vadd.f32 %v3063, %v3079
      %v3107 = vadd.f32 %v3064, %v3079
      %v3108 = vadd.f32 %v3065, %v3079
      %v3109 = vadd.f32 %v3066, %v3079
      %v3110 = vadd.f32 %v3067, %v3079
      %v3111 = vadd.f32 %v3068, %v3079
      %v3112 = vadd.f32 %v3069, %v3079
      %v3113 = vadd.f32 %v3070, %v3079
      %v3114 = vadd.f32 %v3071, %v3079
      %v3115 = vadd.f32 %v3072, %v3079
      %v3116 = vadd.f32 %v3073, %v3079
      %s3117 = sld [smem:[#allocation3]]
      %vm3118 = vcmp.gt.f32.partialorder %v3081, 0.0
      %vm3119 = vcmp.gt.f32.partialorder %v3082, 0.0
      %vm3120 = vcmp.gt.f32.partialorder %v3083, 0.0
      %vm3121 = vcmp.gt.f32.partialorder %v3084, 0.0
      %vm3122 = vcmp.gt.f32.partialorder %v3085, 0.0
      %vm3123 = vcmp.gt.f32.partialorder %v3086, 0.0
      %vm3124 = vcmp.gt.f32.partialorder %v3087, 0.0
      %vm3125 = vcmp.gt.f32.partialorder %v3088, 0.0
      %vm3126 = vcmp.gt.f32.partialorder %v3089, 0.0
      %vm3127 = vcmp.gt.f32.partialorder %v3090, 0.0
      %vm3128 = vcmp.gt.f32.partialorder %v3091, 0.0
      %vm3129 = vcmp.gt.f32.partialorder %v3092, 0.0
      %vm3130 = vcmp.gt.f32.partialorder %v3093, 0.0
      %vm3131 = vcmp.gt.f32.partialorder %v3094, 0.0
      %vm3132 = vcmp.gt.f32.partialorder %v3095, 0.0
      %vm3133 = vcmp.gt.f32.partialorder %v3096, 0.0
      %vm3134 = vcmp.gt.f32.partialorder %v3097, 0.0
      %vm3135 = vcmp.gt.f32.partialorder %v3098, 0.0
      %vm3136 = vcmp.gt.f32.partialorder %v3099, 0.0
      %vm3137 = vcmp.gt.f32.partialorder %v3100, 0.0
      %vm3138 = vcmp.gt.f32.partialorder %v3101, 0.0
      %vm3139 = vcmp.gt.f32.partialorder %v3102, 0.0
      %vm3140 = vcmp.gt.f32.partialorder %v3103, 0.0
      %vm3141 = vcmp.gt.f32.partialorder %v3104, 0.0
      %vm3142 = vcmp.gt.f32.partialorder %v3105, 0.0
      %vm3143 = vcmp.gt.f32.partialorder %v3106, 0.0
      %vm3144 = vcmp.gt.f32.partialorder %v3107, 0.0
      %vm3145 = vcmp.gt.f32.partialorder %v3108, 0.0
      %vm3146 = vcmp.gt.f32.partialorder %v3109, 0.0
      %vm3147 = vcmp.gt.f32.partialorder %v3110, 0.0
      %vm3148 = vcmp.gt.f32.partialorder %v3111, 0.0
      %vm3149 = vcmp.gt.f32.partialorder %v3112, 0.0
      %vm3150 = vcmp.gt.f32.partialorder %v3113, 0.0
      %vm3151 = vcmp.gt.f32.partialorder %v3114, 0.0
      %vm3152 = vcmp.gt.f32.partialorder %v3115, 0.0
      %vm3153 = vcmp.gt.f32.partialorder %v3116, 0.0
      %v3154 = vstv %s3117
      %v3155 = vmul.f32 %v3154, %v3081
      %v3156 = vmul.f32 %v3154, %v3082
      %v3157 = vmul.f32 %v3154, %v3083
      %v3158 = vmul.f32 %v3154, %v3084
      %v3159 = vmul.f32 %v3154, %v3085
      %v3160 = vmul.f32 %v3154, %v3086
      %v3161 = vmul.f32 %v3154, %v3087
      %v3162 = vmul.f32 %v3154, %v3088
      %v3163 = vmul.f32 %v3154, %v3089
      %v3164 = vmul.f32 %v3154, %v3090
      %v3165 = vmul.f32 %v3154, %v3091
      %v3166 = vmul.f32 %v3154, %v3092
      %v3167 = vmul.f32 %v3154, %v3093
      %v3168 = vmul.f32 %v3154, %v3094
      %v3169 = vmul.f32 %v3154, %v3095
      %v3170 = vmul.f32 %v3154, %v3096
      %v3171 = vmul.f32 %v3154, %v3097
      %v3172 = vmul.f32 %v3154, %v3098
      %v3173 = vmul.f32 %v3154, %v3099
      %v3174 = vmul.f32 %v3154, %v3100
      %v3175 = vmul.f32 %v3154, %v3101
      %v3176 = vmul.f32 %v3154, %v3102
      %v3177 = vmul.f32 %v3154, %v3103
      %v3178 = vmul.f32 %v3154, %v3104
      %v3179 = vmul.f32 %v3154, %v3105
      %v3180 = vmul.f32 %v3154, %v3106
      %v3181 = vmul.f32 %v3154, %v3107
      %v3182 = vmul.f32 %v3154, %v3108
      %v3183 = vmul.f32 %v3154, %v3109
      %v3184 = vmul.f32 %v3154, %v3110
      %v3185 = vmul.f32 %v3154, %v3111
      %v3186 = vmul.f32 %v3154, %v3112
      %v3187 = vmul.f32 %v3154, %v3113
      %v3188 = vmul.f32 %v3154, %v3114
      %v3189 = vmul.f32 %v3154, %v3115
      %v3190 = vmul.f32 %v3154, %v3116
      %v3191 = vsel %vm3118, %v3081, %v3155
      %v3192 = vsel %vm3119, %v3082, %v3156
      %v3193 = vsel %vm3120, %v3083, %v3157
      %v3194 = vsel %vm3121, %v3084, %v3158
      %v3195 = vsel %vm3122, %v3085, %v3159
      %v3196 = vsel %vm3123, %v3086, %v3160
      %v3197 = vsel %vm3124, %v3087, %v3161
      %v3198 = vsel %vm3125, %v3088, %v3162
      %v3199 = vsel %vm3126, %v3089, %v3163
      %v3200 = vsel %vm3127, %v3090, %v3164
      %v3201 = vsel %vm3128, %v3091, %v3165
      %v3202 = vsel %vm3129, %v3092, %v3166
      %v3203 = vsel %vm3130, %v3093, %v3167
      %v3204 = vsel %vm3131, %v3094, %v3168
      %v3205 = vsel %vm3132, %v3095, %v3169
      %v3206 = vsel %vm3133, %v3096, %v3170
      %v3207 = vsel %vm3134, %v3097, %v3171
      %v3208 = vsel %vm3135, %v3098, %v3172
      %v3209 = vsel %vm3136, %v3099, %v3173
      %v3210 = vsel %vm3137, %v3100, %v3174
      %v3211 = vsel %vm3138, %v3101, %v3175
      %v3212 = vsel %vm3139, %v3102, %v3176
      %v3213 = vsel %vm3140, %v3103, %v3177
      %v3214 = vsel %vm3141, %v3104, %v3178
      %v3215 = vsel %vm3142, %v3105, %v3179
      %v3216 = vsel %vm3143, %v3106, %v3180
      %v3217 = vsel %vm3144, %v3107, %v3181
      %v3218 = vsel %vm3145, %v3108, %v3182
      %v3219 = vsel %vm3146, %v3109, %v3183
      %v3220 = vsel %vm3147, %v3110, %v3184
      %v3221 = vsel %vm3148, %v3111, %v3185
      %v3222 = vsel %vm3149, %v3112, %v3186
      %v3223 = vsel %vm3150, %v3113, %v3187
      %v3224 = vsel %vm3151, %v3114, %v3188
      %v3225 = vsel %vm3152, %v3115, %v3189
      %v3226 = vsel %vm3153, %v3116, %v3190
      %3227 = vst.msk [vmem:[#allocation2] sm:$0xff] %vm493, 0.0
      %3228 = vst.msk [vmem:[#allocation2 + $0x8] sm:$0xff] %vm493, 0.0
      %3229 = vst.msk [vmem:[#allocation2 + $0x10] sm:$0xff] %vm493, 0.0
      %3230 = vst.msk [vmem:[#allocation2 + $0x18] sm:$0xff] %vm493, 0.0
      %3231 = vst.msk [vmem:[#allocation2 + $0x20] sm:$0xff] %vm493, 0.0
      %3232 = vst.msk [vmem:[#allocation2 + $0x28] sm:$0xff] %vm493, 0.0
      %3233 = vst.msk [vmem:[#allocation2 + $0x30] sm:$0xff] %vm493, 0.0
      %3234 = vst.msk [vmem:[#allocation2 + $0x38] sm:$0xff] %vm493, 0.0
      %3235 = vst.msk [vmem:[#allocation2 + $0x40] sm:$0xff] %vm493, 0.0
      %3236 = vst.msk [vmem:[#allocation2 + $0x48] sm:$0xff] %vm493, 0.0
      %3237 = vst.msk [vmem:[#allocation2 + $0x50] sm:$0xff] %vm493, 0.0
      %3238 = vst.msk [vmem:[#allocation2 + $0x58] sm:$0xff] %vm493, 0.0
      %3239 = vst.msk [vmem:[#allocation2 + $0x60] sm:$0xff] %vm493, 0.0
      %3240 = vst.msk [vmem:[#allocation2 + $0x68] sm:$0xff] %vm493, 0.0
      %3241 = vst.msk [vmem:[#allocation2 + $0x70] sm:$0xff] %vm493, 0.0
      %3242 = vst.msk [vmem:[#allocation2 + $0x78] sm:$0xff] %vm493, 0.0
      %3243 = vst.msk [vmem:[#allocation2 + $0x80] sm:$0xff] %vm493, 0.0
      %3244 = vst.msk [vmem:[#allocation2 + $0x88] sm:$0xff] %vm493, 0.0
      %3245 = vst.msk [vmem:[#allocation2 + $0x90] sm:$0xff] %vm493, 0.0
      %3246 = vst.msk [vmem:[#allocation2 + $0x98] sm:$0xff] %vm493, 0.0
      %3247 = vst.msk [vmem:[#allocation2 + $0xa0] sm:$0xff] %vm493, 0.0
      %3248 = vst.msk [vmem:[#allocation2 + $0xa8] sm:$0xff] %vm493, 0.0
      %3249 = vst.msk [vmem:[#allocation2 + $0xb0] sm:$0xff] %vm493, 0.0
      %3250 = vst.msk [vmem:[#allocation2 + $0xb8] sm:$0xff] %vm493, 0.0
      %3251 = vst.msk [vmem:[#allocation2 + $0xc0] sm:$0xff] %vm493, 0.0
      %3252 = vst.msk [vmem:[#allocation2 + $0xc8] sm:$0xff] %vm493, 0.0
      %3253 = vst.msk [vmem:[#allocation2 + $0xd0] sm:$0xff] %vm493, 0.0
      %3254 = vst.msk [vmem:[#allocation2 + $0xd8] sm:$0xff] %vm493, 0.0
      %3255 = vst.msk [vmem:[#allocation2 + $0xe0] sm:$0xff] %vm493, 0.0
      %3256 = vst.msk [vmem:[#allocation2 + $0xe8] sm:$0xff] %vm493, 0.0
      %3257 = vst.msk [vmem:[#allocation2 + $0xf0] sm:$0xff] %vm493, 0.0
      %3258 = vst.msk [vmem:[#allocation2 + $0xf8] sm:$0xff] %vm493, 0.0
      %3259 = vst.msk [vmem:[#allocation2 + $0x100] sm:$0xff] %vm493, 0.0
      %3260 = vst.msk [vmem:[#allocation2 + $0x108] sm:$0xff] %vm493, 0.0
      %3261 = vst.msk [vmem:[#allocation2 + $0x110] sm:$0xff] %vm493, 0.0
      %3262 = vst.msk [vmem:[#allocation2 + $0x118] sm:$0xff] %vm493, 0.0
      %3263 = vst.msk [vmem:[#allocation2 + $0x120] sm:$0xff] %vm493, 0.0
      %3264 = vst.msk [vmem:[#allocation2 + $0x128] sm:$0xff] %vm493, 0.0
      %3265 = vst.msk [vmem:[#allocation2 + $0x130] sm:$0xff] %vm493, 0.0
      %3266 = vst.msk [vmem:[#allocation2 + $0x138] sm:$0xff] %vm493, 0.0
      %3267 = vst.msk [vmem:[#allocation2 + $0x140] sm:$0xff] %vm493, 0.0
      %3268 = vst.msk [vmem:[#allocation2 + $0x148] sm:$0xff] %vm493, 0.0
      %vm3269 = vcmask 29696
      %3270 = vst.msk [vmem:[#allocation2 + $0x150] sm:$0x3f] %vm3269, 0.0
      %v3271 = vld [vmem:[%s6] sm:$0xff]
      %v3272 = vld [vmem:[%s6 + $0x8] sm:$0xff]
      %v3273 = vld [vmem:[%s6 + $0x10] sm:$0xff]
      %v3274 = vld [vmem:[%s6 + $0x18] sm:$0xff]
      %v3275 = vld [vmem:[%s6 + $0x20] sm:$0xff]
      %v3276 = vld [vmem:[%s6 + $0x28] sm:$0xff]
      %v3277 = vld [vmem:[%s6 + $0x30] sm:$0xff]
      %v3278 = vld [vmem:[%s6 + $0x38] sm:$0xff]
      %v3279 = vld [vmem:[%s6 + $0x40] sm:$0xff]
      %v3280 = vld [vmem:[%s6 + $0x48] sm:$0xff]
      %v3281 = vld [vmem:[%s6 + $0x50] sm:$0xff]
      %v3282 = vld [vmem:[%s6 + $0x58] sm:$0xff]
      %v3283 = vld [vmem:[%s6 + $0x60] sm:$0xff]
      %v3284 = vld [vmem:[%s6 + $0x68] sm:$0xff]
      %v3285 = vld [vmem:[%s6 + $0x70] sm:$0xff]
      %v3286 = vld [vmem:[%s6 + $0x78] sm:$0xff]
      %v3287 = vld [vmem:[%s6 + $0x80] sm:$0xff]
      %v3288 = vld [vmem:[%s6 + $0x88] sm:$0xff]
      %v3289 = vld [vmem:[%s6 + $0x90] sm:$0xff]
      %v3290 = vld [vmem:[%s6 + $0x98] sm:$0xff]
      %v3291 = vld [vmem:[%s6 + $0xa0] sm:$0xff]
      %v3292 = vld [vmem:[%s6 + $0xa8] sm:$0xff]
      %v3293 = vld [vmem:[%s6 + $0xb0] sm:$0xff]
      %v3294 = vld [vmem:[%s6 + $0xb8] sm:$0xff]
      %v3295 = vld [vmem:[%s6 + $0xc0] sm:$0xff]
      %v3296 = vld [vmem:[%s6 + $0xc8] sm:$0xff]
      %v3297 = vld [vmem:[%s6 + $0xd0] sm:$0xff]
      %v3298 = vld [vmem:[%s6 + $0xd8] sm:$0xff]
      %v3299 = vld [vmem:[%s6 + $0xe0] sm:$0xff]
      %v3300 = vld [vmem:[%s6 + $0xe8] sm:$0xff]
      %v3301 = vld [vmem:[%s6 + $0xf0] sm:$0xff]
      %v3302 = vld [vmem:[%s6 + $0xf8] sm:$0xff]
      %v3303 = vld [vmem:[%s6 + $0x100] sm:$0xff]
      %v3304 = vld [vmem:[%s6 + $0x108] sm:$0xff]
      %v3305 = vld [vmem:[%s6 + $0x110] sm:$0xff]
      %v3306 = vld [vmem:[%s6 + $0x118] sm:$0xff]
      %3308 = vset.pattern.permute.xlu0 0
      %3309 = vperm.xlu0 %3308, %v3271
      %v3310 = vpop.permute.xlu0 %3309
      %3313 = vset.pattern.permute.xlu0 0
      %3314 = vperm.xlu0 %3313, %v3272
      %v3315 = vpop.permute.xlu0 %3314
      %3318 = vset.pattern.permute.xlu0 0
      %3319 = vperm.xlu0 %3318, %v3273
      %v3320 = vpop.permute.xlu0 %3319
      %3323 = vset.pattern.permute.xlu0 0
      %3324 = vperm.xlu0 %3323, %v3274
      %v3325 = vpop.permute.xlu0 %3324
      %3328 = vset.pattern.permute.xlu0 0
      %3329 = vperm.xlu0 %3328, %v3275
      %v3330 = vpop.permute.xlu0 %3329
      %3333 = vset.pattern.permute.xlu0 0
      %3334 = vperm.xlu0 %3333, %v3276
      %v3335 = vpop.permute.xlu0 %3334
      %3338 = vset.pattern.permute.xlu0 0
      %3339 = vperm.xlu0 %3338, %v3277
      %v3340 = vpop.permute.xlu0 %3339
      %3343 = vset.pattern.permute.xlu0 0
      %3344 = vperm.xlu0 %3343, %v3278
      %v3345 = vpop.permute.xlu0 %3344
      %3348 = vset.pattern.permute.xlu0 0
      %3349 = vperm.xlu0 %3348, %v3279
      %v3350 = vpop.permute.xlu0 %3349
      %3353 = vset.pattern.permute.xlu0 0
      %3354 = vperm.xlu0 %3353, %v3280
      %v3355 = vpop.permute.xlu0 %3354
      %3358 = vset.pattern.permute.xlu0 0
      %3359 = vperm.xlu0 %3358, %v3281
      %v3360 = vpop.permute.xlu0 %3359
      %3363 = vset.pattern.permute.xlu0 0
      %3364 = vperm.xlu0 %3363, %v3282
      %v3365 = vpop.permute.xlu0 %3364
      %3368 = vset.pattern.permute.xlu0 0
      %3369 = vperm.xlu0 %3368, %v3283
      %v3370 = vpop.permute.xlu0 %3369
      %3373 = vset.pattern.permute.xlu0 0
      %3374 = vperm.xlu0 %3373, %v3284
      %v3375 = vpop.permute.xlu0 %3374
      %3378 = vset.pattern.permute.xlu0 0
      %3379 = vperm.xlu0 %3378, %v3285
      %v3380 = vpop.permute.xlu0 %3379
      %3383 = vset.pattern.permute.xlu0 0
      %3384 = vperm.xlu0 %3383, %v3286
      %v3385 = vpop.permute.xlu0 %3384
      %3388 = vset.pattern.permute.xlu0 0
      %3389 = vperm.xlu0 %3388, %v3287
      %v3390 = vpop.permute.xlu0 %3389
      %3393 = vset.pattern.permute.xlu0 0
      %3394 = vperm.xlu0 %3393, %v3288
      %v3395 = vpop.permute.xlu0 %3394
      %3398 = vset.pattern.permute.xlu0 0
      %3399 = vperm.xlu0 %3398, %v3289
      %v3400 = vpop.permute.xlu0 %3399
      %3403 = vset.pattern.permute.xlu0 0
      %3404 = vperm.xlu0 %3403, %v3290
      %v3405 = vpop.permute.xlu0 %3404
      %3408 = vset.pattern.permute.xlu0 0
      %3409 = vperm.xlu0 %3408, %v3291
      %v3410 = vpop.permute.xlu0 %3409
      %3413 = vset.pattern.permute.xlu0 0
      %3414 = vperm.xlu0 %3413, %v3292
      %v3415 = vpop.permute.xlu0 %3414
      %3418 = vset.pattern.permute.xlu0 0
      %3419 = vperm.xlu0 %3418, %v3293
      %v3420 = vpop.permute.xlu0 %3419
      %3423 = vset.pattern.permute.xlu0 0
      %3424 = vperm.xlu0 %3423, %v3294
      %v3425 = vpop.permute.xlu0 %3424
      %3428 = vset.pattern.permute.xlu0 0
      %3429 = vperm.xlu0 %3428, %v3295
      %v3430 = vpop.permute.xlu0 %3429
      %3433 = vset.pattern.permute.xlu0 0
      %3434 = vperm.xlu0 %3433, %v3296
      %v3435 = vpop.permute.xlu0 %3434
      %3438 = vset.pattern.permute.xlu0 0
      %3439 = vperm.xlu0 %3438, %v3297
      %v3440 = vpop.permute.xlu0 %3439
      %3443 = vset.pattern.permute.xlu0 0
      %3444 = vperm.xlu0 %3443, %v3298
      %v3445 = vpop.permute.xlu0 %3444
      %3448 = vset.pattern.permute.xlu0 0
      %3449 = vperm.xlu0 %3448, %v3299
      %v3450 = vpop.permute.xlu0 %3449
      %3453 = vset.pattern.permute.xlu0 0
      %3454 = vperm.xlu0 %3453, %v3300
      %v3455 = vpop.permute.xlu0 %3454
      %3458 = vset.pattern.permute.xlu0 0
      %3459 = vperm.xlu0 %3458, %v3301
      %v3460 = vpop.permute.xlu0 %3459
      %3463 = vset.pattern.permute.xlu0 0
      %3464 = vperm.xlu0 %3463, %v3302
      %v3465 = vpop.permute.xlu0 %3464
      %3468 = vset.pattern.permute.xlu0 0
      %3469 = vperm.xlu0 %3468, %v3303
      %v3470 = vpop.permute.xlu0 %3469
      %3473 = vset.pattern.permute.xlu0 0
      %3474 = vperm.xlu0 %3473, %v3304
      %v3475 = vpop.permute.xlu0 %3474
      %3478 = vset.pattern.permute.xlu0 0
      %3479 = vperm.xlu0 %3478, %v3305
      %v3480 = vpop.permute.xlu0 %3479
      %3483 = vset.pattern.permute.xlu0 0
      %3484 = vperm.xlu0 %3483, %v3306
      %v3485 = vpop.permute.xlu0 %3484
      %v3487 = vmul.f32 %v3191, %v3310
      %v3488 = vmul.f32 %v3192, %v3315
      %v3489 = vmul.f32 %v3193, %v3320
      %v3490 = vmul.f32 %v3194, %v3325
      %v3491 = vmul.f32 %v3195, %v3330
      %v3492 = vmul.f32 %v3196, %v3335
      %v3493 = vmul.f32 %v3197, %v3340
      %v3494 = vmul.f32 %v3198, %v3345
      %v3495 = vmul.f32 %v3199, %v3350
      %v3496 = vmul.f32 %v3200, %v3355
      %v3497 = vmul.f32 %v3201, %v3360
      %v3498 = vmul.f32 %v3202, %v3365
      %v3499 = vmul.f32 %v3203, %v3370
      %v3500 = vmul.f32 %v3204, %v3375
      %v3501 = vmul.f32 %v3205, %v3380
      %v3502 = vmul.f32 %v3206, %v3385
      %v3503 = vmul.f32 %v3207, %v3390
      %v3504 = vmul.f32 %v3208, %v3395
      %v3505 = vmul.f32 %v3209, %v3400
      %v3506 = vmul.f32 %v3210, %v3405
      %v3507 = vmul.f32 %v3211, %v3410
      %v3508 = vmul.f32 %v3212, %v3415
      %v3509 = vmul.f32 %v3213, %v3420
      %v3510 = vmul.f32 %v3214, %v3425
      %v3511 = vmul.f32 %v3215, %v3430
      %v3512 = vmul.f32 %v3216, %v3435
      %v3513 = vmul.f32 %v3217, %v3440
      %v3514 = vmul.f32 %v3218, %v3445
      %v3515 = vmul.f32 %v3219, %v3450
      %v3516 = vmul.f32 %v3220, %v3455
      %v3517 = vmul.f32 %v3221, %v3460
      %v3518 = vmul.f32 %v3222, %v3465
      %v3519 = vmul.f32 %v3223, %v3470
      %v3520 = vmul.f32 %v3224, %v3475
      %v3521 = vmul.f32 %v3225, %v3480
      %v3522 = vmul.f32 %v3226, %v3485
      %3523 = vst.msk [vmem:[#allocation2 + $0x13] sm:$0xff] %vm493, %v3487
      %3524 = vst.msk [vmem:[#allocation2 + $0x1b] sm:$0xff] %vm493, %v3488
      %3525 = vst.msk [vmem:[#allocation2 + $0x23] sm:$0xff] %vm493, %v3489
      %3526 = vst.msk [vmem:[#allocation2 + $0x2b] sm:$0xff] %vm493, %v3490
      %3527 = vst.msk [vmem:[#allocation2 + $0x33] sm:$0xff] %vm493, %v3491
      %3528 = vst.msk [vmem:[#allocation2 + $0x3b] sm:$0xff] %vm493, %v3492
      %3529 = vst.msk [vmem:[#allocation2 + $0x43] sm:$0xff] %vm493, %v3493
      %3530 = vst.msk [vmem:[#allocation2 + $0x4b] sm:$0xff] %vm493, %v3494
      %3531 = vst.msk [vmem:[#allocation2 + $0x53] sm:$0xff] %vm493, %v3495
      %3532 = vst.msk [vmem:[#allocation2 + $0x5b] sm:$0xff] %vm493, %v3496
      %3533 = vst.msk [vmem:[#allocation2 + $0x63] sm:$0xff] %vm493, %v3497
      %3534 = vst.msk [vmem:[#allocation2 + $0x6b] sm:$0xff] %vm493, %v3498
      %3535 = vst.msk [vmem:[#allocation2 + $0x73] sm:$0xff] %vm493, %v3499
      %3536 = vst.msk [vmem:[#allocation2 + $0x7b] sm:$0xff] %vm493, %v3500
      %3537 = vst.msk [vmem:[#allocation2 + $0x83] sm:$0xff] %vm493, %v3501
      %3538 = vst.msk [vmem:[#allocation2 + $0x8b] sm:$0xff] %vm493, %v3502
      %3539 = vst.msk [vmem:[#allocation2 + $0x93] sm:$0xff] %vm493, %v3503
      %3540 = vst.msk [vmem:[#allocation2 + $0x9b] sm:$0xff] %vm493, %v3504
      %3541 = vst.msk [vmem:[#allocation2 + $0xa3] sm:$0xff] %vm493, %v3505
      %3542 = vst.msk [vmem:[#allocation2 + $0xab] sm:$0xff] %vm493, %v3506
      %3543 = vst.msk [vmem:[#allocation2 + $0xb3] sm:$0xff] %vm493, %v3507
      %3544 = vst.msk [vmem:[#allocation2 + $0xbb] sm:$0xff] %vm493, %v3508
      %3545 = vst.msk [vmem:[#allocation2 + $0xc3] sm:$0xff] %vm493, %v3509
      %3546 = vst.msk [vmem:[#allocation2 + $0xcb] sm:$0xff] %vm493, %v3510
      %3547 = vst.msk [vmem:[#allocation2 + $0xd3] sm:$0xff] %vm493, %v3511
      %3548 = vst.msk [vmem:[#allocation2 + $0xdb] sm:$0xff] %vm493, %v3512
      %3549 = vst.msk [vmem:[#allocation2 + $0xe3] sm:$0xff] %vm493, %v3513
      %3550 = vst.msk [vmem:[#allocation2 + $0xeb] sm:$0xff] %vm493, %v3514
      %3551 = vst.msk [vmem:[#allocation2 + $0xf3] sm:$0xff] %vm493, %v3515
      %3552 = vst.msk [vmem:[#allocation2 + $0xfb] sm:$0xff] %vm493, %v3516
      %3553 = vst.msk [vmem:[#allocation2 + $0x103] sm:$0xff] %vm493, %v3517
      %3554 = vst.msk [vmem:[#allocation2 + $0x10b] sm:$0xff] %vm493, %v3518
      %3555 = vst.msk [vmem:[#allocation2 + $0x113] sm:$0xff] %vm493, %v3519
      %3556 = vst.msk [vmem:[#allocation2 + $0x11b] sm:$0xff] %vm493, %v3520
      %3557 = vst.msk [vmem:[#allocation2 + $0x123] sm:$0xff] %vm493, %v3521
      %3558 = vst.msk [vmem:[#allocation2 + $0x12b] sm:$0xff] %vm493, %v3522
      %v3559 = vld [vmem:[#allocation2] sm:$0xff]
      %v3560 = vld [vmem:[#allocation2 + $0x8] sm:$0xff]
      %v3561 = vld [vmem:[#allocation2 + $0x10] sm:$0xff]
      %v3562 = vld [vmem:[#allocation2 + $0x18] sm:$0xff]
      %v3563 = vld [vmem:[#allocation2 + $0x20] sm:$0xff]
      %v3564 = vld [vmem:[#allocation2 + $0x28] sm:$0xff]
      %v3565 = vld [vmem:[#allocation2 + $0x30] sm:$0xff]
      %v3566 = vld [vmem:[#allocation2 + $0x38] sm:$0xff]
      %v3567 = vld [vmem:[#allocation2 + $0x40] sm:$0xff]
      %v3568 = vld [vmem:[#allocation2 + $0x48] sm:$0xff]
      %v3569 = vld [vmem:[#allocation2 + $0x50] sm:$0xff]
      %v3570 = vld [vmem:[#allocation2 + $0x58] sm:$0xff]
      %v3571 = vld [vmem:[#allocation2 + $0x60] sm:$0xff]
      %v3572 = vld [vmem:[#allocation2 + $0x68] sm:$0xff]
      %v3573 = vld [vmem:[#allocation2 + $0x70] sm:$0xff]
      %v3574 = vld [vmem:[#allocation2 + $0x78] sm:$0xff]
      %v3575 = vld [vmem:[#allocation2 + $0x80] sm:$0xff]
      %v3576 = vld [vmem:[#allocation2 + $0x88] sm:$0xff]
      %v3577 = vld [vmem:[#allocation2 + $0x90] sm:$0xff]
      %v3578 = vld [vmem:[#allocation2 + $0x98] sm:$0xff]
      %v3579 = vld [vmem:[#allocation2 + $0xa0] sm:$0xff]
      %v3580 = vld [vmem:[#allocation2 + $0xa8] sm:$0xff]
      %v3581 = vld [vmem:[#allocation2 + $0xb0] sm:$0xff]
      %v3582 = vld [vmem:[#allocation2 + $0xb8] sm:$0xff]
      %v3583 = vld [vmem:[#allocation2 + $0xc0] sm:$0xff]
      %v3584 = vld [vmem:[#allocation2 + $0xc8] sm:$0xff]
      %v3585 = vld [vmem:[#allocation2 + $0xd0] sm:$0xff]
      %v3586 = vld [vmem:[#allocation2 + $0xd8] sm:$0xff]
      %v3587 = vld [vmem:[#allocation2 + $0xe0] sm:$0xff]
      %v3588 = vld [vmem:[#allocation2 + $0xe8] sm:$0xff]
      %v3589 = vld [vmem:[#allocation2 + $0xf0] sm:$0xff]
      %v3590 = vld [vmem:[#allocation2 + $0xf8] sm:$0xff]
      %v3591 = vld [vmem:[#allocation2 + $0x100] sm:$0xff]
      %v3592 = vld [vmem:[#allocation2 + $0x108] sm:$0xff]
      %v3593 = vld [vmem:[#allocation2 + $0x110] sm:$0xff]
      %v3594 = vld [vmem:[#allocation2 + $0x118] sm:$0xff]
      %v3595 = vld [vmem:[#allocation2 + $0x120] sm:$0xff]
      %v3596 = vld [vmem:[#allocation2 + $0x128] sm:$0xff]
      %v3597 = vld [vmem:[#allocation2 + $0x130] sm:$0xff]
      %v3598 = vld [vmem:[#allocation2 + $0x138] sm:$0xff]
      %v3599 = vld [vmem:[#allocation2 + $0x140] sm:$0xff]
      %v3600 = vpack.c.bf16 %v3560, %v3559
      %v3601 = vpack.c.bf16 %v3562, %v3561
      %v3602 = vpack.c.bf16 %v3564, %v3563
      %v3603 = vpack.c.bf16 %v3566, %v3565
      %v3604 = vpack.c.bf16 %v3568, %v3567
      %v3605 = vpack.c.bf16 %v3570, %v3569
      %v3606 = vpack.c.bf16 %v3572, %v3571
      %v3607 = vpack.c.bf16 %v3574, %v3573
      %v3608 = vpack.c.bf16 %v3576, %v3575
      %v3609 = vpack.c.bf16 %v3578, %v3577
      %v3610 = vpack.c.bf16 %v3580, %v3579
      %v3611 = vpack.c.bf16 %v3582, %v3581
      %v3612 = vpack.c.bf16 %v3584, %v3583
      %v3613 = vpack.c.bf16 %v3586, %v3585
      %v3614 = vpack.c.bf16 %v3588, %v3587
      %v3615 = vpack.c.bf16 %v3590, %v3589
      %v3616 = vpack.c.bf16 %v3592, %v3591
      %v3617 = vpack.c.bf16 %v3594, %v3593
      %v3618 = vld [vmem:[%s4] sm:$0x3]
      %v3619 = vpack.c.bf16 %v3595, %v3595
      %s3620 = scalar_lea.vmem %s4, 2
      %v3621 = vld [vmem:[%s3620] sm:$0x3]
      %v3623 = vshrl.u32 %v3600, 16
      %v3625 = vshll.u32 %v3600, 16
      %v3627 = vrot.slane %v3625, 1
      %v3628 = vor.u32 %v3623, %v3627
      %v3630 = vshll.u32 %v3601, 16
      %v3632 = vrot.slane %v3630, 1
      %v3633 = vsel %vm344, %v3628, %v3632
      %v3634 = vshrl.u32 %v3601, 16
      %v3636 = vor.u32 %v3634, %v3632
      %v3638 = vshll.u32 %v3602, 16
      %v3640 = vrot.slane %v3638, 1
      %v3641 = vsel %vm344, %v3636, %v3640
      %v3642 = vshrl.u32 %v3602, 16
      %v3644 = vor.u32 %v3642, %v3640
      %v3646 = vshll.u32 %v3603, 16
      %v3648 = vrot.slane %v3646, 1
      %v3649 = vsel %vm344, %v3644, %v3648
      %v3650 = vshrl.u32 %v3603, 16
      %v3652 = vor.u32 %v3650, %v3648
      %v3654 = vshll.u32 %v3604, 16
      %v3656 = vrot.slane %v3654, 1
      %v3657 = vsel %vm344, %v3652, %v3656
      %v3658 = vshrl.u32 %v3604, 16
      %v3660 = vor.u32 %v3658, %v3656
      %v3662 = vshll.u32 %v3605, 16
      %v3664 = vrot.slane %v3662, 1
      %v3665 = vsel %vm344, %v3660, %v3664
      %v3666 = vshrl.u32 %v3605, 16
      %v3668 = vor.u32 %v3666, %v3664
      %v3670 = vshll.u32 %v3606, 16
      %v3672 = vrot.slane %v3670, 1
      %v3673 = vsel %vm344, %v3668, %v3672
      %v3674 = vshrl.u32 %v3606, 16
      %v3676 = vor.u32 %v3674, %v3672
      %v3678 = vshll.u32 %v3607, 16
      %v3680 = vrot.slane %v3678, 1
      %v3681 = vsel %vm344, %v3676, %v3680
      %v3682 = vshrl.u32 %v3607, 16
      %v3684 = vor.u32 %v3682, %v3680
      %v3686 = vshll.u32 %v3608, 16
      %v3688 = vrot.slane %v3686, 1
      %v3689 = vsel %vm344, %v3684, %v3688
      %v3690 = vshrl.u32 %v3608, 16
      %v3692 = vor.u32 %v3690, %v3688
      %v3694 = vshll.u32 %v3609, 16
      %v3696 = vrot.slane %v3694, 1
      %v3697 = vsel %vm344, %v3692, %v3696
      %v3698 = vshrl.u32 %v3609, 16
      %v3700 = vor.u32 %v3698, %v3696
      %v3702 = vshll.u32 %v3610, 16
      %v3704 = vrot.slane %v3702, 1
      %v3705 = vsel %vm344, %v3700, %v3704
      %v3706 = vshrl.u32 %v3610, 16
      %v3708 = vor.u32 %v3706, %v3704
      %v3710 = vshll.u32 %v3611, 16
      %v3712 = vrot.slane %v3710, 1
      %v3713 = vsel %vm344, %v3708, %v3712
      %v3714 = vshrl.u32 %v3611, 16
      %v3716 = vor.u32 %v3714, %v3712
      %v3718 = vshll.u32 %v3612, 16
      %v3720 = vrot.slane %v3718, 1
      %v3721 = vsel %vm344, %v3716, %v3720
      %v3722 = vshrl.u32 %v3612, 16
      %v3724 = vor.u32 %v3722, %v3720
      %v3726 = vshll.u32 %v3613, 16
      %v3728 = vrot.slane %v3726, 1
      %v3729 = vsel %vm344, %v3724, %v3728
      %v3730 = vshrl.u32 %v3613, 16
      %v3732 = vor.u32 %v3730, %v3728
      %v3734 = vshll.u32 %v3614, 16
      %v3736 = vrot.slane %v3734, 1
      %v3737 = vsel %vm344, %v3732, %v3736
      %v3738 = vshrl.u32 %v3614, 16
      %v3740 = vor.u32 %v3738, %v3736
      %v3742 = vshll.u32 %v3615, 16
      %v3744 = vrot.slane %v3742, 1
      %v3745 = vsel %vm344, %v3740, %v3744
      %v3746 = vshrl.u32 %v3615, 16
      %v3748 = vor.u32 %v3746, %v3744
      %v3750 = vshll.u32 %v3616, 16
      %v3752 = vrot.slane %v3750, 1
      %v3753 = vsel %vm344, %v3748, %v3752
      %v3754 = vshrl.u32 %v3616, 16
      %v3756 = vor.u32 %v3754, %v3752
      %v3758 = vshll.u32 %v3617, 16
      %v3760 = vrot.slane %v3758, 1
      %v3761 = vsel %vm344, %v3756, %v3760
      %v3762 = vshrl.u32 %v3617, 16
      %v3764 = vor.u32 %v3762, %v3760
      %v3766 = vshll.u32 %v3619, 16
      %v3768 = vrot.slane %v3766, 1
      %v3769 = vsel %vm344, %v3764, %v3768
      %v3771 = vsel %vm493, %v3633, 0
      %v3774 = vsel %vm493, %v3641, 0
      %v3777 = vsel %vm493, %v3649, 0
      %v3780 = vsel %vm493, %v3657, 0
      %v3783 = vsel %vm493, %v3665, 0
      %v3786 = vsel %vm493, %v3673, 0
      %v3789 = vsel %vm493, %v3681, 0
      %v3792 = vsel %vm493, %v3689, 0
      %v3795 = vsel %vm493, %v3697, 0
      %v3798 = vsel %vm493, %v3705, 0
      %v3801 = vsel %vm493, %v3713, 0
      %v3804 = vsel %vm493, %v3721, 0
      %v3807 = vsel %vm493, %v3729, 0
      %v3810 = vsel %vm493, %v3737, 0
      %v3813 = vsel %vm493, %v3745, 0
      %v3816 = vsel %vm493, %v3753, 0
      %v3819 = vsel %vm493, %v3761, 0
      %v3822 = vsel %vm493, %v3769, 0
      %v3825 = vsel %vm548, %v3621, 0
      %3827 = vmatprep.subr.bf16.mxu0 0
      %3828 = vmatpush1.bf16.msra.mxu0 %v3825
      %3829 = vmatprep.subr.bf16.mxu0 0
      %3830 = vmatpush1.bf16.msra.mxu0 0
      %3831 = vmatprep.subr.bf16.mxu0 0
      %3832 = vmatpush1.bf16.msra.mxu0 0
      %3833 = vmatprep.subr.bf16.mxu0 0
      %3834 = vmatpush1.bf16.msra.mxu0 0
      %3835 = vmatprep.subr.bf16.mxu0 0
      %3836 = vmatpush1.bf16.msra.mxu0 0
      %3837 = vmatprep.subr.bf16.mxu0 0
      %3838 = vmatpush1.bf16.msra.mxu0 0
      %3839 = vmatprep.subr.bf16.mxu0 0
      %3840 = vmatpush1.bf16.msra.mxu0 0
      %3841 = vmatprep.subr.bf16.mxu0 0
      %3842 = vmatpush1.bf16.msra.mxu0 0
      %3843 = vmatprep.subr.bf16.mxu0 0
      %3844 = vmatpush1.bf16.msra.mxu0 0
      %3845 = vmatprep.subr.bf16.mxu0 0
      %3846 = vmatpush1.bf16.msra.mxu0 0
      %3847 = vmatprep.subr.bf16.mxu0 0
      %3848 = vmatpush1.bf16.msra.mxu0 0
      %3849 = vmatprep.subr.bf16.mxu0 0
      %3850 = vmatpush1.bf16.msra.mxu0 0
      %3851 = vmatprep.subr.bf16.mxu0 0
      %3852 = vmatpush1.bf16.msra.mxu0 0
      %3853 = vmatprep.subr.bf16.mxu0 0
      %3854 = vmatpush1.bf16.msra.mxu0 0
      %3855 = vmatprep.subr.bf16.mxu0 0
      %3856 = vmatpush1.bf16.msra.mxu0 0
      %3857 = vmatprep.subr.bf16.mxu0 0
      %3858 = vmatpush1.bf16.msra.mxu0 0
      %3859 = vmatprep.mubr.bf16.mxu0 0
      %3860 = vmatmul.mubr.bf16.gmra.mrb[0].mxu0 %v3771
      %v3861 = vpop.f32.mrb[0].mxu0
      %v3862 = vadd.f32 0.0, %v3861
      %v3863 = vpop.f32.mrb[0].mxu0
      %v3864 = vpop.f32.mrb[0].mxu0
      %v3865 = vadd.f32 0.0, %v3864
      %v3866 = vpop.f32.mrb[0].mxu0
      %3867 = vmatprep.mubr.bf16.mxu0 0
      %3868 = vmatmul.mubr.bf16.gmra.mrb[0].mxu0 %v3774
      %v3869 = vpop.f32.mrb[0].mxu0
      %v3870 = vadd.f32 0.0, %v3869
      %v3871 = vpop.f32.mrb[0].mxu0
      %v3872 = vpop.f32.mrb[0].mxu0
      %v3873 = vadd.f32 0.0, %v3872
      %v3874 = vpop.f32.mrb[0].mxu0
      %3875 = vmatprep.mubr.bf16.mxu0 0
      %3876 = vmatmul.mubr.bf16.gmra.mrb[0].mxu0 %v3777
      %v3877 = vpop.f32.mrb[0].mxu0
      %v3878 = vadd.f32 0.0, %v3877
      %v3879 = vpop.f32.mrb[0].mxu0
      %v3880 = vpop.f32.mrb[0].mxu0
      %v3881 = vadd.f32 0.0, %v3880
      %v3882 = vpop.f32.mrb[0].mxu0
      %3883 = vmatprep.mubr.bf16.mxu0 0
      %3884 = vmatmul.mubr.bf16.gmra.mrb[0].mxu0 %v3780
      %v3885 = vpop.f32.mrb[0].mxu0
      %v3886 = vadd.f32 0.0, %v3885
      %v3887 = vpop.f32.mrb[0].mxu0
      %v3888 = vpop.f32.mrb[0].mxu0
      %v3889 = vadd.f32 0.0, %v3888
      %v3890 = vpop.f32.mrb[0].mxu0
      %3891 = vmatprep.mubr.bf16.mxu0 0
      %3892 = vmatmul.mubr.bf16.gmra.mrb[0].mxu0 %v3783
      %v3893 = vpop.f32.mrb[0].mxu0
      %v3894 = vadd.f32 0.0, %v3893
      %v3895 = vpop.f32.mrb[0].mxu0
      %v3896 = vpop.f32.mrb[0].mxu0
      %v3897 = vadd.f32 0.0, %v3896
      %v3898 = vpop.f32.mrb[0].mxu0
      %3899 = vmatprep.mubr.bf16.mxu0 0
      %3900 = vmatmul.mubr.bf16.gmra.mrb[0].mxu0 %v3786
      %v3901 = vpop.f32.mrb[0].mxu0
      %v3902 = vadd.f32 0.0, %v3901
      %v3903 = vpop.f32.mrb[0].mxu0
      %v3904 = vpop.f32.mrb[0].mxu0
      %v3905 = vadd.f32 0.0, %v3904
      %v3906 = vpop.f32.mrb[0].mxu0
      %3907 = vmatprep.mubr.bf16.mxu0 0
      %3908 = vmatmul.mubr.bf16.gmra.mrb[0].mxu0 %v3789
      %v3909 = vpop.f32.mrb[0].mxu0
      %v3910 = vadd.f32 0.0, %v3909
      %v3911 = vpop.f32.mrb[0].mxu0
      %v3912 = vpop.f32.mrb[0].mxu0
      %v3913 = vadd.f32 0.0, %v3912
      %v3914 = vpop.f32.mrb[0].mxu0
      %3915 = vmatprep.mubr.bf16.mxu0 0
      %3916 = vmatmul.mubr.bf16.gmra.mrb[0].mxu0 %v3792
      %v3917 = vpop.f32.mrb[0].mxu0
      %v3918 = vadd.f32 0.0, %v3917
      %v3919 = vpop.f32.mrb[0].mxu0
      %v3920 = vpop.f32.mrb[0].mxu0
      %v3921 = vadd.f32 0.0, %v3920
      %v3922 = vpop.f32.mrb[0].mxu0
      %3923 = vmatprep.mubr.bf16.mxu0 0
      %3924 = vmatmul.mubr.bf16.gmra.mrb[0].mxu0 %v3795
      %v3925 = vpop.f32.mrb[0].mxu0
      %v3926 = vadd.f32 0.0, %v3925
      %v3927 = vpop.f32.mrb[0].mxu0
      %v3928 = vpop.f32.mrb[0].mxu0
      %v3929 = vadd.f32 0.0, %v3928
      %v3930 = vpop.f32.mrb[0].mxu0
      %3931 = vmatprep.mubr.bf16.mxu0 0
      %3932 = vmatmul.mubr.bf16.gmra.mrb[0].mxu0 %v3798
      %v3933 = vpop.f32.mrb[0].mxu0
      %v3934 = vadd.f32 0.0, %v3933
      %v3935 = vpop.f32.mrb[0].mxu0
      %v3936 = vpop.f32.mrb[0].mxu0
      %v3937 = vadd.f32 0.0, %v3936
      %v3938 = vpop.f32.mrb[0].mxu0
      %3939 = vmatprep.mubr.bf16.mxu0 0
      %3940 = vmatmul.mubr.bf16.gmra.mrb[0].mxu0 %v3801
      %v3941 = vpop.f32.mrb[0].mxu0
      %v3942 = vadd.f32 0.0, %v3941
      %v3943 = vpop.f32.mrb[0].mxu0
      %v3944 = vpop.f32.mrb[0].mxu0
      %v3945 = vadd.f32 0.0, %v3944
      %v3946 = vpop.f32.mrb[0].mxu0
      %3947 = vmatprep.mubr.bf16.mxu0 0
      %3948 = vmatmul.mubr.bf16.gmra.mrb[0].mxu0 %v3804
      %v3949 = vpop.f32.mrb[0].mxu0
      %v3950 = vadd.f32 0.0, %v3949
      %v3951 = vpop.f32.mrb[0].mxu0
      %v3952 = vpop.f32.mrb[0].mxu0
      %v3953 = vadd.f32 0.0, %v3952
      %v3954 = vpop.f32.mrb[0].mxu0
      %3955 = vmatprep.mubr.bf16.mxu0 0
      %3956 = vmatmul.mubr.bf16.gmra.mrb[0].mxu0 %v3807
      %v3957 = vpop.f32.mrb[0].mxu0
      %v3958 = vadd.f32 0.0, %v3957
      %v3959 = vpop.f32.mrb[0].mxu0
      %v3960 = vpop.f32.mrb[0].mxu0
      %v3961 = vadd.f32 0.0, %v3960
      %v3962 = vpop.f32.mrb[0].mxu0
      %3963 = vmatprep.mubr.bf16.mxu0 0
      %3964 = vmatmul.mubr.bf16.gmra.mrb[0].mxu0 %v3810
      %v3965 = vpop.f32.mrb[0].mxu0
      %v3966 = vadd.f32 0.0, %v3965
      %v3967 = vpop.f32.mrb[0].mxu0
      %v3968 = vpop.f32.mrb[0].mxu0
      %v3969 = vadd.f32 0.0, %v3968
      %v3970 = vpop.f32.mrb[0].mxu0
      %3971 = vmatprep.mubr.bf16.mxu0 0
      %3972 = vmatmul.mubr.bf16.gmra.mrb[0].mxu0 %v3813
      %v3973 = vpop.f32.mrb[0].mxu0
      %v3974 = vadd.f32 0.0, %v3973
      %v3975 = vpop.f32.mrb[0].mxu0
      %v3976 = vpop.f32.mrb[0].mxu0
      %v3977 = vadd.f32 0.0, %v3976
      %v3978 = vpop.f32.mrb[0].mxu0
      %3979 = vmatprep.mubr.bf16.mxu0 0
      %3980 = vmatmul.mubr.bf16.gmra.mrb[0].mxu0 %v3816
      %v3981 = vpop.f32.mrb[0].mxu0
      %v3982 = vadd.f32 0.0, %v3981
      %v3983 = vpop.f32.mrb[0].mxu0
      %v3984 = vpop.f32.mrb[0].mxu0
      %v3985 = vadd.f32 0.0, %v3984
      %v3986 = vpop.f32.mrb[0].mxu0
      %3987 = vmatprep.mubr.bf16.mxu0 0
      %3988 = vmatmul.mubr.bf16.gmra.mrb[0].mxu0 %v3819
      %v3989 = vpop.f32.mrb[0].mxu0
      %v3990 = vadd.f32 0.0, %v3989
      %v3991 = vpop.f32.mrb[0].mxu0
      %v3992 = vpop.f32.mrb[0].mxu0
      %v3993 = vadd.f32 0.0, %v3992
      %v3994 = vpop.f32.mrb[0].mxu0
      %3995 = vmatprep.mubr.bf16.mxu0 0
      %3996 = vmatmul.mubr.bf16.gmra.mrb[0].mxu0 %v3822
      %v3997 = vpop.f32.mrb[0].mxu0
      %v3998 = vadd.f32 0.0, %v3997
      %v3999 = vpop.f32.mrb[0].mxu0
      %v4000 = vpop.f32.mrb[0].mxu0
      %v4001 = vadd.f32 0.0, %v4000
      %v4002 = vpop.f32.mrb[0].mxu0
      %4003 = vdwg.mxu0
      %v4004 = vsel %vm493, %v3600, 0
      %v4006 = vsel %vm493, %v3601, 0
      %v4008 = vsel %vm493, %v3602, 0
      %v4010 = vsel %vm493, %v3603, 0
      %v4012 = vsel %vm493, %v3604, 0
      %v4014 = vsel %vm493, %v3605, 0
      %v4016 = vsel %vm493, %v3606, 0
      %v4018 = vsel %vm493, %v3607, 0
      %v4020 = vsel %vm493, %v3608, 0
      %v4022 = vsel %vm493, %v3609, 0
      %v4024 = vsel %vm493, %v3610, 0
      %v4026 = vsel %vm493, %v3611, 0
      %v4028 = vsel %vm493, %v3612, 0
      %v4030 = vsel %vm493, %v3613, 0
      %v4032 = vsel %vm493, %v3614, 0
      %v4034 = vsel %vm493, %v3615, 0
      %v4036 = vsel %vm493, %v3616, 0
      %v4038 = vsel %vm493, %v3617, 0
      %v4041 = vsel %vm548, %v3618, 0
      %4043 = vmatprep.subr.bf16.mxu0 0
      %4044 = vmatpush1.bf16.msra.mxu0 %v4041
      %4045 = vmatprep.subr.bf16.mxu0 0
      %4046 = vmatpush1.bf16.msra.mxu0 0
      %4047 = vmatprep.subr.bf16.mxu0 0
      %4048 = vmatpush1.bf16.msra.mxu0 0
      %4049 = vmatprep.subr.bf16.mxu0 0
      %4050 = vmatpush1.bf16.msra.mxu0 0
      %4051 = vmatprep.subr.bf16.mxu0 0
      %4052 = vmatpush1.bf16.msra.mxu0 0
      %4053 = vmatprep.subr.bf16.mxu0 0
      %4054 = vmatpush1.bf16.msra.mxu0 0
      %4055 = vmatprep.subr.bf16.mxu0 0
      %4056 = vmatpush1.bf16.msra.mxu0 0
      %4057 = vmatprep.subr.bf16.mxu0 0
      %4058 = vmatpush1.bf16.msra.mxu0 0
      %4059 = vmatprep.subr.bf16.mxu0 0
      %4060 = vmatpush1.bf16.msra.mxu0 0
      %4061 = vmatprep.subr.bf16.mxu0 0
      %4062 = vmatpush1.bf16.msra.mxu0 0
      %4063 = vmatprep.subr.bf16.mxu0 0
      %4064 = vmatpush1.bf16.msra.mxu0 0
      %4065 = vmatprep.subr.bf16.mxu0 0
      %4066 = vmatpush1.bf16.msra.mxu0 0
      %4067 = vmatprep.subr.bf16.mxu0 0
      %4068 = vmatpush1.bf16.msra.mxu0 0
      %4069 = vmatprep.subr.bf16.mxu0 0
      %4070 = vmatpush1.bf16.msra.mxu0 0
      %4071 = vmatprep.subr.bf16.mxu0 0
      %4072 = vmatpush1.bf16.msra.mxu0 0
      %4073 = vmatprep.subr.bf16.mxu0 0
      %4074 = vmatpush1.bf16.msra.mxu0 0
      %4075 = vmatprep.mubr.bf16.mxu0 0
      %4076 = vmatmul.mubr.bf16.gmra.mrb[0].mxu0 %v4004
      %v4077 = vpop.f32.mrb[0].mxu0
      %v4078 = vadd.f32 %v3862, %v4077
      %v4079 = vpop.f32.mrb[0].mxu0
      %v4080 = vpop.f32.mrb[0].mxu0
      %v4081 = vadd.f32 %v3865, %v4080
      %v4082 = vpop.f32.mrb[0].mxu0
      %4083 = vmatprep.mubr.bf16.mxu0 0
      %4084 = vmatmul.mubr.bf16.gmra.mrb[0].mxu0 %v4006
      %v4085 = vpop.f32.mrb[0].mxu0
      %v4086 = vadd.f32 %v3870, %v4085
      %v4087 = vpop.f32.mrb[0].mxu0
      %v4088 = vpop.f32.mrb[0].mxu0
      %v4089 = vadd.f32 %v3873, %v4088
      %v4090 = vpop.f32.mrb[0].mxu0
      %4091 = vmatprep.mubr.bf16.mxu0 0
      %4092 = vmatmul.mubr.bf16.gmra.mrb[0].mxu0 %v4008
      %v4093 = vpop.f32.mrb[0].mxu0
      %v4094 = vadd.f32 %v3878, %v4093
      %v4095 = vpop.f32.mrb[0].mxu0
      %v4096 = vpop.f32.mrb[0].mxu0
      %v4097 = vadd.f32 %v3881, %v4096
      %v4098 = vpop.f32.mrb[0].mxu0
      %4099 = vmatprep.mubr.bf16.mxu0 0
      %4100 = vmatmul.mubr.bf16.gmra.mrb[0].mxu0 %v4010
      %v4101 = vpop.f32.mrb[0].mxu0
      %v4102 = vadd.f32 %v3886, %v4101
      %v4103 = vpop.f32.mrb[0].mxu0
      %v4104 = vpop.f32.mrb[0].mxu0
      %v4105 = vadd.f32 %v3889, %v4104
      %v4106 = vpop.f32.mrb[0].mxu0
      %4107 = vmatprep.mubr.bf16.mxu0 0
      %4108 = vmatmul.mubr.bf16.gmra.mrb[0].mxu0 %v4012
      %v4109 = vpop.f32.mrb[0].mxu0
      %v4110 = vadd.f32 %v3894, %v4109
      %v4111 = vpop.f32.mrb[0].mxu0
      %v4112 = vpop.f32.mrb[0].mxu0
      %v4113 = vadd.f32 %v3897, %v4112
      %v4114 = vpop.f32.mrb[0].mxu0
      %4115 = vmatprep.mubr.bf16.mxu0 0
      %4116 = vmatmul.mubr.bf16.gmra.mrb[0].mxu0 %v4014
      %v4117 = vpop.f32.mrb[0].mxu0
      %v4118 = vadd.f32 %v3902, %v4117
      %v4119 = vpop.f32.mrb[0].mxu0
      %v4120 = vpop.f32.mrb[0].mxu0
      %v4121 = vadd.f32 %v3905, %v4120
      %v4122 = vpop.f32.mrb[0].mxu0
      %4123 = vmatprep.mubr.bf16.mxu0 0
      %4124 = vmatmul.mubr.bf16.gmra.mrb[0].mxu0 %v4016
      %v4125 = vpop.f32.mrb[0].mxu0
      %v4126 = vadd.f32 %v3910, %v4125
      %v4127 = vpop.f32.mrb[0].mxu0
      %v4128 = vpop.f32.mrb[0].mxu0
      %v4129 = vadd.f32 %v3913, %v4128
      %v4130 = vpop.f32.mrb[0].mxu0
      %4131 = vmatprep.mubr.bf16.mxu0 0
      %4132 = vmatmul.mubr.bf16.gmra.mrb[0].mxu0 %v4018
      %v4133 = vpop.f32.mrb[0].mxu0
      %v4134 = vadd.f32 %v3918, %v4133
      %v4135 = vpop.f32.mrb[0].mxu0
      %v4136 = vpop.f32.mrb[0].mxu0
      %v4137 = vadd.f32 %v3921, %v4136
      %v4138 = vpop.f32.mrb[0].mxu0
      %4139 = vmatprep.mubr.bf16.mxu0 0
      %4140 = vmatmul.mubr.bf16.gmra.mrb[0].mxu0 %v4020
      %v4141 = vpop.f32.mrb[0].mxu0
      %v4142 = vadd.f32 %v3926, %v4141
      %v4143 = vpop.f32.mrb[0].mxu0
      %v4144 = vpop.f32.mrb[0].mxu0
      %v4145 = vadd.f32 %v3929, %v4144
      %v4146 = vpop.f32.mrb[0].mxu0
      %4147 = vmatprep.mubr.bf16.mxu0 0
      %4148 = vmatmul.mubr.bf16.gmra.mrb[0].mxu0 %v4022
      %v4149 = vpop.f32.mrb[0].mxu0
      %v4150 = vadd.f32 %v3934, %v4149
      %v4151 = vpop.f32.mrb[0].mxu0
      %v4152 = vpop.f32.mrb[0].mxu0
      %v4153 = vadd.f32 %v3937, %v4152
      %v4154 = vpop.f32.mrb[0].mxu0
      %4155 = vmatprep.mubr.bf16.mxu0 0
      %4156 = vmatmul.mubr.bf16.gmra.mrb[0].mxu0 %v4024
      %v4157 = vpop.f32.mrb[0].mxu0
      %v4158 = vadd.f32 %v3942, %v4157
      %v4159 = vpop.f32.mrb[0].mxu0
      %v4160 = vpop.f32.mrb[0].mxu0
      %v4161 = vadd.f32 %v3945, %v4160
      %v4162 = vpop.f32.mrb[0].mxu0
      %4163 = vmatprep.mubr.bf16.mxu0 0
      %4164 = vmatmul.mubr.bf16.gmra.mrb[0].mxu0 %v4026
      %v4165 = vpop.f32.mrb[0].mxu0
      %v4166 = vadd.f32 %v3950, %v4165
      %v4167 = vpop.f32.mrb[0].mxu0
      %v4168 = vpop.f32.mrb[0].mxu0
      %v4169 = vadd.f32 %v3953, %v4168
      %v4170 = vpop.f32.mrb[0].mxu0
      %4171 = vmatprep.mubr.bf16.mxu0 0
      %4172 = vmatmul.mubr.bf16.gmra.mrb[0].mxu0 %v4028
      %v4173 = vpop.f32.mrb[0].mxu0
      %v4174 = vadd.f32 %v3958, %v4173
      %v4175 = vpop.f32.mrb[0].mxu0
      %v4176 = vpop.f32.mrb[0].mxu0
      %v4177 = vadd.f32 %v3961, %v4176
      %v4178 = vpop.f32.mrb[0].mxu0
      %4179 = vmatprep.mubr.bf16.mxu0 0
      %4180 = vmatmul.mubr.bf16.gmra.mrb[0].mxu0 %v4030
      %v4181 = vpop.f32.mrb[0].mxu0
      %v4182 = vadd.f32 %v3966, %v4181
      %v4183 = vpop.f32.mrb[0].mxu0
      %v4184 = vpop.f32.mrb[0].mxu0
      %v4185 = vadd.f32 %v3969, %v4184
      %v4186 = vpop.f32.mrb[0].mxu0
      %4187 = vmatprep.mubr.bf16.mxu0 0
      %4188 = vmatmul.mubr.bf16.gmra.mrb[0].mxu0 %v4032
      %v4189 = vpop.f32.mrb[0].mxu0
      %v4190 = vadd.f32 %v3974, %v4189
      %v4191 = vpop.f32.mrb[0].mxu0
      %v4192 = vpop.f32.mrb[0].mxu0
      %v4193 = vadd.f32 %v3977, %v4192
      %v4194 = vpop.f32.mrb[0].mxu0
      %4195 = vmatprep.mubr.bf16.mxu0 0
      %4196 = vmatmul.mubr.bf16.gmra.mrb[0].mxu0 %v4034
      %v4197 = vpop.f32.mrb[0].mxu0
      %v4198 = vadd.f32 %v3982, %v4197
      %v4199 = vpop.f32.mrb[0].mxu0
      %v4200 = vpop.f32.mrb[0].mxu0
      %v4201 = vadd.f32 %v3985, %v4200
      %v4202 = vpop.f32.mrb[0].mxu0
      %4203 = vmatprep.mubr.bf16.mxu0 0
      %4204 = vmatmul.mubr.bf16.gmra.mrb[0].mxu0 %v4036
      %v4205 = vpop.f32.mrb[0].mxu0
      %v4206 = vadd.f32 %v3990, %v4205
      %v4207 = vpop.f32.mrb[0].mxu0
      %v4208 = vpop.f32.mrb[0].mxu0
      %v4209 = vadd.f32 %v3993, %v4208
      %v4210 = vpop.f32.mrb[0].mxu0
      %4211 = vmatprep.mubr.bf16.mxu0 0
      %4212 = vmatmul.mubr.bf16.gmra.mrb[0].mxu0 %v4038
      %v4213 = vpop.f32.mrb[0].mxu0
      %v4214 = vadd.f32 %v3998, %v4213
      %v4215 = vpop.f32.mrb[0].mxu0
      %v4216 = vpop.f32.mrb[0].mxu0
      %v4217 = vadd.f32 %v4001, %v4216
      %v4218 = vpop.f32.mrb[0].mxu0
      %4219 = vdwg.mxu0
      %s4220 = scalar_lea.vmem %s4, 4
      %v4221 = vld [vmem:[%s4220] sm:$0x3]
      %v4241 = vrot.slane %v3600, 1
      %v4242 = vrot.slane %v3601, 1
      %v4243 = vsel %vm966, %v4241, %v4242
      %v4244 = vrot.slane %v3602, 1
      %v4245 = vsel %vm966, %v4242, %v4244
      %v4246 = vrot.slane %v3603, 1
      %v4247 = vsel %vm966, %v4244, %v4246
      %v4248 = vrot.slane %v3604, 1
      %v4249 = vsel %vm966, %v4246, %v4248
      %v4250 = vrot.slane %v3605, 1
      %v4251 = vsel %vm966, %v4248, %v4250
      %v4252 = vrot.slane %v3606, 1
      %v4253 = vsel %vm966, %v4250, %v4252
      %v4254 = vrot.slane %v3607, 1
      %v4255 = vsel %vm966, %v4252, %v4254
      %v4256 = vrot.slane %v3608, 1
      %v4257 = vsel %vm966, %v4254, %v4256
      %v4258 = vrot.slane %v3609, 1
      %v4259 = vsel %vm966, %v4256, %v4258
      %v4260 = vrot.slane %v3610, 1
      %v4261 = vsel %vm966, %v4258, %v4260
      %v4262 = vrot.slane %v3611, 1
      %v4263 = vsel %vm966, %v4260, %v4262
      %v4264 = vrot.slane %v3612, 1
      %v4265 = vsel %vm966, %v4262, %v4264
      %v4266 = vrot.slane %v3613, 1
      %v4267 = vsel %vm966, %v4264, %v4266
      %v4268 = vrot.slane %v3614, 1
      %v4269 = vsel %vm966, %v4266, %v4268
      %v4270 = vrot.slane %v3615, 1
      %v4271 = vsel %vm966, %v4268, %v4270
      %v4272 = vrot.slane %v3616, 1
      %v4273 = vsel %vm966, %v4270, %v4272
      %v4274 = vrot.slane %v3617, 1
      %v4275 = vsel %vm966, %v4272, %v4274
      %v4276 = vrot.slane %v3619, 1
      %v4277 = vsel %vm966, %v4274, %v4276
      %v4279 = vsel %vm493, %v4243, 0
      %v4282 = vsel %vm493, %v4245, 0
      %v4285 = vsel %vm493, %v4247, 0
      %v4288 = vsel %vm493, %v4249, 0
      %v4291 = vsel %vm493, %v4251, 0
      %v4294 = vsel %vm493, %v4253, 0
      %v4297 = vsel %vm493, %v4255, 0
      %v4300 = vsel %vm493, %v4257, 0
      %v4303 = vsel %vm493, %v4259, 0
      %v4306 = vsel %vm493, %v4261, 0
      %v4309 = vsel %vm493, %v4263, 0
      %v4312 = vsel %vm493, %v4265, 0
      %v4315 = vsel %vm493, %v4267, 0
      %v4318 = vsel %vm493, %v4269, 0
      %v4321 = vsel %vm493, %v4271, 0
      %v4324 = vsel %vm493, %v4273, 0
      %v4327 = vsel %vm493, %v4275, 0
      %v4330 = vsel %vm493, %v4277, 0
      %v4333 = vsel %vm548, %v4221, 0
      %4335 = vmatprep.subr.bf16.mxu0 0
      %4336 = vmatpush1.bf16.msra.mxu0 %v4333
      %4337 = vmatprep.subr.bf16.mxu0 0
      %4338 = vmatpush1.bf16.msra.mxu0 0
      %4339 = vmatprep.subr.bf16.mxu0 0
      %4340 = vmatpush1.bf16.msra.mxu0 0
      %4341 = vmatprep.subr.bf16.mxu0 0
      %4342 = vmatpush1.bf16.msra.mxu0 0
      %4343 = vmatprep.subr.bf16.mxu0 0
      %4344 = vmatpush1.bf16.msra.mxu0 0
      %4345 = vmatprep.subr.bf16.mxu0 0
      %4346 = vmatpush1.bf16.msra.mxu0 0
      %4347 = vmatprep.subr.bf16.mxu0 0
      %4348 = vmatpush1.bf16.msra.mxu0 0
      %4349 = vmatprep.subr.bf16.mxu0 0
      %4350 = vmatpush1.bf16.msra.mxu0 0
      %4351 = vmatprep.subr.bf16.mxu0 0
      %4352 = vmatpush1.bf16.msra.mxu0 0
      %4353 = vmatprep.subr.bf16.mxu0 0
      %4354 = vmatpush1.bf16.msra.mxu0 0
      %4355 = vmatprep.subr.bf16.mxu0 0
      %4356 = vmatpush1.bf16.msra.mxu0 0
      %4357 = vmatprep.subr.bf16.mxu0 0
      %4358 = vmatpush1.bf16.msra.mxu0 0
      %4359 = vmatprep.subr.bf16.mxu0 0
      %4360 = vmatpush1.bf16.msra.mxu0 0
      %4361 = vmatprep.subr.bf16.mxu0 0
      %4362 = vmatpush1.bf16.msra.mxu0 0
      %4363 = vmatprep.subr.bf16.mxu0 0
      %4364 = vmatpush1.bf16.msra.mxu0 0
      %4365 = vmatprep.subr.bf16.mxu0 0
      %4366 = vmatpush1.bf16.msra.mxu0 0
      %4367 = vmatprep.mubr.bf16.mxu0 0
      %4368 = vmatmul.mubr.bf16.gmra.mrb[0].mxu0 %v4279
      %v4369 = vpop.f32.mrb[0].mxu0
      %v4370 = vadd.f32 0.0, %v4369
      %v4371 = vpop.f32.mrb[0].mxu0
      %v4372 = vpop.f32.mrb[0].mxu0
      %v4373 = vadd.f32 0.0, %v4372
      %v4374 = vpop.f32.mrb[0].mxu0
      %4375 = vmatprep.mubr.bf16.mxu0 0
      %4376 = vmatmul.mubr.bf16.gmra.mrb[0].mxu0 %v4282
      %v4377 = vpop.f32.mrb[0].mxu0
      %v4378 = vadd.f32 0.0, %v4377
      %v4379 = vpop.f32.mrb[0].mxu0
      %v4380 = vpop.f32.mrb[0].mxu0
      %v4381 = vadd.f32 0.0, %v4380
      %v4382 = vpop.f32.mrb[0].mxu0
      %4383 = vmatprep.mubr.bf16.mxu0 0
      %4384 = vmatmul.mubr.bf16.gmra.mrb[0].mxu0 %v4285
      %v4385 = vpop.f32.mrb[0].mxu0
      %v4386 = vadd.f32 0.0, %v4385
      %v4387 = vpop.f32.mrb[0].mxu0
      %v4388 = vpop.f32.mrb[0].mxu0
      %v4389 = vadd.f32 0.0, %v4388
      %v4390 = vpop.f32.mrb[0].mxu0
      %4391 = vmatprep.mubr.bf16.mxu0 0
      %4392 = vmatmul.mubr.bf16.gmra.mrb[0].mxu0 %v4288
      %v4393 = vpop.f32.mrb[0].mxu0
      %v4394 = vadd.f32 0.0, %v4393
      %v4395 = vpop.f32.mrb[0].mxu0
      %v4396 = vpop.f32.mrb[0].mxu0
      %v4397 = vadd.f32 0.0, %v4396
      %v4398 = vpop.f32.mrb[0].mxu0
      %4399 = vmatprep.mubr.bf16.mxu0 0
      %4400 = vmatmul.mubr.bf16.gmra.mrb[0].mxu0 %v4291
      %v4401 = vpop.f32.mrb[0].mxu0
      %v4402 = vadd.f32 0.0, %v4401
      %v4403 = vpop.f32.mrb[0].mxu0
      %v4404 = vpop.f32.mrb[0].mxu0
      %v4405 = vadd.f32 0.0, %v4404
      %v4406 = vpop.f32.mrb[0].mxu0
      %4407 = vmatprep.mubr.bf16.mxu0 0
      %4408 = vmatmul.mubr.bf16.gmra.mrb[0].mxu0 %v4294
      %v4409 = vpop.f32.mrb[0].mxu0
      %v4410 = vadd.f32 0.0, %v4409
      %v4411 = vpop.f32.mrb[0].mxu0
      %v4412 = vpop.f32.mrb[0].mxu0
      %v4413 = vadd.f32 0.0, %v4412
      %v4414 = vpop.f32.mrb[0].mxu0
      %4415 = vmatprep.mubr.bf16.mxu0 0
      %4416 = vmatmul.mubr.bf16.gmra.mrb[0].mxu0 %v4297
      %v4417 = vpop.f32.mrb[0].mxu0
      %v4418 = vadd.f32 0.0, %v4417
      %v4419 = vpop.f32.mrb[0].mxu0
      %v4420 = vpop.f32.mrb[0].mxu0
      %v4421 = vadd.f32 0.0, %v4420
      %v4422 = vpop.f32.mrb[0].mxu0
      %4423 = vmatprep.mubr.bf16.mxu0 0
      %4424 = vmatmul.mubr.bf16.gmra.mrb[0].mxu0 %v4300
      %v4425 = vpop.f32.mrb[0].mxu0
      %v4426 = vadd.f32 0.0, %v4425
      %v4427 = vpop.f32.mrb[0].mxu0
      %v4428 = vpop.f32.mrb[0].mxu0
      %v4429 = vadd.f32 0.0, %v4428
      %v4430 = vpop.f32.mrb[0].mxu0
      %4431 = vmatprep.mubr.bf16.mxu0 0
      %4432 = vmatmul.mubr.bf16.gmra.mrb[0].mxu0 %v4303
      %v4433 = vpop.f32.mrb[0].mxu0
      %v4434 = vadd.f32 0.0, %v4433
      %v4435 = vpop.f32.mrb[0].mxu0
      %v4436 = vpop.f32.mrb[0].mxu0
      %v4437 = vadd.f32 0.0, %v4436
      %v4438 = vpop.f32.mrb[0].mxu0
      %4439 = vmatprep.mubr.bf16.mxu0 0
      %4440 = vmatmul.mubr.bf16.gmra.mrb[0].mxu0 %v4306
      %v4441 = vpop.f32.mrb[0].mxu0
      %v4442 = vadd.f32 0.0, %v4441
      %v4443 = vpop.f32.mrb[0].mxu0
      %v4444 = vpop.f32.mrb[0].mxu0
      %v4445 = vadd.f32 0.0, %v4444
      %v4446 = vpop.f32.mrb[0].mxu0
      %4447 = vmatprep.mubr.bf16.mxu0 0
      %4448 = vmatmul.mubr.bf16.gmra.mrb[0].mxu0 %v4309
      %v4449 = vpop.f32.mrb[0].mxu0
      %v4450 = vadd.f32 0.0, %v4449
      %v4451 = vpop.f32.mrb[0].mxu0
      %v4452 = vpop.f32.mrb[0].mxu0
      %v4453 = vadd.f32 0.0, %v4452
      %v4454 = vpop.f32.mrb[0].mxu0
      %4455 = vmatprep.mubr.bf16.mxu0 0
      %4456 = vmatmul.mubr.bf16.gmra.mrb[0].mxu0 %v4312
      %v4457 = vpop.f32.mrb[0].mxu0
      %v4458 = vadd.f32 0.0, %v4457
      %v4459 = vpop.f32.mrb[0].mxu0
      %v4460 = vpop.f32.mrb[0].mxu0
      %v4461 = vadd.f32 0.0, %v4460
      %v4462 = vpop.f32.mrb[0].mxu0
      %4463 = vmatprep.mubr.bf16.mxu0 0
      %4464 = vmatmul.mubr.bf16.gmra.mrb[0].mxu0 %v4315
      %v4465 = vpop.f32.mrb[0].mxu0
      %v4466 = vadd.f32 0.0, %v4465
      %v4467 = vpop.f32.mrb[0].mxu0
      %v4468 = vpop.f32.mrb[0].mxu0
      %v4469 = vadd.f32 0.0, %v4468
      %v4470 = vpop.f32.mrb[0].mxu0
      %4471 = vmatprep.mubr.bf16.mxu0 0
      %4472 = vmatmul.mubr.bf16.gmra.mrb[0].mxu0 %v4318
      %v4473 = vpop.f32.mrb[0].mxu0
      %v4474 = vadd.f32 0.0, %v4473
      %v4475 = vpop.f32.mrb[0].mxu0
      %v4476 = vpop.f32.mrb[0].mxu0
      %v4477 = vadd.f32 0.0, %v4476
      %v4478 = vpop.f32.mrb[0].mxu0
      %4479 = vmatprep.mubr.bf16.mxu0 0
      %4480 = vmatmul.mubr.bf16.gmra.mrb[0].mxu0 %v4321
      %v4481 = vpop.f32.mrb[0].mxu0
      %v4482 = vadd.f32 0.0, %v4481
      %v4483 = vpop.f32.mrb[0].mxu0
      %v4484 = vpop.f32.mrb[0].mxu0
      %v4485 = vadd.f32 0.0, %v4484
      %v4486 = vpop.f32.mrb[0].mxu0
      %4487 = vmatprep.mubr.bf16.mxu0 0
      %4488 = vmatmul.mubr.bf16.gmra.mrb[0].mxu0 %v4324
      %v4489 = vpop.f32.mrb[0].mxu0
      %v4490 = vadd.f32 0.0, %v4489
      %v4491 = vpop.f32.mrb[0].mxu0
      %v4492 = vpop.f32.mrb[0].mxu0
      %v4493 = vadd.f32 0.0, %v4492
      %v4494 = vpop.f32.mrb[0].mxu0
      %4495 = vmatprep.mubr.bf16.mxu0 0
      %4496 = vmatmul.mubr.bf16.gmra.mrb[0].mxu0 %v4327
      %v4497 = vpop.f32.mrb[0].mxu0
      %v4498 = vadd.f32 0.0, %v4497
      %v4499 = vpop.f32.mrb[0].mxu0
      %v4500 = vpop.f32.mrb[0].mxu0
      %v4501 = vadd.f32 0.0, %v4500
      %v4502 = vpop.f32.mrb[0].mxu0
      %4503 = vmatprep.mubr.bf16.mxu0 0
      %4504 = vmatmul.mubr.bf16.gmra.mrb[0].mxu0 %v4330
      %v4505 = vpop.f32.mrb[0].mxu0
      %v4506 = vadd.f32 0.0, %v4505
      %v4507 = vpop.f32.mrb[0].mxu0
      %v4508 = vpop.f32.mrb[0].mxu0
      %v4509 = vadd.f32 0.0, %v4508
      %v4510 = vpop.f32.mrb[0].mxu0
      %4511 = vdwg.mxu0
      %v4512 = vadd.f32 %v4078, %v4370
      %v4513 = vadd.f32 %v4081, %v4373
      %v4514 = vadd.f32 %v4086, %v4378
      %v4515 = vadd.f32 %v4089, %v4381
      %v4516 = vadd.f32 %v4094, %v4386
      %v4517 = vadd.f32 %v4097, %v4389
      %v4518 = vadd.f32 %v4102, %v4394
      %v4519 = vadd.f32 %v4105, %v4397
      %v4520 = vadd.f32 %v4110, %v4402
      %v4521 = vadd.f32 %v4113, %v4405
      %v4522 = vadd.f32 %v4118, %v4410
      %v4523 = vadd.f32 %v4121, %v4413
      %v4524 = vadd.f32 %v4126, %v4418
      %v4525 = vadd.f32 %v4129, %v4421
      %v4526 = vadd.f32 %v4134, %v4426
      %v4527 = vadd.f32 %v4137, %v4429
      %v4528 = vadd.f32 %v4142, %v4434
      %v4529 = vadd.f32 %v4145, %v4437
      %v4530 = vadd.f32 %v4150, %v4442
      %v4531 = vadd.f32 %v4153, %v4445
      %v4532 = vadd.f32 %v4158, %v4450
      %v4533 = vadd.f32 %v4161, %v4453
      %v4534 = vadd.f32 %v4166, %v4458
      %v4535 = vadd.f32 %v4169, %v4461
      %v4536 = vadd.f32 %v4174, %v4466
      %v4537 = vadd.f32 %v4177, %v4469
      %v4538 = vadd.f32 %v4182, %v4474
      %v4539 = vadd.f32 %v4185, %v4477
      %v4540 = vadd.f32 %v4190, %v4482
      %v4541 = vadd.f32 %v4193, %v4485
      %v4542 = vadd.f32 %v4198, %v4490
      %v4543 = vadd.f32 %v4201, %v4493
      %v4544 = vadd.f32 %v4206, %v4498
      %v4545 = vadd.f32 %v4209, %v4501
      %v4546 = vadd.f32 %v4214, %v4506
      %v4547 = vadd.f32 %v4217, %v4509
      %v4548 = vpack.c.bf16 %v3596, %v3595
      %v4549 = vpack.c.bf16 %v3597, %v3597
      %s4550 = scalar_lea.vmem %s4, 6
      %v4551 = vld [vmem:[%s4550] sm:$0x3]
      %v4554 = vrot.slane %v4548, 1
      %v4555 = vsel %vm966, %v4274, %v4554
      %v4556 = vrot.slane %v4549, 1
      %v4557 = vsel %vm966, %v4554, %v4556
      %v4559 = vsel %vm493, %v4555, 0
      %v4562 = vsel %vm493, %v4557, 0
      %v4565 = vsel %vm548, %v4551, 0
      %4567 = vmatprep.subr.bf16.mxu0 0
      %4568 = vmatpush1.bf16.msra.mxu0 %v4565
      %4569 = vmatprep.subr.bf16.mxu0 0
      %4570 = vmatpush1.bf16.msra.mxu0 0
      %4571 = vmatprep.subr.bf16.mxu0 0
      %4572 = vmatpush1.bf16.msra.mxu0 0
      %4573 = vmatprep.subr.bf16.mxu0 0
      %4574 = vmatpush1.bf16.msra.mxu0 0
      %4575 = vmatprep.subr.bf16.mxu0 0
      %4576 = vmatpush1.bf16.msra.mxu0 0
      %4577 = vmatprep.subr.bf16.mxu0 0
      %4578 = vmatpush1.bf16.msra.mxu0 0
      %4579 = vmatprep.subr.bf16.mxu0 0
      %4580 = vmatpush1.bf16.msra.mxu0 0
      %4581 = vmatprep.subr.bf16.mxu0 0
      %4582 = vmatpush1.bf16.msra.mxu0 0
      %4583 = vmatprep.subr.bf16.mxu0 0
      %4584 = vmatpush1.bf16.msra.mxu0 0
      %4585 = vmatprep.subr.bf16.mxu0 0
      %4586 = vmatpush1.bf16.msra.mxu0 0
      %4587 = vmatprep.subr.bf16.mxu0 0
      %4588 = vmatpush1.bf16.msra.mxu0 0
      %4589 = vmatprep.subr.bf16.mxu0 0
      %4590 = vmatpush1.bf16.msra.mxu0 0
      %4591 = vmatprep.subr.bf16.mxu0 0
      %4592 = vmatpush1.bf16.msra.mxu0 0
      %4593 = vmatprep.subr.bf16.mxu0 0
      %4594 = vmatpush1.bf16.msra.mxu0 0
      %4595 = vmatprep.subr.bf16.mxu0 0
      %4596 = vmatpush1.bf16.msra.mxu0 0
      %4597 = vmatprep.subr.bf16.mxu0 0
      %4598 = vmatpush1.bf16.msra.mxu0 0
      %4599 = vmatprep.mubr.bf16.mxu0 0
      %4600 = vmatmul.mubr.bf16.gmra.mrb[0].mxu0 %v4282
      %v4601 = vpop.f32.mrb[0].mxu0
      %v4602 = vadd.f32 0.0, %v4601
      %v4603 = vpop.f32.mrb[0].mxu0
      %v4604 = vpop.f32.mrb[0].mxu0
      %v4605 = vadd.f32 0.0, %v4604
      %v4606 = vpop.f32.mrb[0].mxu0
      %4607 = vmatprep.mubr.bf16.mxu0 0
      %4608 = vmatmul.mubr.bf16.gmra.mrb[0].mxu0 %v4285
      %v4609 = vpop.f32.mrb[0].mxu0
      %v4610 = vadd.f32 0.0, %v4609
      %v4611 = vpop.f32.mrb[0].mxu0
      %v4612 = vpop.f32.mrb[0].mxu0
      %v4613 = vadd.f32 0.0, %v4612
      %v4614 = vpop.f32.mrb[0].mxu0
      %4615 = vmatprep.mubr.bf16.mxu0 0
      %4616 = vmatmul.mubr.bf16.gmra.mrb[0].mxu0 %v4288
      %v4617 = vpop.f32.mrb[0].mxu0
      %v4618 = vadd.f32 0.0, %v4617
      %v4619 = vpop.f32.mrb[0].mxu0
      %v4620 = vpop.f32.mrb[0].mxu0
      %v4621 = vadd.f32 0.0, %v4620
      %v4622 = vpop.f32.mrb[0].mxu0
      %4623 = vmatprep.mubr.bf16.mxu0 0
      %4624 = vmatmul.mubr.bf16.gmra.mrb[0].mxu0 %v4291
      %v4625 = vpop.f32.mrb[0].mxu0
      %v4626 = vadd.f32 0.0, %v4625
      %v4627 = vpop.f32.mrb[0].mxu0
      %v4628 = vpop.f32.mrb[0].mxu0
      %v4629 = vadd.f32 0.0, %v4628
      %v4630 = vpop.f32.mrb[0].mxu0
      %4631 = vmatprep.mubr.bf16.mxu0 0
      %4632 = vmatmul.mubr.bf16.gmra.mrb[0].mxu0 %v4294
      %v4633 = vpop.f32.mrb[0].mxu0
      %v4634 = vadd.f32 0.0, %v4633
      %v4635 = vpop.f32.mrb[0].mxu0
      %v4636 = vpop.f32.mrb[0].mxu0
      %v4637 = vadd.f32 0.0, %v4636
      %v4638 = vpop.f32.mrb[0].mxu0
      %4639 = vmatprep.mubr.bf16.mxu0 0
      %4640 = vmatmul.mubr.bf16.gmra.mrb[0].mxu0 %v4297
      %v4641 = vpop.f32.mrb[0].mxu0
      %v4642 = vadd.f32 0.0, %v4641
      %v4643 = vpop.f32.mrb[0].mxu0
      %v4644 = vpop.f32.mrb[0].mxu0
      %v4645 = vadd.f32 0.0, %v4644
      %v4646 = vpop.f32.mrb[0].mxu0
      %4647 = vmatprep.mubr.bf16.mxu0 0
      %4648 = vmatmul.mubr.bf16.gmra.mrb[0].mxu0 %v4300
      %v4649 = vpop.f32.mrb[0].mxu0
      %v4650 = vadd.f32 0.0, %v4649
      %v4651 = vpop.f32.mrb[0].mxu0
      %v4652 = vpop.f32.mrb[0].mxu0
      %v4653 = vadd.f32 0.0, %v4652
      %v4654 = vpop.f32.mrb[0].mxu0
      %4655 = vmatprep.mubr.bf16.mxu0 0
      %4656 = vmatmul.mubr.bf16.gmra.mrb[0].mxu0 %v4303
      %v4657 = vpop.f32.mrb[0].mxu0
      %v4658 = vadd.f32 0.0, %v4657
      %v4659 = vpop.f32.mrb[0].mxu0
      %v4660 = vpop.f32.mrb[0].mxu0
      %v4661 = vadd.f32 0.0, %v4660
      %v4662 = vpop.f32.mrb[0].mxu0
      %4663 = vmatprep.mubr.bf16.mxu0 0
      %4664 = vmatmul.mubr.bf16.gmra.mrb[0].mxu0 %v4306
      %v4665 = vpop.f32.mrb[0].mxu0
      %v4666 = vadd.f32 0.0, %v4665
      %v4667 = vpop.f32.mrb[0].mxu0
      %v4668 = vpop.f32.mrb[0].mxu0
      %v4669 = vadd.f32 0.0, %v4668
      %v4670 = vpop.f32.mrb[0].mxu0
      %4671 = vmatprep.mubr.bf16.mxu0 0
      %4672 = vmatmul.mubr.bf16.gmra.mrb[0].mxu0 %v4309
      %v4673 = vpop.f32.mrb[0].mxu0
      %v4674 = vadd.f32 0.0, %v4673
      %v4675 = vpop.f32.mrb[0].mxu0
      %v4676 = vpop.f32.mrb[0].mxu0
      %v4677 = vadd.f32 0.0, %v4676
      %v4678 = vpop.f32.mrb[0].mxu0
      %4679 = vmatprep.mubr.bf16.mxu0 0
      %4680 = vmatmul.mubr.bf16.gmra.mrb[0].mxu0 %v4312
      %v4681 = vpop.f32.mrb[0].mxu0
      %v4682 = vadd.f32 0.0, %v4681
      %v4683 = vpop.f32.mrb[0].mxu0
      %v4684 = vpop.f32.mrb[0].mxu0
      %v4685 = vadd.f32 0.0, %v4684
      %v4686 = vpop.f32.mrb[0].mxu0
      %4687 = vmatprep.mubr.bf16.mxu0 0
      %4688 = vmatmul.mubr.bf16.gmra.mrb[0].mxu0 %v4315
      %v4689 = vpop.f32.mrb[0].mxu0
      %v4690 = vadd.f32 0.0, %v4689
      %v4691 = vpop.f32.mrb[0].mxu0
      %v4692 = vpop.f32.mrb[0].mxu0
      %v4693 = vadd.f32 0.0, %v4692
      %v4694 = vpop.f32.mrb[0].mxu0
      %4695 = vmatprep.mubr.bf16.mxu0 0
      %4696 = vmatmul.mubr.bf16.gmra.mrb[0].mxu0 %v4318
      %v4697 = vpop.f32.mrb[0].mxu0
      %v4698 = vadd.f32 0.0, %v4697
      %v4699 = vpop.f32.mrb[0].mxu0
      %v4700 = vpop.f32.mrb[0].mxu0
      %v4701 = vadd.f32 0.0, %v4700
      %v4702 = vpop.f32.mrb[0].mxu0
      %4703 = vmatprep.mubr.bf16.mxu0 0
      %4704 = vmatmul.mubr.bf16.gmra.mrb[0].mxu0 %v4321
      %v4705 = vpop.f32.mrb[0].mxu0
      %v4706 = vadd.f32 0.0, %v4705
      %v4707 = vpop.f32.mrb[0].mxu0
      %v4708 = vpop.f32.mrb[0].mxu0
      %v4709 = vadd.f32 0.0, %v4708
      %v4710 = vpop.f32.mrb[0].mxu0
      %4711 = vmatprep.mubr.bf16.mxu0 0
      %4712 = vmatmul.mubr.bf16.gmra.mrb[0].mxu0 %v4324
      %v4713 = vpop.f32.mrb[0].mxu0
      %v4714 = vadd.f32 0.0, %v4713
      %v4715 = vpop.f32.mrb[0].mxu0
      %v4716 = vpop.f32.mrb[0].mxu0
      %v4717 = vadd.f32 0.0, %v4716
      %v4718 = vpop.f32.mrb[0].mxu0
      %4719 = vmatprep.mubr.bf16.mxu0 0
      %4720 = vmatmul.mubr.bf16.gmra.mrb[0].mxu0 %v4327
      %v4721 = vpop.f32.mrb[0].mxu0
      %v4722 = vadd.f32 0.0, %v4721
      %v4723 = vpop.f32.mrb[0].mxu0
      %v4724 = vpop.f32.mrb[0].mxu0
      %v4725 = vadd.f32 0.0, %v4724
      %v4726 = vpop.f32.mrb[0].mxu0
      %4727 = vmatprep.mubr.bf16.mxu0 0
      %4728 = vmatmul.mubr.bf16.gmra.mrb[0].mxu0 %v4559
      %v4729 = vpop.f32.mrb[0].mxu0
      %v4730 = vadd.f32 0.0, %v4729
      %v4731 = vpop.f32.mrb[0].mxu0
      %v4732 = vpop.f32.mrb[0].mxu0
      %v4733 = vadd.f32 0.0, %v4732
      %v4734 = vpop.f32.mrb[0].mxu0
      %4735 = vmatprep.mubr.bf16.mxu0 0
      %4736 = vmatmul.mubr.bf16.gmra.mrb[0].mxu0 %v4562
      %v4737 = vpop.f32.mrb[0].mxu0
      %v4738 = vadd.f32 0.0, %v4737
      %v4739 = vpop.f32.mrb[0].mxu0
      %v4740 = vpop.f32.mrb[0].mxu0
      %v4741 = vadd.f32 0.0, %v4740
      %v4742 = vpop.f32.mrb[0].mxu0
      %4743 = vdwg.mxu0
      %v4744 = vadd.f32 %v4512, %v4602
      %v4745 = vadd.f32 %v4513, %v4605
      %v4746 = vadd.f32 %v4514, %v4610
      %v4747 = vadd.f32 %v4515, %v4613
      %v4748 = vadd.f32 %v4516, %v4618
      %v4749 = vadd.f32 %v4517, %v4621
      %v4750 = vadd.f32 %v4518, %v4626
      %v4751 = vadd.f32 %v4519, %v4629
      %v4752 = vadd.f32 %v4520, %v4634
      %v4753 = vadd.f32 %v4521, %v4637
      %v4754 = vadd.f32 %v4522, %v4642
      %v4755 = vadd.f32 %v4523, %v4645
      %v4756 = vadd.f32 %v4524, %v4650
      %v4757 = vadd.f32 %v4525, %v4653
      %v4758 = vadd.f32 %v4526, %v4658
      %v4759 = vadd.f32 %v4527, %v4661
      %v4760 = vadd.f32 %v4528, %v4666
      %v4761 = vadd.f32 %v4529, %v4669
      %v4762 = vadd.f32 %v4530, %v4674
      %v4763 = vadd.f32 %v4531, %v4677
      %v4764 = vadd.f32 %v4532, %v4682
      %v4765 = vadd.f32 %v4533, %v4685
      %v4766 = vadd.f32 %v4534, %v4690
      %v4767 = vadd.f32 %v4535, %v4693
      %v4768 = vadd.f32 %v4536, %v4698
      %v4769 = vadd.f32 %v4537, %v4701
      %v4770 = vadd.f32 %v4538, %v4706
      %v4771 = vadd.f32 %v4539, %v4709
      %v4772 = vadd.f32 %v4540, %v4714
      %v4773 = vadd.f32 %v4541, %v4717
      %v4774 = vadd.f32 %v4542, %v4722
      %v4775 = vadd.f32 %v4543, %v4725
      %v4776 = vadd.f32 %v4544, %v4730
      %v4777 = vadd.f32 %v4545, %v4733
      %v4778 = vadd.f32 %v4546, %v4738
      %v4779 = vadd.f32 %v4547, %v4741
      %s4780 = scalar_lea.vmem %s4, 8
      %v4781 = vld [vmem:[%s4780] sm:$0x3]
      %v4782 = vrot.slane %v3634, 1
      %v4783 = vrot.slane %v3630, 2
      %v4784 = vor.u32 %v4782, %v4783
      %v4785 = vrot.slane %v3642, 1
      %v4786 = vrot.slane %v3638, 2
      %v4787 = vor.u32 %v4785, %v4786
      %v4788 = vsel %vm1508, %v4784, %v4787
      %v4789 = vrot.slane %v3650, 1
      %v4790 = vrot.slane %v3646, 2
      %v4791 = vor.u32 %v4789, %v4790
      %v4792 = vsel %vm1508, %v4787, %v4791
      %v4793 = vrot.slane %v3658, 1
      %v4794 = vrot.slane %v3654, 2
      %v4795 = vor.u32 %v4793, %v4794
      %v4796 = vsel %vm1508, %v4791, %v4795
      %v4797 = vrot.slane %v3666, 1
      %v4798 = vrot.slane %v3662, 2
      %v4799 = vor.u32 %v4797, %v4798
      %v4800 = vsel %vm1508, %v4795, %v4799
      %v4801 = vrot.slane %v3674, 1
      %v4802 = vrot.slane %v3670, 2
      %v4803 = vor.u32 %v4801, %v4802
      %v4804 = vsel %vm1508, %v4799, %v4803
      %v4805 = vrot.slane %v3682, 1
      %v4806 = vrot.slane %v3678, 2
      %v4807 = vor.u32 %v4805, %v4806
      %v4808 = vsel %vm1508, %v4803, %v4807
      %v4809 = vrot.slane %v3690, 1
      %v4810 = vrot.slane %v3686, 2
      %v4811 = vor.u32 %v4809, %v4810
      %v4812 = vsel %vm1508, %v4807, %v4811
      %v4813 = vrot.slane %v3698, 1
      %v4814 = vrot.slane %v3694, 2
      %v4815 = vor.u32 %v4813, %v4814
      %v4816 = vsel %vm1508, %v4811, %v4815
      %v4817 = vrot.slane %v3706, 1
      %v4818 = vrot.slane %v3702, 2
      %v4819 = vor.u32 %v4817, %v4818
      %v4820 = vsel %vm1508, %v4815, %v4819
      %v4821 = vrot.slane %v3714, 1
      %v4822 = vrot.slane %v3710, 2
      %v4823 = vor.u32 %v4821, %v4822
      %v4824 = vsel %vm1508, %v4819, %v4823
      %v4825 = vrot.slane %v3722, 1
      %v4826 = vrot.slane %v3718, 2
      %v4827 = vor.u32 %v4825, %v4826
      %v4828 = vsel %vm1508, %v4823, %v4827
      %v4829 = vrot.slane %v3730, 1
      %v4830 = vrot.slane %v3726, 2
      %v4831 = vor.u32 %v4829, %v4830
      %v4832 = vsel %vm1508, %v4827, %v4831
      %v4833 = vrot.slane %v3738, 1
      %v4834 = vrot.slane %v3734, 2
      %v4835 = vor.u32 %v4833, %v4834
      %v4836 = vsel %vm1508, %v4831, %v4835
      %v4837 = vrot.slane %v3746, 1
      %v4838 = vrot.slane %v3742, 2
      %v4839 = vor.u32 %v4837, %v4838
      %v4840 = vsel %vm1508, %v4835, %v4839
      %v4841 = vrot.slane %v3754, 1
      %v4842 = vrot.slane %v3750, 2
      %v4843 = vor.u32 %v4841, %v4842
      %v4844 = vsel %vm1508, %v4839, %v4843
      %v4845 = vrot.slane %v3762, 1
      %v4846 = vrot.slane %v3758, 2
      %v4847 = vor.u32 %v4845, %v4846
      %v4848 = vsel %vm1508, %v4843, %v4847
      %v4850 = vshrl.u32 %v4548, 16
      %v4852 = vrot.slane %v4850, 1
      %v4853 = vshll.u32 %v4548, 16
      %v4855 = vrot.slane %v4853, 2
      %v4856 = vor.u32 %v4852, %v4855
      %v4857 = vsel %vm1508, %v4847, %v4856
      %v4859 = vshrl.u32 %v4549, 16
      %v4861 = vrot.slane %v4859, 1
      %v4862 = vshll.u32 %v4549, 16
      %v4864 = vrot.slane %v4862, 2
      %v4865 = vor.u32 %v4861, %v4864
      %v4866 = vsel %vm1508, %v4856, %v4865
      %v4868 = vsel %vm493, %v4788, 0
      %v4871 = vsel %vm493, %v4792, 0
      %v4874 = vsel %vm493, %v4796, 0
      %v4877 = vsel %vm493, %v4800, 0
      %v4880 = vsel %vm493, %v4804, 0
      %v4883 = vsel %vm493, %v4808, 0
      %v4886 = vsel %vm493, %v4812, 0
      %v4889 = vsel %vm493, %v4816, 0
      %v4892 = vsel %vm493, %v4820, 0
      %v4895 = vsel %vm493, %v4824, 0
      %v4898 = vsel %vm493, %v4828, 0
      %v4901 = vsel %vm493, %v4832, 0
      %v4904 = vsel %vm493, %v4836, 0
      %v4907 = vsel %vm493, %v4840, 0
      %v4910 = vsel %vm493, %v4844, 0
      %v4913 = vsel %vm493, %v4848, 0
      %v4916 = vsel %vm493, %v4857, 0
      %v4919 = vsel %vm493, %v4866, 0
      %v4922 = vsel %vm548, %v4781, 0
      %4924 = vmatprep.subr.bf16.mxu0 0
      %4925 = vmatpush1.bf16.msra.mxu0 %v4922
      %4926 = vmatprep.subr.bf16.mxu0 0
      %4927 = vmatpush1.bf16.msra.mxu0 0
      %4928 = vmatprep.subr.bf16.mxu0 0
      %4929 = vmatpush1.bf16.msra.mxu0 0
      %4930 = vmatprep.subr.bf16.mxu0 0
      %4931 = vmatpush1.bf16.msra.mxu0 0
      %4932 = vmatprep.subr.bf16.mxu0 0
      %4933 = vmatpush1.bf16.msra.mxu0 0
      %4934 = vmatprep.subr.bf16.mxu0 0
      %4935 = vmatpush1.bf16.msra.mxu0 0
      %4936 = vmatprep.subr.bf16.mxu0 0
      %4937 = vmatpush1.bf16.msra.mxu0 0
      %4938 = vmatprep.subr.bf16.mxu0 0
      %4939 = vmatpush1.bf16.msra.mxu0 0
      %4940 = vmatprep.subr.bf16.mxu0 0
      %4941 = vmatpush1.bf16.msra.mxu0 0
      %4942 = vmatprep.subr.bf16.mxu0 0
      %4943 = vmatpush1.bf16.msra.mxu0 0
      %4944 = vmatprep.subr.bf16.mxu0 0
      %4945 = vmatpush1.bf16.msra.mxu0 0
      %4946 = vmatprep.subr.bf16.mxu0 0
      %4947 = vmatpush1.bf16.msra.mxu0 0
      %4948 = vmatprep.subr.bf16.mxu0 0
      %4949 = vmatpush1.bf16.msra.mxu0 0
      %4950 = vmatprep.subr.bf16.mxu0 0
      %4951 = vmatpush1.bf16.msra.mxu0 0
      %4952 = vmatprep.subr.bf16.mxu0 0
      %4953 = vmatpush1.bf16.msra.mxu0 0
      %4954 = vmatprep.subr.bf16.mxu0 0
      %4955 = vmatpush1.bf16.msra.mxu0 0
      %4956 = vmatprep.mubr.bf16.mxu0 0
      %4957 = vmatmul.mubr.bf16.gmra.mrb[0].mxu0 %v4868
      %v4958 = vpop.f32.mrb[0].mxu0
      %v4959 = vadd.f32 0.0, %v4958
      %v4960 = vpop.f32.mrb[0].mxu0
      %v4961 = vpop.f32.mrb[0].mxu0
      %v4962 = vadd.f32 0.0, %v4961
      %v4963 = vpop.f32.mrb[0].mxu0
      %4964 = vmatprep.mubr.bf16.mxu0 0
      %4965 = vmatmul.mubr.bf16.gmra.mrb[0].mxu0 %v4871
      %v4966 = vpop.f32.mrb[0].mxu0
      %v4967 = vadd.f32 0.0, %v4966
      %v4968 = vpop.f32.mrb[0].mxu0
      %v4969 = vpop.f32.mrb[0].mxu0
      %v4970 = vadd.f32 0.0, %v4969
      %v4971 = vpop.f32.mrb[0].mxu0
      %4972 = vmatprep.mubr.bf16.mxu0 0
      %4973 = vmatmul.mubr.bf16.gmra.mrb[0].mxu0 %v4874
      %v4974 = vpop.f32.mrb[0].mxu0
      %v4975 = vadd.f32 0.0, %v4974
      %v4976 = vpop.f32.mrb[0].mxu0
      %v4977 = vpop.f32.mrb[0].mxu0
      %v4978 = vadd.f32 0.0, %v4977
      %v4979 = vpop.f32.mrb[0].mxu0
      %4980 = vmatprep.mubr.bf16.mxu0 0
      %4981 = vmatmul.mubr.bf16.gmra.mrb[0].mxu0 %v4877
      %v4982 = vpop.f32.mrb[0].mxu0
      %v4983 = vadd.f32 0.0, %v4982
      %v4984 = vpop.f32.mrb[0].mxu0
      %v4985 = vpop.f32.mrb[0].mxu0
      %v4986 = vadd.f32 0.0, %v4985
      %v4987 = vpop.f32.mrb[0].mxu0
      %4988 = vmatprep.mubr.bf16.mxu0 0
      %4989 = vmatmul.mubr.bf16.gmra.mrb[0].mxu0 %v4880
      %v4990 = vpop.f32.mrb[0].mxu0
      %v4991 = vadd.f32 0.0, %v4990
      %v4992 = vpop.f32.mrb[0].mxu0
      %v4993 = vpop.f32.mrb[0].mxu0
      %v4994 = vadd.f32 0.0, %v4993
      %v4995 = vpop.f32.mrb[0].mxu0
      %4996 = vmatprep.mubr.bf16.mxu0 0
      %4997 = vmatmul.mubr.bf16.gmra.mrb[0].mxu0 %v4883
      %v4998 = vpop.f32.mrb[0].mxu0
      %v4999 = vadd.f32 0.0, %v4998
      %v5000 = vpop.f32.mrb[0].mxu0
      %v5001 = vpop.f32.mrb[0].mxu0
      %v5002 = vadd.f32 0.0, %v5001
      %v5003 = vpop.f32.mrb[0].mxu0
      %5004 = vmatprep.mubr.bf16.mxu0 0
      %5005 = vmatmul.mubr.bf16.gmra.mrb[0].mxu0 %v4886
      %v5006 = vpop.f32.mrb[0].mxu0
      %v5007 = vadd.f32 0.0, %v5006
      %v5008 = vpop.f32.mrb[0].mxu0
      %v5009 = vpop.f32.mrb[0].mxu0
      %v5010 = vadd.f32 0.0, %v5009
      %v5011 = vpop.f32.mrb[0].mxu0
      %5012 = vmatprep.mubr.bf16.mxu0 0
      %5013 = vmatmul.mubr.bf16.gmra.mrb[0].mxu0 %v4889
      %v5014 = vpop.f32.mrb[0].mxu0
      %v5015 = vadd.f32 0.0, %v5014
      %v5016 = vpop.f32.mrb[0].mxu0
      %v5017 = vpop.f32.mrb[0].mxu0
      %v5018 = vadd.f32 0.0, %v5017
      %v5019 = vpop.f32.mrb[0].mxu0
      %5020 = vmatprep.mubr.bf16.mxu0 0
      %5021 = vmatmul.mubr.bf16.gmra.mrb[0].mxu0 %v4892
      %v5022 = vpop.f32.mrb[0].mxu0
      %v5023 = vadd.f32 0.0, %v5022
      %v5024 = vpop.f32.mrb[0].mxu0
      %v5025 = vpop.f32.mrb[0].mxu0
      %v5026 = vadd.f32 0.0, %v5025
      %v5027 = vpop.f32.mrb[0].mxu0
      %5028 = vmatprep.mubr.bf16.mxu0 0
      %5029 = vmatmul.mubr.bf16.gmra.mrb[0].mxu0 %v4895
      %v5030 = vpop.f32.mrb[0].mxu0
      %v5031 = vadd.f32 0.0, %v5030
      %v5032 = vpop.f32.mrb[0].mxu0
      %v5033 = vpop.f32.mrb[0].mxu0
      %v5034 = vadd.f32 0.0, %v5033
      %v5035 = vpop.f32.mrb[0].mxu0
      %5036 = vmatprep.mubr.bf16.mxu0 0
      %5037 = vmatmul.mubr.bf16.gmra.mrb[0].mxu0 %v4898
      %v5038 = vpop.f32.mrb[0].mxu0
      %v5039 = vadd.f32 0.0, %v5038
      %v5040 = vpop.f32.mrb[0].mxu0
      %v5041 = vpop.f32.mrb[0].mxu0
      %v5042 = vadd.f32 0.0, %v5041
      %v5043 = vpop.f32.mrb[0].mxu0
      %5044 = vmatprep.mubr.bf16.mxu0 0
      %5045 = vmatmul.mubr.bf16.gmra.mrb[0].mxu0 %v4901
      %v5046 = vpop.f32.mrb[0].mxu0
      %v5047 = vadd.f32 0.0, %v5046
      %v5048 = vpop.f32.mrb[0].mxu0
      %v5049 = vpop.f32.mrb[0].mxu0
      %v5050 = vadd.f32 0.0, %v5049
      %v5051 = vpop.f32.mrb[0].mxu0
      %5052 = vmatprep.mubr.bf16.mxu0 0
      %5053 = vmatmul.mubr.bf16.gmra.mrb[0].mxu0 %v4904
      %v5054 = vpop.f32.mrb[0].mxu0
      %v5055 = vadd.f32 0.0, %v5054
      %v5056 = vpop.f32.mrb[0].mxu0
      %v5057 = vpop.f32.mrb[0].mxu0
      %v5058 = vadd.f32 0.0, %v5057
      %v5059 = vpop.f32.mrb[0].mxu0
      %5060 = vmatprep.mubr.bf16.mxu0 0
      %5061 = vmatmul.mubr.bf16.gmra.mrb[0].mxu0 %v4907
      %v5062 = vpop.f32.mrb[0].mxu0
      %v5063 = vadd.f32 0.0, %v5062
      %v5064 = vpop.f32.mrb[0].mxu0
      %v5065 = vpop.f32.mrb[0].mxu0
      %v5066 = vadd.f32 0.0, %v5065
      %v5067 = vpop.f32.mrb[0].mxu0
      %5068 = vmatprep.mubr.bf16.mxu0 0
      %5069 = vmatmul.mubr.bf16.gmra.mrb[0].mxu0 %v4910
      %v5070 = vpop.f32.mrb[0].mxu0
      %v5071 = vadd.f32 0.0, %v5070
      %v5072 = vpop.f32.mrb[0].mxu0
      %v5073 = vpop.f32.mrb[0].mxu0
      %v5074 = vadd.f32 0.0, %v5073
      %v5075 = vpop.f32.mrb[0].mxu0
      %5076 = vmatprep.mubr.bf16.mxu0 0
      %5077 = vmatmul.mubr.bf16.gmra.mrb[0].mxu0 %v4913
      %v5078 = vpop.f32.mrb[0].mxu0
      %v5079 = vadd.f32 0.0, %v5078
      %v5080 = vpop.f32.mrb[0].mxu0
      %v5081 = vpop.f32.mrb[0].mxu0
      %v5082 = vadd.f32 0.0, %v5081
      %v5083 = vpop.f32.mrb[0].mxu0
      %5084 = vmatprep.mubr.bf16.mxu0 0
      %5085 = vmatmul.mubr.bf16.gmra.mrb[0].mxu0 %v4916
      %v5086 = vpop.f32.mrb[0].mxu0
      %v5087 = vadd.f32 0.0, %v5086
      %v5088 = vpop.f32.mrb[0].mxu0
      %v5089 = vpop.f32.mrb[0].mxu0
      %v5090 = vadd.f32 0.0, %v5089
      %v5091 = vpop.f32.mrb[0].mxu0
      %5092 = vmatprep.mubr.bf16.mxu0 0
      %5093 = vmatmul.mubr.bf16.gmra.mrb[0].mxu0 %v4919
      %v5094 = vpop.f32.mrb[0].mxu0
      %v5095 = vadd.f32 0.0, %v5094
      %v5096 = vpop.f32.mrb[0].mxu0
      %v5097 = vpop.f32.mrb[0].mxu0
      %v5098 = vadd.f32 0.0, %v5097
      %v5099 = vpop.f32.mrb[0].mxu0
      %5100 = vdwg.mxu0
      %v5101 = vadd.f32 %v4744, %v4959
      %v5102 = vadd.f32 %v4745, %v4962
      %v5103 = vadd.f32 %v4746, %v4967
      %v5104 = vadd.f32 %v4747, %v4970
      %v5105 = vadd.f32 %v4748, %v4975
      %v5106 = vadd.f32 %v4749, %v4978
      %v5107 = vadd.f32 %v4750, %v4983
      %v5108 = vadd.f32 %v4751, %v4986
      %v5109 = vadd.f32 %v4752, %v4991
      %v5110 = vadd.f32 %v4753, %v4994
      %v5111 = vadd.f32 %v4754, %v4999
      %v5112 = vadd.f32 %v4755, %v5002
      %v5113 = vadd.f32 %v4756, %v5007
      %v5114 = vadd.f32 %v4757, %v5010
      %v5115 = vadd.f32 %v4758, %v5015
      %v5116 = vadd.f32 %v4759, %v5018
      %v5117 = vadd.f32 %v4760, %v5023
      %v5118 = vadd.f32 %v4761, %v5026
      %v5119 = vadd.f32 %v4762, %v5031
      %v5120 = vadd.f32 %v4763, %v5034
      %v5121 = vadd.f32 %v4764, %v5039
      %v5122 = vadd.f32 %v4765, %v5042
      %v5123 = vadd.f32 %v4766, %v5047
      %v5124 = vadd.f32 %v4767, %v5050
      %v5125 = vadd.f32 %v4768, %v5055
      %v5126 = vadd.f32 %v4769, %v5058
      %v5127 = vadd.f32 %v4770, %v5063
      %v5128 = vadd.f32 %v4771, %v5066
      %v5129 = vadd.f32 %v4772, %v5071
      %v5130 = vadd.f32 %v4773, %v5074
      %v5131 = vadd.f32 %v4774, %v5079
      %v5132 = vadd.f32 %v4775, %v5082
      %v5133 = vadd.f32 %v4776, %v5087
      %v5134 = vadd.f32 %v4777, %v5090
      %v5135 = vadd.f32 %v4778, %v5095
      %v5136 = vadd.f32 %v4779, %v5098
      %s5137 = scalar_lea.vmem %s4, 10
      %v5138 = vld [vmem:[%s5137] sm:$0x3]
      %v5139 = vrot.slane %v3601, 2
      %v5140 = vrot.slane %v3602, 2
      %v5141 = vsel %vm1866, %v5139, %v5140
      %v5142 = vrot.slane %v3603, 2
      %v5143 = vsel %vm1866, %v5140, %v5142
      %v5144 = vrot.slane %v3604, 2
      %v5145 = vsel %vm1866, %v5142, %v5144
      %v5146 = vrot.slane %v3605, 2
      %v5147 = vsel %vm1866, %v5144, %v5146
      %v5148 = vrot.slane %v3606, 2
      %v5149 = vsel %vm1866, %v5146, %v5148
      %v5150 = vrot.slane %v3607, 2
      %v5151 = vsel %vm1866, %v5148, %v5150
      %v5152 = vrot.slane %v3608, 2
      %v5153 = vsel %vm1866, %v5150, %v5152
      %v5154 = vrot.slane %v3609, 2
      %v5155 = vsel %vm1866, %v5152, %v5154
      %v5156 = vrot.slane %v3610, 2
      %v5157 = vsel %vm1866, %v5154, %v5156
      %v5158 = vrot.slane %v3611, 2
      %v5159 = vsel %vm1866, %v5156, %v5158
      %v5160 = vrot.slane %v3612, 2
      %v5161 = vsel %vm1866, %v5158, %v5160
      %v5162 = vrot.slane %v3613, 2
      %v5163 = vsel %vm1866, %v5160, %v5162
      %v5164 = vrot.slane %v3614, 2
      %v5165 = vsel %vm1866, %v5162, %v5164
      %v5166 = vrot.slane %v3615, 2
      %v5167 = vsel %vm1866, %v5164, %v5166
      %v5168 = vrot.slane %v3616, 2
      %v5169 = vsel %vm1866, %v5166, %v5168
      %v5170 = vrot.slane %v3617, 2
      %v5171 = vsel %vm1866, %v5168, %v5170
      %v5172 = vrot.slane %v4548, 2
      %v5173 = vsel %vm1866, %v5170, %v5172
      %v5174 = vrot.slane %v4549, 2
      %v5175 = vsel %vm1866, %v5172, %v5174
      %v5177 = vsel %vm493, %v5141, 0
      %v5180 = vsel %vm493, %v5143, 0
      %v5183 = vsel %vm493, %v5145, 0
      %v5186 = vsel %vm493, %v5147, 0
      %v5189 = vsel %vm493, %v5149, 0
      %v5192 = vsel %vm493, %v5151, 0
      %v5195 = vsel %vm493, %v5153, 0
      %v5198 = vsel %vm493, %v5155, 0
      %v5201 = vsel %vm493, %v5157, 0
      %v5204 = vsel %vm493, %v5159, 0
      %v5207 = vsel %vm493, %v5161, 0
      %v5210 = vsel %vm493, %v5163, 0
      %v5213 = vsel %vm493, %v5165, 0
      %v5216 = vsel %vm493, %v5167, 0
      %v5219 = vsel %vm493, %v5169, 0
      %v5222 = vsel %vm493, %v5171, 0
      %v5225 = vsel %vm493, %v5173, 0
      %v5228 = vsel %vm493, %v5175, 0
      %v5231 = vsel %vm548, %v5138, 0
      %5233 = vmatprep.subr.bf16.mxu0 0
      %5234 = vmatpush1.bf16.msra.mxu0 %v5231
      %5235 = vmatprep.subr.bf16.mxu0 0
      %5236 = vmatpush1.bf16.msra.mxu0 0
      %5237 = vmatprep.subr.bf16.mxu0 0
      %5238 = vmatpush1.bf16.msra.mxu0 0
      %5239 = vmatprep.subr.bf16.mxu0 0
      %5240 = vmatpush1.bf16.msra.mxu0 0
      %5241 = vmatprep.subr.bf16.mxu0 0
      %5242 = vmatpush1.bf16.msra.mxu0 0
      %5243 = vmatprep.subr.bf16.mxu0 0
      %5244 = vmatpush1.bf16.msra.mxu0 0
      %5245 = vmatprep.subr.bf16.mxu0 0
      %5246 = vmatpush1.bf16.msra.mxu0 0
      %5247 = vmatprep.subr.bf16.mxu0 0
      %5248 = vmatpush1.bf16.msra.mxu0 0
      %5249 = vmatprep.subr.bf16.mxu0 0
      %5250 = vmatpush1.bf16.msra.mxu0 0
      %5251 = vmatprep.subr.bf16.mxu0 0
      %5252 = vmatpush1.bf16.msra.mxu0 0
      %5253 = vmatprep.subr.bf16.mxu0 0
      %5254 = vmatpush1.bf16.msra.mxu0 0
      %5255 = vmatprep.subr.bf16.mxu0 0
      %5256 = vmatpush1.bf16.msra.mxu0 0
      %5257 = vmatprep.subr.bf16.mxu0 0
      %5258 = vmatpush1.bf16.msra.mxu0 0
      %5259 = vmatprep.subr.bf16.mxu0 0
      %5260 = vmatpush1.bf16.msra.mxu0 0
      %5261 = vmatprep.subr.bf16.mxu0 0
      %5262 = vmatpush1.bf16.msra.mxu0 0
      %5263 = vmatprep.subr.bf16.mxu0 0
      %5264 = vmatpush1.bf16.msra.mxu0 0
      %5265 = vmatprep.mubr.bf16.mxu0 0
      %5266 = vmatmul.mubr.bf16.gmra.mrb[0].mxu0 %v5177
      %v5267 = vpop.f32.mrb[0].mxu0
      %v5268 = vadd.f32 0.0, %v5267
      %v5269 = vpop.f32.mrb[0].mxu0
      %v5270 = vpop.f32.mrb[0].mxu0
      %v5271 = vadd.f32 0.0, %v5270
      %v5272 = vpop.f32.mrb[0].mxu0
      %5273 = vmatprep.mubr.bf16.mxu0 0
      %5274 = vmatmul.mubr.bf16.gmra.mrb[0].mxu0 %v5180
      %v5275 = vpop.f32.mrb[0].mxu0
      %v5276 = vadd.f32 0.0, %v5275
      %v5277 = vpop.f32.mrb[0].mxu0
      %v5278 = vpop.f32.mrb[0].mxu0
      %v5279 = vadd.f32 0.0, %v5278
      %v5280 = vpop.f32.mrb[0].mxu0
      %5281 = vmatprep.mubr.bf16.mxu0 0
      %5282 = vmatmul.mubr.bf16.gmra.mrb[0].mxu0 %v5183
      %v5283 = vpop.f32.mrb[0].mxu0
      %v5284 = vadd.f32 0.0, %v5283
      %v5285 = vpop.f32.mrb[0].mxu0
      %v5286 = vpop.f32.mrb[0].mxu0
      %v5287 = vadd.f32 0.0, %v5286
      %v5288 = vpop.f32.mrb[0].mxu0
      %5289 = vmatprep.mubr.bf16.mxu0 0
      %5290 = vmatmul.mubr.bf16.gmra.mrb[0].mxu0 %v5186
      %v5291 = vpop.f32.mrb[0].mxu0
      %v5292 = vadd.f32 0.0, %v5291
      %v5293 = vpop.f32.mrb[0].mxu0
      %v5294 = vpop.f32.mrb[0].mxu0
      %v5295 = vadd.f32 0.0, %v5294
      %v5296 = vpop.f32.mrb[0].mxu0
      %5297 = vmatprep.mubr.bf16.mxu0 0
      %5298 = vmatmul.mubr.bf16.gmra.mrb[0].mxu0 %v5189
      %v5299 = vpop.f32.mrb[0].mxu0
      %v5300 = vadd.f32 0.0, %v5299
      %v5301 = vpop.f32.mrb[0].mxu0
      %v5302 = vpop.f32.mrb[0].mxu0
      %v5303 = vadd.f32 0.0, %v5302
      %v5304 = vpop.f32.mrb[0].mxu0
      %5305 = vmatprep.mubr.bf16.mxu0 0
      %5306 = vmatmul.mubr.bf16.gmra.mrb[0].mxu0 %v5192
      %v5307 = vpop.f32.mrb[0].mxu0
      %v5308 = vadd.f32 0.0, %v5307
      %v5309 = vpop.f32.mrb[0].mxu0
      %v5310 = vpop.f32.mrb[0].mxu0
      %v5311 = vadd.f32 0.0, %v5310
      %v5312 = vpop.f32.mrb[0].mxu0
      %5313 = vmatprep.mubr.bf16.mxu0 0
      %5314 = vmatmul.mubr.bf16.gmra.mrb[0].mxu0 %v5195
      %v5315 = vpop.f32.mrb[0].mxu0
      %v5316 = vadd.f32 0.0, %v5315
      %v5317 = vpop.f32.mrb[0].mxu0
      %v5318 = vpop.f32.mrb[0].mxu0
      %v5319 = vadd.f32 0.0, %v5318
      %v5320 = vpop.f32.mrb[0].mxu0
      %5321 = vmatprep.mubr.bf16.mxu0 0
      %5322 = vmatmul.mubr.bf16.gmra.mrb[0].mxu0 %v5198
      %v5323 = vpop.f32.mrb[0].mxu0
      %v5324 = vadd.f32 0.0, %v5323
      %v5325 = vpop.f32.mrb[0].mxu0
      %v5326 = vpop.f32.mrb[0].mxu0
      %v5327 = vadd.f32 0.0, %v5326
      %v5328 = vpop.f32.mrb[0].mxu0
      %5329 = vmatprep.mubr.bf16.mxu0 0
      %5330 = vmatmul.mubr.bf16.gmra.mrb[0].mxu0 %v5201
      %v5331 = vpop.f32.mrb[0].mxu0
      %v5332 = vadd.f32 0.0, %v5331
      %v5333 = vpop.f32.mrb[0].mxu0
      %v5334 = vpop.f32.mrb[0].mxu0
      %v5335 = vadd.f32 0.0, %v5334
      %v5336 = vpop.f32.mrb[0].mxu0
      %5337 = vmatprep.mubr.bf16.mxu0 0
      %5338 = vmatmul.mubr.bf16.gmra.mrb[0].mxu0 %v5204
      %v5339 = vpop.f32.mrb[0].mxu0
      %v5340 = vadd.f32 0.0, %v5339
      %v5341 = vpop.f32.mrb[0].mxu0
      %v5342 = vpop.f32.mrb[0].mxu0
      %v5343 = vadd.f32 0.0, %v5342
      %v5344 = vpop.f32.mrb[0].mxu0
      %5345 = vmatprep.mubr.bf16.mxu0 0
      %5346 = vmatmul.mubr.bf16.gmra.mrb[0].mxu0 %v5207
      %v5347 = vpop.f32.mrb[0].mxu0
      %v5348 = vadd.f32 0.0, %v5347
      %v5349 = vpop.f32.mrb[0].mxu0
      %v5350 = vpop.f32.mrb[0].mxu0
      %v5351 = vadd.f32 0.0, %v5350
      %v5352 = vpop.f32.mrb[0].mxu0
      %5353 = vmatprep.mubr.bf16.mxu0 0
      %5354 = vmatmul.mubr.bf16.gmra.mrb[0].mxu0 %v5210
      %v5355 = vpop.f32.mrb[0].mxu0
      %v5356 = vadd.f32 0.0, %v5355
      %v5357 = vpop.f32.mrb[0].mxu0
      %v5358 = vpop.f32.mrb[0].mxu0
      %v5359 = vadd.f32 0.0, %v5358
      %v5360 = vpop.f32.mrb[0].mxu0
      %5361 = vmatprep.mubr.bf16.mxu0 0
      %5362 = vmatmul.mubr.bf16.gmra.mrb[0].mxu0 %v5213
      %v5363 = vpop.f32.mrb[0].mxu0
      %v5364 = vadd.f32 0.0, %v5363
      %v5365 = vpop.f32.mrb[0].mxu0
      %v5366 = vpop.f32.mrb[0].mxu0
      %v5367 = vadd.f32 0.0, %v5366
      %v5368 = vpop.f32.mrb[0].mxu0
      %5369 = vmatprep.mubr.bf16.mxu0 0
      %5370 = vmatmul.mubr.bf16.gmra.mrb[0].mxu0 %v5216
      %v5371 = vpop.f32.mrb[0].mxu0
      %v5372 = vadd.f32 0.0, %v5371
      %v5373 = vpop.f32.mrb[0].mxu0
      %v5374 = vpop.f32.mrb[0].mxu0
      %v5375 = vadd.f32 0.0, %v5374
      %v5376 = vpop.f32.mrb[0].mxu0
      %5377 = vmatprep.mubr.bf16.mxu0 0
      %5378 = vmatmul.mubr.bf16.gmra.mrb[0].mxu0 %v5219
      %v5379 = vpop.f32.mrb[0].mxu0
      %v5380 = vadd.f32 0.0, %v5379
      %v5381 = vpop.f32.mrb[0].mxu0
      %v5382 = vpop.f32.mrb[0].mxu0
      %v5383 = vadd.f32 0.0, %v5382
      %v5384 = vpop.f32.mrb[0].mxu0
      %5385 = vmatprep.mubr.bf16.mxu0 0
      %5386 = vmatmul.mubr.bf16.gmra.mrb[0].mxu0 %v5222
      %v5387 = vpop.f32.mrb[0].mxu0
      %v5388 = vadd.f32 0.0, %v5387
      %v5389 = vpop.f32.mrb[0].mxu0
      %v5390 = vpop.f32.mrb[0].mxu0
      %v5391 = vadd.f32 0.0, %v5390
      %v5392 = vpop.f32.mrb[0].mxu0
      %5393 = vmatprep.mubr.bf16.mxu0 0
      %5394 = vmatmul.mubr.bf16.gmra.mrb[0].mxu0 %v5225
      %v5395 = vpop.f32.mrb[0].mxu0
      %v5396 = vadd.f32 0.0, %v5395
      %v5397 = vpop.f32.mrb[0].mxu0
      %v5398 = vpop.f32.mrb[0].mxu0
      %v5399 = vadd.f32 0.0, %v5398
      %v5400 = vpop.f32.mrb[0].mxu0
      %5401 = vmatprep.mubr.bf16.mxu0 0
      %5402 = vmatmul.mubr.bf16.gmra.mrb[0].mxu0 %v5228
      %v5403 = vpop.f32.mrb[0].mxu0
      %v5404 = vadd.f32 0.0, %v5403
      %v5405 = vpop.f32.mrb[0].mxu0
      %v5406 = vpop.f32.mrb[0].mxu0
      %v5407 = vadd.f32 0.0, %v5406
      %v5408 = vpop.f32.mrb[0].mxu0
      %5409 = vdwg.mxu0
      %v5410 = vadd.f32 %v5101, %v5268
      %v5411 = vadd.f32 %v5102, %v5271
      %v5412 = vadd.f32 %v5103, %v5276
      %v5413 = vadd.f32 %v5104, %v5279
      %v5414 = vadd.f32 %v5105, %v5284
      %v5415 = vadd.f32 %v5106, %v5287
      %v5416 = vadd.f32 %v5107, %v5292
      %v5417 = vadd.f32 %v5108, %v5295
      %v5418 = vadd.f32 %v5109, %v5300
      %v5419 = vadd.f32 %v5110, %v5303
      %v5420 = vadd.f32 %v5111, %v5308
      %v5421 = vadd.f32 %v5112, %v5311
      %v5422 = vadd.f32 %v5113, %v5316
      %v5423 = vadd.f32 %v5114, %v5319
      %v5424 = vadd.f32 %v5115, %v5324
      %v5425 = vadd.f32 %v5116, %v5327
      %v5426 = vadd.f32 %v5117, %v5332
      %v5427 = vadd.f32 %v5118, %v5335
      %v5428 = vadd.f32 %v5119, %v5340
      %v5429 = vadd.f32 %v5120, %v5343
      %v5430 = vadd.f32 %v5121, %v5348
      %v5431 = vadd.f32 %v5122, %v5351
      %v5432 = vadd.f32 %v5123, %v5356
      %v5433 = vadd.f32 %v5124, %v5359
      %v5434 = vadd.f32 %v5125, %v5364
      %v5435 = vadd.f32 %v5126, %v5367
      %v5436 = vadd.f32 %v5127, %v5372
      %v5437 = vadd.f32 %v5128, %v5375
      %v5438 = vadd.f32 %v5129, %v5380
      %v5439 = vadd.f32 %v5130, %v5383
      %v5440 = vadd.f32 %v5131, %v5388
      %v5441 = vadd.f32 %v5132, %v5391
      %v5442 = vadd.f32 %v5133, %v5396
      %v5443 = vadd.f32 %v5134, %v5399
      %v5444 = vadd.f32 %v5135, %v5404
      %v5445 = vadd.f32 %v5136, %v5407
      %v5446 = vpack.c.bf16 %v3598, %v3597
      %v5447 = vpack.c.bf16 %v3599, %v3599
      %s5448 = scalar_lea.vmem %s4, 12
      %v5449 = vld [vmem:[%s5448] sm:$0x3]
      %v5452 = vrot.slane %v5446, 2
      %v5453 = vsel %vm1866, %v5172, %v5452
      %v5454 = vrot.slane %v5447, 2
      %v5455 = vsel %vm1866, %v5452, %v5454
      %v5457 = vsel %vm493, %v5453, 0
      %v5460 = vsel %vm493, %v5455, 0
      %v5463 = vsel %vm548, %v5449, 0
      %5465 = vmatprep.subr.bf16.mxu0 0
      %5466 = vmatpush1.bf16.msra.mxu0 %v5463
      %5467 = vmatprep.subr.bf16.mxu0 0
      %5468 = vmatpush1.bf16.msra.mxu0 0
      %5469 = vmatprep.subr.bf16.mxu0 0
      %5470 = vmatpush1.bf16.msra.mxu0 0
      %5471 = vmatprep.subr.bf16.mxu0 0
      %5472 = vmatpush1.bf16.msra.mxu0 0
      %5473 = vmatprep.subr.bf16.mxu0 0
      %5474 = vmatpush1.bf16.msra.mxu0 0
      %5475 = vmatprep.subr.bf16.mxu0 0
      %5476 = vmatpush1.bf16.msra.mxu0 0
      %5477 = vmatprep.subr.bf16.mxu0 0
      %5478 = vmatpush1.bf16.msra.mxu0 0
      %5479 = vmatprep.subr.bf16.mxu0 0
      %5480 = vmatpush1.bf16.msra.mxu0 0
      %5481 = vmatprep.subr.bf16.mxu0 0
      %5482 = vmatpush1.bf16.msra.mxu0 0
      %5483 = vmatprep.subr.bf16.mxu0 0
      %5484 = vmatpush1.bf16.msra.mxu0 0
      %5485 = vmatprep.subr.bf16.mxu0 0
      %5486 = vmatpush1.bf16.msra.mxu0 0
      %5487 = vmatprep.subr.bf16.mxu0 0
      %5488 = vmatpush1.bf16.msra.mxu0 0
      %5489 = vmatprep.subr.bf16.mxu0 0
      %5490 = vmatpush1.bf16.msra.mxu0 0
      %5491 = vmatprep.subr.bf16.mxu0 0
      %5492 = vmatpush1.bf16.msra.mxu0 0
      %5493 = vmatprep.subr.bf16.mxu0 0
      %5494 = vmatpush1.bf16.msra.mxu0 0
      %5495 = vmatprep.subr.bf16.mxu0 0
      %5496 = vmatpush1.bf16.msra.mxu0 0
      %5497 = vmatprep.mubr.bf16.mxu0 0
      %5498 = vmatmul.mubr.bf16.gmra.mrb[0].mxu0 %v5180
      %v5499 = vpop.f32.mrb[0].mxu0
      %v5500 = vadd.f32 0.0, %v5499
      %v5501 = vpop.f32.mrb[0].mxu0
      %v5502 = vpop.f32.mrb[0].mxu0
      %v5503 = vadd.f32 0.0, %v5502
      %v5504 = vpop.f32.mrb[0].mxu0
      %5505 = vmatprep.mubr.bf16.mxu0 0
      %5506 = vmatmul.mubr.bf16.gmra.mrb[0].mxu0 %v5183
      %v5507 = vpop.f32.mrb[0].mxu0
      %v5508 = vadd.f32 0.0, %v5507
      %v5509 = vpop.f32.mrb[0].mxu0
      %v5510 = vpop.f32.mrb[0].mxu0
      %v5511 = vadd.f32 0.0, %v5510
      %v5512 = vpop.f32.mrb[0].mxu0
      %5513 = vmatprep.mubr.bf16.mxu0 0
      %5514 = vmatmul.mubr.bf16.gmra.mrb[0].mxu0 %v5186
      %v5515 = vpop.f32.mrb[0].mxu0
      %v5516 = vadd.f32 0.0, %v5515
      %v5517 = vpop.f32.mrb[0].mxu0
      %v5518 = vpop.f32.mrb[0].mxu0
      %v5519 = vadd.f32 0.0, %v5518
      %v5520 = vpop.f32.mrb[0].mxu0
      %5521 = vmatprep.mubr.bf16.mxu0 0
      %5522 = vmatmul.mubr.bf16.gmra.mrb[0].mxu0 %v5189
      %v5523 = vpop.f32.mrb[0].mxu0
      %v5524 = vadd.f32 0.0, %v5523
      %v5525 = vpop.f32.mrb[0].mxu0
      %v5526 = vpop.f32.mrb[0].mxu0
      %v5527 = vadd.f32 0.0, %v5526
      %v5528 = vpop.f32.mrb[0].mxu0
      %5529 = vmatprep.mubr.bf16.mxu0 0
      %5530 = vmatmul.mubr.bf16.gmra.mrb[0].mxu0 %v5192
      %v5531 = vpop.f32.mrb[0].mxu0
      %v5532 = vadd.f32 0.0, %v5531
      %v5533 = vpop.f32.mrb[0].mxu0
      %v5534 = vpop.f32.mrb[0].mxu0
      %v5535 = vadd.f32 0.0, %v5534
      %v5536 = vpop.f32.mrb[0].mxu0
      %5537 = vmatprep.mubr.bf16.mxu0 0
      %5538 = vmatmul.mubr.bf16.gmra.mrb[0].mxu0 %v5195
      %v5539 = vpop.f32.mrb[0].mxu0
      %v5540 = vadd.f32 0.0, %v5539
      %v5541 = vpop.f32.mrb[0].mxu0
      %v5542 = vpop.f32.mrb[0].mxu0
      %v5543 = vadd.f32 0.0, %v5542
      %v5544 = vpop.f32.mrb[0].mxu0
      %5545 = vmatprep.mubr.bf16.mxu0 0
      %5546 = vmatmul.mubr.bf16.gmra.mrb[0].mxu0 %v5198
      %v5547 = vpop.f32.mrb[0].mxu0
      %v5548 = vadd.f32 0.0, %v5547
      %v5549 = vpop.f32.mrb[0].mxu0
      %v5550 = vpop.f32.mrb[0].mxu0
      %v5551 = vadd.f32 0.0, %v5550
      %v5552 = vpop.f32.mrb[0].mxu0
      %5553 = vmatprep.mubr.bf16.mxu0 0
      %5554 = vmatmul.mubr.bf16.gmra.mrb[0].mxu0 %v5201
      %v5555 = vpop.f32.mrb[0].mxu0
      %v5556 = vadd.f32 0.0, %v5555
      %v5557 = vpop.f32.mrb[0].mxu0
      %v5558 = vpop.f32.mrb[0].mxu0
      %v5559 = vadd.f32 0.0, %v5558
      %v5560 = vpop.f32.mrb[0].mxu0
      %5561 = vmatprep.mubr.bf16.mxu0 0
      %5562 = vmatmul.mubr.bf16.gmra.mrb[0].mxu0 %v5204
      %v5563 = vpop.f32.mrb[0].mxu0
      %v5564 = vadd.f32 0.0, %v5563
      %v5565 = vpop.f32.mrb[0].mxu0
      %v5566 = vpop.f32.mrb[0].mxu0
      %v5567 = vadd.f32 0.0, %v5566
      %v5568 = vpop.f32.mrb[0].mxu0
      %5569 = vmatprep.mubr.bf16.mxu0 0
      %5570 = vmatmul.mubr.bf16.gmra.mrb[0].mxu0 %v5207
      %v5571 = vpop.f32.mrb[0].mxu0
      %v5572 = vadd.f32 0.0, %v5571
      %v5573 = vpop.f32.mrb[0].mxu0
      %v5574 = vpop.f32.mrb[0].mxu0
      %v5575 = vadd.f32 0.0, %v5574
      %v5576 = vpop.f32.mrb[0].mxu0
      %5577 = vmatprep.mubr.bf16.mxu0 0
      %5578 = vmatmul.mubr.bf16.gmra.mrb[0].mxu0 %v5210
      %v5579 = vpop.f32.mrb[0].mxu0
      %v5580 = vadd.f32 0.0, %v5579
      %v5581 = vpop.f32.mrb[0].mxu0
      %v5582 = vpop.f32.mrb[0].mxu0
      %v5583 = vadd.f32 0.0, %v5582
      %v5584 = vpop.f32.mrb[0].mxu0
      %5585 = vmatprep.mubr.bf16.mxu0 0
      %5586 = vmatmul.mubr.bf16.gmra.mrb[0].mxu0 %v5213
      %v5587 = vpop.f32.mrb[0].mxu0
      %v5588 = vadd.f32 0.0, %v5587
      %v5589 = vpop.f32.mrb[0].mxu0
      %v5590 = vpop.f32.mrb[0].mxu0
      %v5591 = vadd.f32 0.0, %v5590
      %v5592 = vpop.f32.mrb[0].mxu0
      %5593 = vmatprep.mubr.bf16.mxu0 0
      %5594 = vmatmul.mubr.bf16.gmra.mrb[0].mxu0 %v5216
      %v5595 = vpop.f32.mrb[0].mxu0
      %v5596 = vadd.f32 0.0, %v5595
      %v5597 = vpop.f32.mrb[0].mxu0
      %v5598 = vpop.f32.mrb[0].mxu0
      %v5599 = vadd.f32 0.0, %v5598
      %v5600 = vpop.f32.mrb[0].mxu0
      %5601 = vmatprep.mubr.bf16.mxu0 0
      %5602 = vmatmul.mubr.bf16.gmra.mrb[0].mxu0 %v5219
      %v5603 = vpop.f32.mrb[0].mxu0
      %v5604 = vadd.f32 0.0, %v5603
      %v5605 = vpop.f32.mrb[0].mxu0
      %v5606 = vpop.f32.mrb[0].mxu0
      %v5607 = vadd.f32 0.0, %v5606
      %v5608 = vpop.f32.mrb[0].mxu0
      %5609 = vmatprep.mubr.bf16.mxu0 0
      %5610 = vmatmul.mubr.bf16.gmra.mrb[0].mxu0 %v5222
      %v5611 = vpop.f32.mrb[0].mxu0
      %v5612 = vadd.f32 0.0, %v5611
      %v5613 = vpop.f32.mrb[0].mxu0
      %v5614 = vpop.f32.mrb[0].mxu0
      %v5615 = vadd.f32 0.0, %v5614
      %v5616 = vpop.f32.mrb[0].mxu0
      %5617 = vmatprep.mubr.bf16.mxu0 0
      %5618 = vmatmul.mubr.bf16.gmra.mrb[0].mxu0 %v5225
      %v5619 = vpop.f32.mrb[0].mxu0
      %v5620 = vadd.f32 0.0, %v5619
      %v5621 = vpop.f32.mrb[0].mxu0
      %v5622 = vpop.f32.mrb[0].mxu0
      %v5623 = vadd.f32 0.0, %v5622
      %v5624 = vpop.f32.mrb[0].mxu0
      %5625 = vmatprep.mubr.bf16.mxu0 0
      %5626 = vmatmul.mubr.bf16.gmra.mrb[0].mxu0 %v5457
      %v5627 = vpop.f32.mrb[0].mxu0
      %v5628 = vadd.f32 0.0, %v5627
      %v5629 = vpop.f32.mrb[0].mxu0
      %v5630 = vpop.f32.mrb[0].mxu0
      %v5631 = vadd.f32 0.0, %v5630
      %v5632 = vpop.f32.mrb[0].mxu0
      %5633 = vmatprep.mubr.bf16.mxu0 0
      %5634 = vmatmul.mubr.bf16.gmra.mrb[0].mxu0 %v5460
      %v5635 = vpop.f32.mrb[0].mxu0
      %v5636 = vadd.f32 0.0, %v5635
      %v5637 = vpop.f32.mrb[0].mxu0
      %v5638 = vpop.f32.mrb[0].mxu0
      %v5639 = vadd.f32 0.0, %v5638
      %v5640 = vpop.f32.mrb[0].mxu0
      %5641 = vdwg.mxu0
      %v5642 = vadd.f32 %v5410, %v5500
      %v5643 = vadd.f32 %v5411, %v5503
      %v5644 = vadd.f32 %v5412, %v5508
      %v5645 = vadd.f32 %v5413, %v5511
      %v5646 = vadd.f32 %v5414, %v5516
      %v5647 = vadd.f32 %v5415, %v5519
      %v5648 = vadd.f32 %v5416, %v5524
      %v5649 = vadd.f32 %v5417, %v5527
      %v5650 = vadd.f32 %v5418, %v5532
      %v5651 = vadd.f32 %v5419, %v5535
      %v5652 = vadd.f32 %v5420, %v5540
      %v5653 = vadd.f32 %v5421, %v5543
      %v5654 = vadd.f32 %v5422, %v5548
      %v5655 = vadd.f32 %v5423, %v5551
      %v5656 = vadd.f32 %v5424, %v5556
      %v5657 = vadd.f32 %v5425, %v5559
      %v5658 = vadd.f32 %v5426, %v5564
      %v5659 = vadd.f32 %v5427, %v5567
      %v5660 = vadd.f32 %v5428, %v5572
      %v5661 = vadd.f32 %v5429, %v5575
      %v5662 = vadd.f32 %v5430, %v5580
      %v5663 = vadd.f32 %v5431, %v5583
      %v5664 = vadd.f32 %v5432, %v5588
      %v5665 = vadd.f32 %v5433, %v5591
      %v5666 = vadd.f32 %v5434, %v5596
      %v5667 = vadd.f32 %v5435, %v5599
      %v5668 = vadd.f32 %v5436, %v5604
      %v5669 = vadd.f32 %v5437, %v5607
      %v5670 = vadd.f32 %v5438, %v5612
      %v5671 = vadd.f32 %v5439, %v5615
      %v5672 = vadd.f32 %v5440, %v5620
      %v5673 = vadd.f32 %v5441, %v5623
      %v5674 = vadd.f32 %v5442, %v5628
      %v5675 = vadd.f32 %v5443, %v5631
      %v5676 = vadd.f32 %v5444, %v5636
      %v5677 = vadd.f32 %v5445, %v5639
      %s5678 = scalar_lea.vmem %s4, 14
      %v5679 = vld [vmem:[%s5678] sm:$0x3]
      %v5680 = vrot.slane %v3642, 2
      %v5681 = vrot.slane %v3638, 3
      %v5682 = vor.u32 %v5680, %v5681
      %v5683 = vrot.slane %v3650, 2
      %v5684 = vrot.slane %v3646, 3
      %v5685 = vor.u32 %v5683, %v5684
      %v5686 = vsel %vm2408, %v5682, %v5685
      %v5687 = vrot.slane %v3658, 2
      %v5688 = vrot.slane %v3654, 3
      %v5689 = vor.u32 %v5687, %v5688
      %v5690 = vsel %vm2408, %v5685, %v5689
      %v5691 = vrot.slane %v3666, 2
      %v5692 = vrot.slane %v3662, 3
      %v5693 = vor.u32 %v5691, %v5692
      %v5694 = vsel %vm2408, %v5689, %v5693
      %v5695 = vrot.slane %v3674, 2
      %v5696 = vrot.slane %v3670, 3
      %v5697 = vor.u32 %v5695, %v5696
      %v5698 = vsel %vm2408, %v5693, %v5697
      %v5699 = vrot.slane %v3682, 2
      %v5700 = vrot.slane %v3678, 3
      %v5701 = vor.u32 %v5699, %v5700
      %v5702 = vsel %vm2408, %v5697, %v5701
      %v5703 = vrot.slane %v3690, 2
      %v5704 = vrot.slane %v3686, 3
      %v5705 = vor.u32 %v5703, %v5704
      %v5706 = vsel %vm2408, %v5701, %v5705
      %v5707 = vrot.slane %v3698, 2
      %v5708 = vrot.slane %v3694, 3
      %v5709 = vor.u32 %v5707, %v5708
      %v5710 = vsel %vm2408, %v5705, %v5709
      %v5711 = vrot.slane %v3706, 2
      %v5712 = vrot.slane %v3702, 3
      %v5713 = vor.u32 %v5711, %v5712
      %v5714 = vsel %vm2408, %v5709, %v5713
      %v5715 = vrot.slane %v3714, 2
      %v5716 = vrot.slane %v3710, 3
      %v5717 = vor.u32 %v5715, %v5716
      %v5718 = vsel %vm2408, %v5713, %v5717
      %v5719 = vrot.slane %v3722, 2
      %v5720 = vrot.slane %v3718, 3
      %v5721 = vor.u32 %v5719, %v5720
      %v5722 = vsel %vm2408, %v5717, %v5721
      %v5723 = vrot.slane %v3730, 2
      %v5724 = vrot.slane %v3726, 3
      %v5725 = vor.u32 %v5723, %v5724
      %v5726 = vsel %vm2408, %v5721, %v5725
      %v5727 = vrot.slane %v3738, 2
      %v5728 = vrot.slane %v3734, 3
      %v5729 = vor.u32 %v5727, %v5728
      %v5730 = vsel %vm2408, %v5725, %v5729
      %v5731 = vrot.slane %v3746, 2
      %v5732 = vrot.slane %v3742, 3
      %v5733 = vor.u32 %v5731, %v5732
      %v5734 = vsel %vm2408, %v5729, %v5733
      %v5735 = vrot.slane %v3754, 2
      %v5736 = vrot.slane %v3750, 3
      %v5737 = vor.u32 %v5735, %v5736
      %v5738 = vsel %vm2408, %v5733, %v5737
      %v5739 = vrot.slane %v3762, 2
      %v5740 = vrot.slane %v3758, 3
      %v5741 = vor.u32 %v5739, %v5740
      %v5742 = vsel %vm2408, %v5737, %v5741
      %v5743 = vrot.slane %v4850, 2
      %v5744 = vrot.slane %v4853, 3
      %v5745 = vor.u32 %v5743, %v5744
      %v5746 = vsel %vm2408, %v5741, %v5745
      %v5748 = vshrl.u32 %v5446, 16
      %v5750 = vrot.slane %v5748, 2
      %v5751 = vshll.u32 %v5446, 16
      %v5753 = vrot.slane %v5751, 3
      %v5754 = vor.u32 %v5750, %v5753
      %v5755 = vsel %vm2408, %v5745, %v5754
      %v5757 = vshrl.u32 %v5447, 16
      %v5759 = vrot.slane %v5757, 2
      %v5760 = vshll.u32 %v5447, 16
      %v5762 = vrot.slane %v5760, 3
      %v5763 = vor.u32 %v5759, %v5762
      %v5764 = vsel %vm2408, %v5754, %v5763
      %v5766 = vsel %vm493, %v5686, 0
      %v5769 = vsel %vm493, %v5690, 0
      %v5772 = vsel %vm493, %v5694, 0
      %v5775 = vsel %vm493, %v5698, 0
      %v5778 = vsel %vm493, %v5702, 0
      %v5781 = vsel %vm493, %v5706, 0
      %v5784 = vsel %vm493, %v5710, 0
      %v5787 = vsel %vm493, %v5714, 0
      %v5790 = vsel %vm493, %v5718, 0
      %v5793 = vsel %vm493, %v5722, 0
      %v5796 = vsel %vm493, %v5726, 0
      %v5799 = vsel %vm493, %v5730, 0
      %v5802 = vsel %vm493, %v5734, 0
      %v5805 = vsel %vm493, %v5738, 0
      %v5808 = vsel %vm493, %v5742, 0
      %v5811 = vsel %vm493, %v5746, 0
      %v5814 = vsel %vm493, %v5755, 0
      %v5817 = vsel %vm493, %v5764, 0
      %v5820 = vsel %vm548, %v5679, 0
      %5822 = vmatprep.subr.bf16.mxu0 0
      %5823 = vmatpush1.bf16.msra.mxu0 %v5820
      %5824 = vmatprep.subr.bf16.mxu0 0
      %5825 = vmatpush1.bf16.msra.mxu0 0
      %5826 = vmatprep.subr.bf16.mxu0 0
      %5827 = vmatpush1.bf16.msra.mxu0 0
      %5828 = vmatprep.subr.bf16.mxu0 0
      %5829 = vmatpush1.bf16.msra.mxu0 0
      %5830 = vmatprep.subr.bf16.mxu0 0
      %5831 = vmatpush1.bf16.msra.mxu0 0
      %5832 = vmatprep.subr.bf16.mxu0 0
      %5833 = vmatpush1.bf16.msra.mxu0 0
      %5834 = vmatprep.subr.bf16.mxu0 0
      %5835 = vmatpush1.bf16.msra.mxu0 0
      %5836 = vmatprep.subr.bf16.mxu0 0
      %5837 = vmatpush1.bf16.msra.mxu0 0
      %5838 = vmatprep.subr.bf16.mxu0 0
      %5839 = vmatpush1.bf16.msra.mxu0 0
      %5840 = vmatprep.subr.bf16.mxu0 0
      %5841 = vmatpush1.bf16.msra.mxu0 0
      %5842 = vmatprep.subr.bf16.mxu0 0
      %5843 = vmatpush1.bf16.msra.mxu0 0
      %5844 = vmatprep.subr.bf16.mxu0 0
      %5845 = vmatpush1.bf16.msra.mxu0 0
      %5846 = vmatprep.subr.bf16.mxu0 0
      %5847 = vmatpush1.bf16.msra.mxu0 0
      %5848 = vmatprep.subr.bf16.mxu0 0
      %5849 = vmatpush1.bf16.msra.mxu0 0
      %5850 = vmatprep.subr.bf16.mxu0 0
      %5851 = vmatpush1.bf16.msra.mxu0 0
      %5852 = vmatprep.subr.bf16.mxu0 0
      %5853 = vmatpush1.bf16.msra.mxu0 0
      %5854 = vmatprep.mubr.bf16.mxu0 0
      %5855 = vmatmul.mubr.bf16.gmra.mrb[0].mxu0 %v5766
      %v5856 = vpop.f32.mrb[0].mxu0
      %v5857 = vadd.f32 0.0, %v5856
      %v5858 = vpop.f32.mrb[0].mxu0
      %v5859 = vpop.f32.mrb[0].mxu0
      %v5860 = vadd.f32 0.0, %v5859
      %v5861 = vpop.f32.mrb[0].mxu0
      %5862 = vmatprep.mubr.bf16.mxu0 0
      %5863 = vmatmul.mubr.bf16.gmra.mrb[0].mxu0 %v5769
      %v5864 = vpop.f32.mrb[0].mxu0
      %v5865 = vadd.f32 0.0, %v5864
      %v5866 = vpop.f32.mrb[0].mxu0
      %v5867 = vpop.f32.mrb[0].mxu0
      %v5868 = vadd.f32 0.0, %v5867
      %v5869 = vpop.f32.mrb[0].mxu0
      %5870 = vmatprep.mubr.bf16.mxu0 0
      %5871 = vmatmul.mubr.bf16.gmra.mrb[0].mxu0 %v5772
      %v5872 = vpop.f32.mrb[0].mxu0
      %v5873 = vadd.f32 0.0, %v5872
      %v5874 = vpop.f32.mrb[0].mxu0
      %v5875 = vpop.f32.mrb[0].mxu0
      %v5876 = vadd.f32 0.0, %v5875
      %v5877 = vpop.f32.mrb[0].mxu0
      %5878 = vmatprep.mubr.bf16.mxu0 0
      %5879 = vmatmul.mubr.bf16.gmra.mrb[0].mxu0 %v5775
      %v5880 = vpop.f32.mrb[0].mxu0
      %v5881 = vadd.f32 0.0, %v5880
      %v5882 = vpop.f32.mrb[0].mxu0
      %v5883 = vpop.f32.mrb[0].mxu0
      %v5884 = vadd.f32 0.0, %v5883
      %v5885 = vpop.f32.mrb[0].mxu0
      %5886 = vmatprep.mubr.bf16.mxu0 0
      %5887 = vmatmul.mubr.bf16.gmra.mrb[0].mxu0 %v5778
      %v5888 = vpop.f32.mrb[0].mxu0
      %v5889 = vadd.f32 0.0, %v5888
      %v5890 = vpop.f32.mrb[0].mxu0
      %v5891 = vpop.f32.mrb[0].mxu0
      %v5892 = vadd.f32 0.0, %v5891
      %v5893 = vpop.f32.mrb[0].mxu0
      %5894 = vmatprep.mubr.bf16.mxu0 0
      %5895 = vmatmul.mubr.bf16.gmra.mrb[0].mxu0 %v5781
      %v5896 = vpop.f32.mrb[0].mxu0
      %v5897 = vadd.f32 0.0, %v5896
      %v5898 = vpop.f32.mrb[0].mxu0
      %v5899 = vpop.f32.mrb[0].mxu0
      %v5900 = vadd.f32 0.0, %v5899
      %v5901 = vpop.f32.mrb[0].mxu0
      %5902 = vmatprep.mubr.bf16.mxu0 0
      %5903 = vmatmul.mubr.bf16.gmra.mrb[0].mxu0 %v5784
      %v5904 = vpop.f32.mrb[0].mxu0
      %v5905 = vadd.f32 0.0, %v5904
      %v5906 = vpop.f32.mrb[0].mxu0
      %v5907 = vpop.f32.mrb[0].mxu0
      %v5908 = vadd.f32 0.0, %v5907
      %v5909 = vpop.f32.mrb[0].mxu0
      %5910 = vmatprep.mubr.bf16.mxu0 0
      %5911 = vmatmul.mubr.bf16.gmra.mrb[0].mxu0 %v5787
      %v5912 = vpop.f32.mrb[0].mxu0
      %v5913 = vadd.f32 0.0, %v5912
      %v5914 = vpop.f32.mrb[0].mxu0
      %v5915 = vpop.f32.mrb[0].mxu0
      %v5916 = vadd.f32 0.0, %v5915
      %v5917 = vpop.f32.mrb[0].mxu0
      %5918 = vmatprep.mubr.bf16.mxu0 0
      %5919 = vmatmul.mubr.bf16.gmra.mrb[0].mxu0 %v5790
      %v5920 = vpop.f32.mrb[0].mxu0
      %v5921 = vadd.f32 0.0, %v5920
      %v5922 = vpop.f32.mrb[0].mxu0
      %v5923 = vpop.f32.mrb[0].mxu0
      %v5924 = vadd.f32 0.0, %v5923
      %v5925 = vpop.f32.mrb[0].mxu0
      %5926 = vmatprep.mubr.bf16.mxu0 0
      %5927 = vmatmul.mubr.bf16.gmra.mrb[0].mxu0 %v5793
      %v5928 = vpop.f32.mrb[0].mxu0
      %v5929 = vadd.f32 0.0, %v5928
      %v5930 = vpop.f32.mrb[0].mxu0
      %v5931 = vpop.f32.mrb[0].mxu0
      %v5932 = vadd.f32 0.0, %v5931
      %v5933 = vpop.f32.mrb[0].mxu0
      %5934 = vmatprep.mubr.bf16.mxu0 0
      %5935 = vmatmul.mubr.bf16.gmra.mrb[0].mxu0 %v5796
      %v5936 = vpop.f32.mrb[0].mxu0
      %v5937 = vadd.f32 0.0, %v5936
      %v5938 = vpop.f32.mrb[0].mxu0
      %v5939 = vpop.f32.mrb[0].mxu0
      %v5940 = vadd.f32 0.0, %v5939
      %v5941 = vpop.f32.mrb[0].mxu0
      %5942 = vmatprep.mubr.bf16.mxu0 0
      %5943 = vmatmul.mubr.bf16.gmra.mrb[0].mxu0 %v5799
      %v5944 = vpop.f32.mrb[0].mxu0
      %v5945 = vadd.f32 0.0, %v5944
      %v5946 = vpop.f32.mrb[0].mxu0
      %v5947 = vpop.f32.mrb[0].mxu0
      %v5948 = vadd.f32 0.0, %v5947
      %v5949 = vpop.f32.mrb[0].mxu0
      %5950 = vmatprep.mubr.bf16.mxu0 0
      %5951 = vmatmul.mubr.bf16.gmra.mrb[0].mxu0 %v5802
      %v5952 = vpop.f32.mrb[0].mxu0
      %v5953 = vadd.f32 0.0, %v5952
      %v5954 = vpop.f32.mrb[0].mxu0
      %v5955 = vpop.f32.mrb[0].mxu0
      %v5956 = vadd.f32 0.0, %v5955
      %v5957 = vpop.f32.mrb[0].mxu0
      %5958 = vmatprep.mubr.bf16.mxu0 0
      %5959 = vmatmul.mubr.bf16.gmra.mrb[0].mxu0 %v5805
      %v5960 = vpop.f32.mrb[0].mxu0
      %v5961 = vadd.f32 0.0, %v5960
      %v5962 = vpop.f32.mrb[0].mxu0
      %v5963 = vpop.f32.mrb[0].mxu0
      %v5964 = vadd.f32 0.0, %v5963
      %v5965 = vpop.f32.mrb[0].mxu0
      %5966 = vmatprep.mubr.bf16.mxu0 0
      %5967 = vmatmul.mubr.bf16.gmra.mrb[0].mxu0 %v5808
      %v5968 = vpop.f32.mrb[0].mxu0
      %v5969 = vadd.f32 0.0, %v5968
      %v5970 = vpop.f32.mrb[0].mxu0
      %v5971 = vpop.f32.mrb[0].mxu0
      %v5972 = vadd.f32 0.0, %v5971
      %v5973 = vpop.f32.mrb[0].mxu0
      %5974 = vmatprep.mubr.bf16.mxu0 0
      %5975 = vmatmul.mubr.bf16.gmra.mrb[0].mxu0 %v5811
      %v5976 = vpop.f32.mrb[0].mxu0
      %v5977 = vadd.f32 0.0, %v5976
      %v5978 = vpop.f32.mrb[0].mxu0
      %v5979 = vpop.f32.mrb[0].mxu0
      %v5980 = vadd.f32 0.0, %v5979
      %v5981 = vpop.f32.mrb[0].mxu0
      %5982 = vmatprep.mubr.bf16.mxu0 0
      %5983 = vmatmul.mubr.bf16.gmra.mrb[0].mxu0 %v5814
      %v5984 = vpop.f32.mrb[0].mxu0
      %v5985 = vadd.f32 0.0, %v5984
      %v5986 = vpop.f32.mrb[0].mxu0
      %v5987 = vpop.f32.mrb[0].mxu0
      %v5988 = vadd.f32 0.0, %v5987
      %v5989 = vpop.f32.mrb[0].mxu0
      %5990 = vmatprep.mubr.bf16.mxu0 0
      %5991 = vmatmul.mubr.bf16.gmra.mrb[0].mxu0 %v5817
      %v5992 = vpop.f32.mrb[0].mxu0
      %v5993 = vadd.f32 0.0, %v5992
      %v5994 = vpop.f32.mrb[0].mxu0
      %v5995 = vpop.f32.mrb[0].mxu0
      %v5996 = vadd.f32 0.0, %v5995
      %v5997 = vpop.f32.mrb[0].mxu0
      %5998 = vdwg.mxu0
      %v5999 = vadd.f32 %v5642, %v5857
      %v6000 = vadd.f32 %v5643, %v5860
      %v6001 = vadd.f32 %v5644, %v5865
      %v6002 = vadd.f32 %v5645, %v5868
      %v6003 = vadd.f32 %v5646, %v5873
      %v6004 = vadd.f32 %v5647, %v5876
      %v6005 = vadd.f32 %v5648, %v5881
      %v6006 = vadd.f32 %v5649, %v5884
      %v6007 = vadd.f32 %v5650, %v5889
      %v6008 = vadd.f32 %v5651, %v5892
      %v6009 = vadd.f32 %v5652, %v5897
      %v6010 = vadd.f32 %v5653, %v5900
      %v6011 = vadd.f32 %v5654, %v5905
      %v6012 = vadd.f32 %v5655, %v5908
      %v6013 = vadd.f32 %v5656, %v5913
      %v6014 = vadd.f32 %v5657, %v5916
      %v6015 = vadd.f32 %v5658, %v5921
      %v6016 = vadd.f32 %v5659, %v5924
      %v6017 = vadd.f32 %v5660, %v5929
      %v6018 = vadd.f32 %v5661, %v5932
      %v6019 = vadd.f32 %v5662, %v5937
      %v6020 = vadd.f32 %v5663, %v5940
      %v6021 = vadd.f32 %v5664, %v5945
      %v6022 = vadd.f32 %v5665, %v5948
      %v6023 = vadd.f32 %v5666, %v5953
      %v6024 = vadd.f32 %v5667, %v5956
      %v6025 = vadd.f32 %v5668, %v5961
      %v6026 = vadd.f32 %v5669, %v5964
      %v6027 = vadd.f32 %v5670, %v5969
      %v6028 = vadd.f32 %v5671, %v5972
      %v6029 = vadd.f32 %v5672, %v5977
      %v6030 = vadd.f32 %v5673, %v5980
      %v6031 = vadd.f32 %v5674, %v5985
      %v6032 = vadd.f32 %v5675, %v5988
      %v6033 = vadd.f32 %v5676, %v5993
      %v6034 = vadd.f32 %v5677, %v5996
      %s6035 = scalar_lea.vmem %s4, 16
      %v6036 = vld [vmem:[%s6035] sm:$0x3]
      %v6037 = vrot.slane %v3602, 3
      %v6038 = vrot.slane %v3603, 3
      %v6039 = vsel %vm2766, %v6037, %v6038
      %v6040 = vrot.slane %v3604, 3
      %v6041 = vsel %vm2766, %v6038, %v6040
      %v6042 = vrot.slane %v3605, 3
      %v6043 = vsel %vm2766, %v6040, %v6042
      %v6044 = vrot.slane %v3606, 3
      %v6045 = vsel %vm2766, %v6042, %v6044
      %v6046 = vrot.slane %v3607, 3
      %v6047 = vsel %vm2766, %v6044, %v6046
      %v6048 = vrot.slane %v3608, 3
      %v6049 = vsel %vm2766, %v6046, %v6048
      %v6050 = vrot.slane %v3609, 3
      %v6051 = vsel %vm2766, %v6048, %v6050
      %v6052 = vrot.slane %v3610, 3
      %v6053 = vsel %vm2766, %v6050, %v6052
      %v6054 = vrot.slane %v3611, 3
      %v6055 = vsel %vm2766, %v6052, %v6054
      %v6056 = vrot.slane %v3612, 3
      %v6057 = vsel %vm2766, %v6054, %v6056
      %v6058 = vrot.slane %v3613, 3
      %v6059 = vsel %vm2766, %v6056, %v6058
      %v6060 = vrot.slane %v3614, 3
      %v6061 = vsel %vm2766, %v6058, %v6060
      %v6062 = vrot.slane %v3615, 3
      %v6063 = vsel %vm2766, %v6060, %v6062
      %v6064 = vrot.slane %v3616, 3
      %v6065 = vsel %vm2766, %v6062, %v6064
      %v6066 = vrot.slane %v3617, 3
      %v6067 = vsel %vm2766, %v6064, %v6066
      %v6068 = vrot.slane %v4548, 3
      %v6069 = vsel %vm2766, %v6066, %v6068
      %v6070 = vrot.slane %v5446, 3
      %v6071 = vsel %vm2766, %v6068, %v6070
      %v6072 = vrot.slane %v5447, 3
      %v6073 = vsel %vm2766, %v6070, %v6072
      %v6075 = vsel %vm493, %v6039, 0
      %v6078 = vsel %vm493, %v6041, 0
      %v6081 = vsel %vm493, %v6043, 0
      %v6084 = vsel %vm493, %v6045, 0
      %v6087 = vsel %vm493, %v6047, 0
      %v6090 = vsel %vm493, %v6049, 0
      %v6093 = vsel %vm493, %v6051, 0
      %v6096 = vsel %vm493, %v6053, 0
      %v6099 = vsel %vm493, %v6055, 0
      %v6102 = vsel %vm493, %v6057, 0
      %v6105 = vsel %vm493, %v6059, 0
      %v6108 = vsel %vm493, %v6061, 0
      %v6111 = vsel %vm493, %v6063, 0
      %v6114 = vsel %vm493, %v6065, 0
      %v6117 = vsel %vm493, %v6067, 0
      %v6120 = vsel %vm493, %v6069, 0
      %v6123 = vsel %vm493, %v6071, 0
      %v6126 = vsel %vm493, %v6073, 0
      %v6129 = vsel %vm548, %v6036, 0
      %6131 = vmatprep.subr.bf16.mxu0 0
      %6132 = vmatpush1.bf16.msra.mxu0 %v6129
      %6133 = vmatprep.subr.bf16.mxu0 0
      %6134 = vmatpush1.bf16.msra.mxu0 0
      %6135 = vmatprep.subr.bf16.mxu0 0
      %6136 = vmatpush1.bf16.msra.mxu0 0
      %6137 = vmatprep.subr.bf16.mxu0 0
      %6138 = vmatpush1.bf16.msra.mxu0 0
      %6139 = vmatprep.subr.bf16.mxu0 0
      %6140 = vmatpush1.bf16.msra.mxu0 0
      %6141 = vmatprep.subr.bf16.mxu0 0
      %6142 = vmatpush1.bf16.msra.mxu0 0
      %6143 = vmatprep.subr.bf16.mxu0 0
      %6144 = vmatpush1.bf16.msra.mxu0 0
      %6145 = vmatprep.subr.bf16.mxu0 0
      %6146 = vmatpush1.bf16.msra.mxu0 0
      %6147 = vmatprep.subr.bf16.mxu0 0
      %6148 = vmatpush1.bf16.msra.mxu0 0
      %6149 = vmatprep.subr.bf16.mxu0 0
      %6150 = vmatpush1.bf16.msra.mxu0 0
      %6151 = vmatprep.subr.bf16.mxu0 0
      %6152 = vmatpush1.bf16.msra.mxu0 0
      %6153 = vmatprep.subr.bf16.mxu0 0
      %6154 = vmatpush1.bf16.msra.mxu0 0
      %6155 = vmatprep.subr.bf16.mxu0 0
      %6156 = vmatpush1.bf16.msra.mxu0 0
      %6157 = vmatprep.subr.bf16.mxu0 0
      %6158 = vmatpush1.bf16.msra.mxu0 0
      %6159 = vmatprep.subr.bf16.mxu0 0
      %6160 = vmatpush1.bf16.msra.mxu0 0
      %6161 = vmatprep.subr.bf16.mxu0 0
      %6162 = vmatpush1.bf16.msra.mxu0 0
      %6163 = vmatprep.mubr.bf16.mxu0 0
      %6164 = vmatmul.mubr.bf16.gmra.mrb[0].mxu0 %v6075
      %v6165 = vpop.f32.mrb[0].mxu0
      %v6166 = vadd.f32 0.0, %v6165
      %v6167 = vpop.f32.mrb[0].mxu0
      %v6168 = vpop.f32.mrb[0].mxu0
      %v6169 = vadd.f32 0.0, %v6168
      %v6170 = vpop.f32.mrb[0].mxu0
      %6171 = vmatprep.mubr.bf16.mxu0 0
      %6172 = vmatmul.mubr.bf16.gmra.mrb[0].mxu0 %v6078
      %v6173 = vpop.f32.mrb[0].mxu0
      %v6174 = vadd.f32 0.0, %v6173
      %v6175 = vpop.f32.mrb[0].mxu0
      %v6176 = vpop.f32.mrb[0].mxu0
      %v6177 = vadd.f32 0.0, %v6176
      %v6178 = vpop.f32.mrb[0].mxu0
      %6179 = vmatprep.mubr.bf16.mxu0 0
      %6180 = vmatmul.mubr.bf16.gmra.mrb[0].mxu0 %v6081
      %v6181 = vpop.f32.mrb[0].mxu0
      %v6182 = vadd.f32 0.0, %v6181
      %v6183 = vpop.f32.mrb[0].mxu0
      %v6184 = vpop.f32.mrb[0].mxu0
      %v6185 = vadd.f32 0.0, %v6184
      %v6186 = vpop.f32.mrb[0].mxu0
      %6187 = vmatprep.mubr.bf16.mxu0 0
      %6188 = vmatmul.mubr.bf16.gmra.mrb[0].mxu0 %v6084
      %v6189 = vpop.f32.mrb[0].mxu0
      %v6190 = vadd.f32 0.0, %v6189
      %v6191 = vpop.f32.mrb[0].mxu0
      %v6192 = vpop.f32.mrb[0].mxu0
      %v6193 = vadd.f32 0.0, %v6192
      %v6194 = vpop.f32.mrb[0].mxu0
      %6195 = vmatprep.mubr.bf16.mxu0 0
      %6196 = vmatmul.mubr.bf16.gmra.mrb[0].mxu0 %v6087
      %v6197 = vpop.f32.mrb[0].mxu0
      %v6198 = vadd.f32 0.0, %v6197
      %v6199 = vpop.f32.mrb[0].mxu0
      %v6200 = vpop.f32.mrb[0].mxu0
      %v6201 = vadd.f32 0.0, %v6200
      %v6202 = vpop.f32.mrb[0].mxu0
      %6203 = vmatprep.mubr.bf16.mxu0 0
      %6204 = vmatmul.mubr.bf16.gmra.mrb[0].mxu0 %v6090
      %v6205 = vpop.f32.mrb[0].mxu0
      %v6206 = vadd.f32 0.0, %v6205
      %v6207 = vpop.f32.mrb[0].mxu0
      %v6208 = vpop.f32.mrb[0].mxu0
      %v6209 = vadd.f32 0.0, %v6208
      %v6210 = vpop.f32.mrb[0].mxu0
      %6211 = vmatprep.mubr.bf16.mxu0 0
      %6212 = vmatmul.mubr.bf16.gmra.mrb[0].mxu0 %v6093
      %v6213 = vpop.f32.mrb[0].mxu0
      %v6214 = vadd.f32 0.0, %v6213
      %v6215 = vpop.f32.mrb[0].mxu0
      %v6216 = vpop.f32.mrb[0].mxu0
      %v6217 = vadd.f32 0.0, %v6216
      %v6218 = vpop.f32.mrb[0].mxu0
      %6219 = vmatprep.mubr.bf16.mxu0 0
      %6220 = vmatmul.mubr.bf16.gmra.mrb[0].mxu0 %v6096
      %v6221 = vpop.f32.mrb[0].mxu0
      %v6222 = vadd.f32 0.0, %v6221
      %v6223 = vpop.f32.mrb[0].mxu0
      %v6224 = vpop.f32.mrb[0].mxu0
      %v6225 = vadd.f32 0.0, %v6224
      %v6226 = vpop.f32.mrb[0].mxu0
      %6227 = vmatprep.mubr.bf16.mxu0 0
      %6228 = vmatmul.mubr.bf16.gmra.mrb[0].mxu0 %v6099
      %v6229 = vpop.f32.mrb[0].mxu0
      %v6230 = vadd.f32 0.0, %v6229
      %v6231 = vpop.f32.mrb[0].mxu0
      %v6232 = vpop.f32.mrb[0].mxu0
      %v6233 = vadd.f32 0.0, %v6232
      %v6234 = vpop.f32.mrb[0].mxu0
      %6235 = vmatprep.mubr.bf16.mxu0 0
      %6236 = vmatmul.mubr.bf16.gmra.mrb[0].mxu0 %v6102
      %v6237 = vpop.f32.mrb[0].mxu0
      %v6238 = vadd.f32 0.0, %v6237
      %v6239 = vpop.f32.mrb[0].mxu0
      %v6240 = vpop.f32.mrb[0].mxu0
      %v6241 = vadd.f32 0.0, %v6240
      %v6242 = vpop.f32.mrb[0].mxu0
      %6243 = vmatprep.mubr.bf16.mxu0 0
      %6244 = vmatmul.mubr.bf16.gmra.mrb[0].mxu0 %v6105
      %v6245 = vpop.f32.mrb[0].mxu0
      %v6246 = vadd.f32 0.0, %v6245
      %v6247 = vpop.f32.mrb[0].mxu0
      %v6248 = vpop.f32.mrb[0].mxu0
      %v6249 = vadd.f32 0.0, %v6248
      %v6250 = vpop.f32.mrb[0].mxu0
      %6251 = vmatprep.mubr.bf16.mxu0 0
      %6252 = vmatmul.mubr.bf16.gmra.mrb[0].mxu0 %v6108
      %v6253 = vpop.f32.mrb[0].mxu0
      %v6254 = vadd.f32 0.0, %v6253
      %v6255 = vpop.f32.mrb[0].mxu0
      %v6256 = vpop.f32.mrb[0].mxu0
      %v6257 = vadd.f32 0.0, %v6256
      %v6258 = vpop.f32.mrb[0].mxu0
      %6259 = vmatprep.mubr.bf16.mxu0 0
      %6260 = vmatmul.mubr.bf16.gmra.mrb[0].mxu0 %v6111
      %v6261 = vpop.f32.mrb[0].mxu0
      %v6262 = vadd.f32 0.0, %v6261
      %v6263 = vpop.f32.mrb[0].mxu0
      %v6264 = vpop.f32.mrb[0].mxu0
      %v6265 = vadd.f32 0.0, %v6264
      %v6266 = vpop.f32.mrb[0].mxu0
      %6267 = vmatprep.mubr.bf16.mxu0 0
      %6268 = vmatmul.mubr.bf16.gmra.mrb[0].mxu0 %v6114
      %v6269 = vpop.f32.mrb[0].mxu0
      %v6270 = vadd.f32 0.0, %v6269
      %v6271 = vpop.f32.mrb[0].mxu0
      %v6272 = vpop.f32.mrb[0].mxu0
      %v6273 = vadd.f32 0.0, %v6272
      %v6274 = vpop.f32.mrb[0].mxu0
      %6275 = vmatprep.mubr.bf16.mxu0 0
      %6276 = vmatmul.mubr.bf16.gmra.mrb[0].mxu0 %v6117
      %v6277 = vpop.f32.mrb[0].mxu0
      %v6278 = vadd.f32 0.0, %v6277
      %v6279 = vpop.f32.mrb[0].mxu0
      %v6280 = vpop.f32.mrb[0].mxu0
      %v6281 = vadd.f32 0.0, %v6280
      %v6282 = vpop.f32.mrb[0].mxu0
      %6283 = vmatprep.mubr.bf16.mxu0 0
      %6284 = vmatmul.mubr.bf16.gmra.mrb[0].mxu0 %v6120
      %v6285 = vpop.f32.mrb[0].mxu0
      %v6286 = vadd.f32 0.0, %v6285
      %v6287 = vpop.f32.mrb[0].mxu0
      %v6288 = vpop.f32.mrb[0].mxu0
      %v6289 = vadd.f32 0.0, %v6288
      %v6290 = vpop.f32.mrb[0].mxu0
      %6291 = vmatprep.mubr.bf16.mxu0 0
      %6292 = vmatmul.mubr.bf16.gmra.mrb[0].mxu0 %v6123
      %v6293 = vpop.f32.mrb[0].mxu0
      %v6294 = vadd.f32 0.0, %v6293
      %v6295 = vpop.f32.mrb[0].mxu0
      %v6296 = vpop.f32.mrb[0].mxu0
      %v6297 = vadd.f32 0.0, %v6296
      %v6298 = vpop.f32.mrb[0].mxu0
      %6299 = vmatprep.mubr.bf16.mxu0 0
      %6300 = vmatmul.mubr.bf16.gmra.mrb[0].mxu0 %v6126
      %v6301 = vpop.f32.mrb[0].mxu0
      %v6302 = vadd.f32 0.0, %v6301
      %v6303 = vpop.f32.mrb[0].mxu0
      %v6304 = vpop.f32.mrb[0].mxu0
      %v6305 = vadd.f32 0.0, %v6304
      %v6306 = vpop.f32.mrb[0].mxu0
      %6307 = vdwg.mxu0
      %v6308 = vadd.f32 %v5999, %v6166
      %v6309 = vadd.f32 %v6000, %v6169
      %v6310 = vadd.f32 %v6001, %v6174
      %v6311 = vadd.f32 %v6002, %v6177
      %v6312 = vadd.f32 %v6003, %v6182
      %v6313 = vadd.f32 %v6004, %v6185
      %v6314 = vadd.f32 %v6005, %v6190
      %v6315 = vadd.f32 %v6006, %v6193
      %v6316 = vadd.f32 %v6007, %v6198
      %v6317 = vadd.f32 %v6008, %v6201
      %v6318 = vadd.f32 %v6009, %v6206
      %v6319 = vadd.f32 %v6010, %v6209
      %v6320 = vadd.f32 %v6011, %v6214
      %v6321 = vadd.f32 %v6012, %v6217
      %v6322 = vadd.f32 %v6013, %v6222
      %v6323 = vadd.f32 %v6014, %v6225
      %v6324 = vadd.f32 %v6015, %v6230
      %v6325 = vadd.f32 %v6016, %v6233
      %v6326 = vadd.f32 %v6017, %v6238
      %v6327 = vadd.f32 %v6018, %v6241
      %v6328 = vadd.f32 %v6019, %v6246
      %v6329 = vadd.f32 %v6020, %v6249
      %v6330 = vadd.f32 %v6021, %v6254
      %v6331 = vadd.f32 %v6022, %v6257
      %v6332 = vadd.f32 %v6023, %v6262
      %v6333 = vadd.f32 %v6024, %v6265
      %v6334 = vadd.f32 %v6025, %v6270
      %v6335 = vadd.f32 %v6026, %v6273
      %v6336 = vadd.f32 %v6027, %v6278
      %v6337 = vadd.f32 %v6028, %v6281
      %v6338 = vadd.f32 %v6029, %v6286
      %v6339 = vadd.f32 %v6030, %v6289
      %v6340 = vadd.f32 %v6031, %v6294
      %v6341 = vadd.f32 %v6032, %v6297
      %v6342 = vadd.f32 %v6033, %v6302
      %v6343 = vadd.f32 %v6034, %v6305
      %v6344 = vld [vmem:[%s5] sm:$0x1]
      %v6346 = vlaneseq
      %v6347 = vshrl.u32 %v6346, 7
      %v6348 = vsub.s32 0, %v6347
      %v6349 = vrot.slane %v6344, %v6348
      %v6351 = vadd.f32 %v6308, %v6349
      %v6352 = vadd.f32 %v6309, %v6349
      %v6353 = vadd.f32 %v6310, %v6349
      %v6354 = vadd.f32 %v6311, %v6349
      %v6355 = vadd.f32 %v6312, %v6349
      %v6356 = vadd.f32 %v6313, %v6349
      %v6357 = vadd.f32 %v6314, %v6349
      %v6358 = vadd.f32 %v6315, %v6349
      %v6359 = vadd.f32 %v6316, %v6349
      %v6360 = vadd.f32 %v6317, %v6349
      %v6361 = vadd.f32 %v6318, %v6349
      %v6362 = vadd.f32 %v6319, %v6349
      %v6363 = vadd.f32 %v6320, %v6349
      %v6364 = vadd.f32 %v6321, %v6349
      %v6365 = vadd.f32 %v6322, %v6349
      %v6366 = vadd.f32 %v6323, %v6349
      %v6367 = vadd.f32 %v6324, %v6349
      %v6368 = vadd.f32 %v6325, %v6349
      %v6369 = vadd.f32 %v6326, %v6349
      %v6370 = vadd.f32 %v6327, %v6349
      %v6371 = vadd.f32 %v6328, %v6349
      %v6372 = vadd.f32 %v6329, %v6349
      %v6373 = vadd.f32 %v6330, %v6349
      %v6374 = vadd.f32 %v6331, %v6349
      %v6375 = vadd.f32 %v6332, %v6349
      %v6376 = vadd.f32 %v6333, %v6349
      %v6377 = vadd.f32 %v6334, %v6349
      %v6378 = vadd.f32 %v6335, %v6349
      %v6379 = vadd.f32 %v6336, %v6349
      %v6380 = vadd.f32 %v6337, %v6349
      %v6381 = vadd.f32 %v6338, %v6349
      %v6382 = vadd.f32 %v6339, %v6349
      %v6383 = vadd.f32 %v6340, %v6349
      %v6384 = vadd.f32 %v6341, %v6349
      %v6385 = vadd.f32 %v6342, %v6349
      %v6386 = vadd.f32 %v6343, %v6349
      %vm6424 = vcmask 1044480
      %v6425 = vrot.slane %v283, 3
      %v6426 = vrot.slane %v284, 3
      %v6427 = vsel %vm6424, %v6425, %v6426
      %v6428 = vrot.slane %v285, 3
      %v6429 = vsel %vm6424, %v6426, %v6428
      %v6430 = vrot.slane %v286, 3
      %v6431 = vsel %vm6424, %v6428, %v6430
      %v6432 = vrot.slane %v287, 3
      %v6433 = vsel %vm6424, %v6430, %v6432
      %v6434 = vrot.slane %v288, 3
      %v6435 = vsel %vm6424, %v6432, %v6434
      %v6436 = vrot.slane %v289, 3
      %v6437 = vsel %vm6424, %v6434, %v6436
      %v6438 = vrot.slane %v290, 3
      %v6439 = vsel %vm6424, %v6436, %v6438
      %v6440 = vrot.slane %v291, 3
      %v6441 = vsel %vm6424, %v6438, %v6440
      %v6442 = vrot.slane %v292, 3
      %v6443 = vsel %vm6424, %v6440, %v6442
      %v6444 = vrot.slane %v293, 3
      %v6445 = vsel %vm6424, %v6442, %v6444
      %v6446 = vrot.slane %v294, 3
      %v6447 = vsel %vm6424, %v6444, %v6446
      %v6448 = vrot.slane %v295, 3
      %v6449 = vsel %vm6424, %v6446, %v6448
      %v6450 = vrot.slane %v296, 3
      %v6451 = vsel %vm6424, %v6448, %v6450
      %v6452 = vrot.slane %v297, 3
      %v6453 = vsel %vm6424, %v6450, %v6452
      %v6454 = vrot.slane %v298, 3
      %v6455 = vsel %vm6424, %v6452, %v6454
      %v6456 = vrot.slane %v299, 3
      %v6457 = vsel %vm6424, %v6454, %v6456
      %v6458 = vrot.slane %v300, 3
      %v6459 = vsel %vm6424, %v6456, %v6458
      %v6460 = vrot.slane %v301, 3
      %v6461 = vsel %vm6424, %v6458, %v6460
      %v6462 = vrot.slane %v302, 3
      %v6463 = vsel %vm6424, %v6460, %v6462
      %v6464 = vrot.slane %v303, 3
      %v6465 = vsel %vm6424, %v6462, %v6464
      %v6466 = vrot.slane %v304, 3
      %v6467 = vsel %vm6424, %v6464, %v6466
      %v6468 = vrot.slane %v305, 3
      %v6469 = vsel %vm6424, %v6466, %v6468
      %v6470 = vrot.slane %v306, 3
      %v6471 = vsel %vm6424, %v6468, %v6470
      %v6472 = vrot.slane %v307, 3
      %v6473 = vsel %vm6424, %v6470, %v6472
      %v6474 = vrot.slane %v308, 3
      %v6475 = vsel %vm6424, %v6472, %v6474
      %v6476 = vrot.slane %v309, 3
      %v6477 = vsel %vm6424, %v6474, %v6476
      %v6478 = vrot.slane %v310, 3
      %v6479 = vsel %vm6424, %v6476, %v6478
      %v6480 = vrot.slane %v311, 3
      %v6481 = vsel %vm6424, %v6478, %v6480
      %v6482 = vrot.slane %v312, 3
      %v6483 = vsel %vm6424, %v6480, %v6482
      %v6484 = vrot.slane %v313, 3
      %v6485 = vsel %vm6424, %v6482, %v6484
      %v6486 = vrot.slane %v314, 3
      %v6487 = vsel %vm6424, %v6484, %v6486
      %v6488 = vrot.slane %v315, 3
      %v6489 = vsel %vm6424, %v6486, %v6488
      %v6490 = vrot.slane %v316, 3
      %v6491 = vsel %vm6424, %v6488, %v6490
      %v6492 = vrot.slane %v317, 3
      %v6493 = vsel %vm6424, %v6490, %v6492
      %v6494 = vrot.slane %v318, 3
      %v6495 = vsel %vm6424, %v6492, %v6494
      %v6496 = vrot.slane %v319, 3
      %v6497 = vsel %vm6424, %v6494, %v6496
      %v6534 = vadd.f32 %v6351, %v6427
      %v6535 = vadd.f32 %v6352, %v6429
      %v6536 = vadd.f32 %v6353, %v6431
      %v6537 = vadd.f32 %v6354, %v6433
      %v6538 = vadd.f32 %v6355, %v6435
      %v6539 = vadd.f32 %v6356, %v6437
      %v6540 = vadd.f32 %v6357, %v6439
      %v6541 = vadd.f32 %v6358, %v6441
      %v6542 = vadd.f32 %v6359, %v6443
      %v6543 = vadd.f32 %v6360, %v6445
      %v6544 = vadd.f32 %v6361, %v6447
      %v6545 = vadd.f32 %v6362, %v6449
      %v6546 = vadd.f32 %v6363, %v6451
      %v6547 = vadd.f32 %v6364, %v6453
      %v6548 = vadd.f32 %v6365, %v6455
      %v6549 = vadd.f32 %v6366, %v6457
      %v6550 = vadd.f32 %v6367, %v6459
      %v6551 = vadd.f32 %v6368, %v6461
      %v6552 = vadd.f32 %v6369, %v6463
      %v6553 = vadd.f32 %v6370, %v6465
      %v6554 = vadd.f32 %v6371, %v6467
      %v6555 = vadd.f32 %v6372, %v6469
      %v6556 = vadd.f32 %v6373, %v6471
      %v6557 = vadd.f32 %v6374, %v6473
      %v6558 = vadd.f32 %v6375, %v6475
      %v6559 = vadd.f32 %v6376, %v6477
      %v6560 = vadd.f32 %v6377, %v6479
      %v6561 = vadd.f32 %v6378, %v6481
      %v6562 = vadd.f32 %v6379, %v6483
      %v6563 = vadd.f32 %v6380, %v6485
      %v6564 = vadd.f32 %v6381, %v6487
      %v6565 = vadd.f32 %v6382, %v6489
      %v6566 = vadd.f32 %v6383, %v6491
      %v6567 = vadd.f32 %v6384, %v6493
      %v6568 = vadd.f32 %v6385, %v6495
      %v6569 = vadd.f32 %v6386, %v6497
      %6570 = vst.msk [vmem:[%s279] sm:$0xff] %vm493, %v6534
      %6571 = vst.msk [vmem:[%s279 + $0x8] sm:$0xff] %vm493, %v6535
      %6572 = vst.msk [vmem:[%s279 + $0x10] sm:$0xff] %vm493, %v6536
      %6573 = vst.msk [vmem:[%s279 + $0x18] sm:$0xff] %vm493, %v6537
      %6574 = vst.msk [vmem:[%s279 + $0x20] sm:$0xff] %vm493, %v6538
      %6575 = vst.msk [vmem:[%s279 + $0x28] sm:$0xff] %vm493, %v6539
      %6576 = vst.msk [vmem:[%s279 + $0x30] sm:$0xff] %vm493, %v6540
      %6577 = vst.msk [vmem:[%s279 + $0x38] sm:$0xff] %vm493, %v6541
      %6578 = vst.msk [vmem:[%s279 + $0x40] sm:$0xff] %vm493, %v6542
      %6579 = vst.msk [vmem:[%s279 + $0x48] sm:$0xff] %vm493, %v6543
      %6580 = vst.msk [vmem:[%s279 + $0x50] sm:$0xff] %vm493, %v6544
      %6581 = vst.msk [vmem:[%s279 + $0x58] sm:$0xff] %vm493, %v6545
      %6582 = vst.msk [vmem:[%s279 + $0x60] sm:$0xff] %vm493, %v6546
      %6583 = vst.msk [vmem:[%s279 + $0x68] sm:$0xff] %vm493, %v6547
      %6584 = vst.msk [vmem:[%s279 + $0x70] sm:$0xff] %vm493, %v6548
      %6585 = vst.msk [vmem:[%s279 + $0x78] sm:$0xff] %vm493, %v6549
      %6586 = vst.msk [vmem:[%s279 + $0x80] sm:$0xff] %vm493, %v6550
      %6587 = vst.msk [vmem:[%s279 + $0x88] sm:$0xff] %vm493, %v6551
      %6588 = vst.msk [vmem:[%s279 + $0x90] sm:$0xff] %vm493, %v6552
      %6589 = vst.msk [vmem:[%s279 + $0x98] sm:$0xff] %vm493, %v6553
      %6590 = vst.msk [vmem:[%s279 + $0xa0] sm:$0xff] %vm493, %v6554
      %6591 = vst.msk [vmem:[%s279 + $0xa8] sm:$0xff] %vm493, %v6555
      %6592 = vst.msk [vmem:[%s279 + $0xb0] sm:$0xff] %vm493, %v6556
      %6593 = vst.msk [vmem:[%s279 + $0xb8] sm:$0xff] %vm493, %v6557
      %6594 = vst.msk [vmem:[%s279 + $0xc0] sm:$0xff] %vm493, %v6558
      %6595 = vst.msk [vmem:[%s279 + $0xc8] sm:$0xff] %vm493, %v6559
      %6596 = vst.msk [vmem:[%s279 + $0xd0] sm:$0xff] %vm493, %v6560
      %6597 = vst.msk [vmem:[%s279 + $0xd8] sm:$0xff] %vm493, %v6561
      %6598 = vst.msk [vmem:[%s279 + $0xe0] sm:$0xff] %vm493, %v6562
      %6599 = vst.msk [vmem:[%s279 + $0xe8] sm:$0xff] %vm493, %v6563
      %6600 = vst.msk [vmem:[%s279 + $0xf0] sm:$0xff] %vm493, %v6564
      %6601 = vst.msk [vmem:[%s279 + $0xf8] sm:$0xff] %vm493, %v6565
      %6602 = vst.msk [vmem:[%s279 + $0x100] sm:$0xff] %vm493, %v6566
      %6603 = vst.msk [vmem:[%s279 + $0x108] sm:$0xff] %vm493, %v6567
      %6604 = vst.msk [vmem:[%s279 + $0x110] sm:$0xff] %vm493, %v6568
      %6605 = vst.msk [vmem:[%s279 + $0x118] sm:$0xff] %vm493, %v6569
      %p6606 = scmp.lt.s32.totalorder %s19, 1
      %s6607 = scalar_select %p6606, %s19, 1
      %s6608 = smul.addr %s6607, 36
      %s6609 = smul.addr %s6608, 8
      %s6610 = scalar_lea.vmem %s7, %s6609
      // Predicated region
      $region49: #{residual_block_forward.1} parent=47 // pred_check
        %p6611 = pneg %p189
      $region50: #{residual_block_forward.1} parent=47 // pred_check_branch
        %6613 = sbr.rel (%p6611) target = $region52
      $region51: #{residual_block_forward.1} parent=47 // pred_region
        _
      $region52: #{residual_block_forward.1} parent=47 // pred_fallthru
        _
    $region48: #{residual_block_forward.1} parent=5 // pred_fallthru
      _
    %p6614 = scmp.le.s32.totalorder 2, %s14
    // Predicated region
    $region53: #{residual_block_forward.1} parent=5 // pred_check
      %p6615 = pneg %p6614
    $region54: #{residual_block_forward.1} parent=5 // pred_check_branch
      %6617 = sbr.rel (%p6615) target = $region56
    $region55: #{residual_block_forward.1} parent=5 // pred_region
      %s6618 = ssub.s32 %s14, 2
      // Predicated region
      $region57: #{residual_block_forward.1} parent=55 // pred_check
        %p6619 = pneg %p195
      $region58: #{residual_block_forward.1} parent=55 // pred_check_branch
        %6621 = sbr.rel (%p6619) target = $region60
      $region59: #{residual_block_forward.1} parent=55 // pred_region
        %p6622 = scmp.lt.s32.totalorder %s20, 1
        %s6623 = scalar_select %p6622, %s20, 1
        %s6624 = smul.addr %s6623, 36
        %s6625 = smul.addr %s6624, 8
        %s6626 = scalar_lea.vmem %s7, %s6625
      $region60: #{residual_block_forward.1} parent=55 // pred_fallthru
        _
    $region56: #{residual_block_forward.1} parent=5 // pred_fallthru
      _
  $region6: #{residual_block_forward.1} parent=0 // loop_footer
    %s18 = sadd.s32 1, %s14
  $region7: #{residual_block_forward.1} parent=0 // loop_footer_branch
    %13 = sbr.rel target = $region3
  $region8: #{residual_block_forward.1} parent=0 // loop_exit
    _

</llo_original>
